<compile_context>
chip_gen: v7x
topology: tpu7x:2x2x1
jax: 0.10.0
libtpu: 0.0.40
codegen_flags: <defaults>
</compile_context>

<pallas_src>
import jax
import jax.numpy as jnp
from jax import lax
from jax.experimental import pallas as pl
from jax.experimental.pallas import tpu as pltpu


def attention_word_rnn_kernel(
    # inputs
    ids_ref, h0_ref, emb_ref, wih_ref, bih_ref,
    whhf_ref, whhb_ref, bhnf_ref, bhnb_ref,
    wlin_ref, blin_ref, wattn_ref,
    # outputs
    av_ref, state_ref, attn_ref,
    # scratch
    gi_ref, hout_ref,
):
    S, B, _ = hout_ref.shape
    H = whhf_ref.shape[0]
    V, _ = emb_ref.shape
    SB = S * B
    cdt = wih_ref.dtype           # MXU operand dtype (bf16 by default), f32 accumulate

    # ---- embedding lookup: exact one-hot matmul on the MXU --------------------------
    ids = ids_ref[...]                                               # (S*B, 1) int32
    vocab_iota = lax.broadcasted_iota(jnp.int32, (SB, V), 1)
    onehot = jnp.where(ids == vocab_iota, 1.0, 0.0).astype(cdt)      # (S*B, V)
    x = jnp.dot(onehot, emb_ref[...], preferred_element_type=jnp.float32)   # (S*B, E)

    # ---- fused bidirectional input projection (single MXU matmul) -------------------
    # bih_ref already contains b_ih + [b_hr, b_hz, 0] for both directions.
    gi_all = (jnp.dot(x.astype(cdt), wih_ref[...],
                      preferred_element_type=jnp.float32)
              + bih_ref[...])                                        # (S*B, 6H) f32
    gi_ref[...] = gi_all.reshape(S, B, 6 * H)

    # loop-invariant weights held in vregs across the unrolled recurrence
    whh_f = whhf_ref[...]          # (H, 3H)
    whh_b = whhb_ref[...]
    b_hn_f = bhnf_ref[...]         # (1, H)
    b_hn_b = bhnb_ref[...]

    def gru_gate(gi, gh, b_hn, h_prev):
        # PyTorch gate order (r, z, n); all elementwise gate math in f32.
        r = jax.nn.sigmoid(gi[:, 0:H] + gh[:, 0:H])
        z = jax.nn.sigmoid(gi[:, H:2 * H] + gh[:, H:2 * H])
        n = jnp.tanh(gi[:, 2 * H:3 * H] + r * (gh[:, 2 * H:3 * H] + b_hn))
        return (1.0 - z) * n + z * h_prev

    def step(t, carry):
        h_f, h_b = carry
        tb = S - 1 - t
        gi_t = gi_ref[t]                                             # (B, 6H)
        gi_tb = gi_ref[tb]
        gh_f = jnp.dot(h_f.astype(cdt), whh_f, preferred_element_type=jnp.float32)
        gh_b = jnp.dot(h_b.astype(cdt), whh_b, preferred_element_type=jnp.float32)
        h_f = gru_gate(gi_t[:, 0:3 * H], gh_f, b_hn_f, h_f)
        h_b = gru_gate(gi_tb[:, 3 * H:6 * H], gh_b, b_hn_b, h_b)
        # write fwd/bwd halves of output_word directly (no concat later)
        hout_ref[t, :, 0:H] = h_f
        hout_ref[tb, :, H:2 * H] = h_b
        return (h_f, h_b)

    h_f_last, h_b_last = lax.fori_loop(
        0, S, step, (h0_ref[0], h0_ref[1]), unroll=True)

    # final hidden state: [forward final, backward final]  (PyTorch bi-GRU convention)
    state_ref[0] = h_f_last
    state_ref[1] = h_b_last

    # ---- attention epilogue ----------------------------------------------------------
    out3 = hout_ref[...]                                             # (S, B, 2H) f32
    of = out3.reshape(SB, 2 * H)
    squish = jax.nn.sigmoid(
        jnp.dot(of.astype(cdt), wlin_ref[...], preferred_element_type=jnp.float32)
        + blin_ref[...])                                             # (S*B, 2H)
    # word_attn_lin has output width 1: do it as multiply + lane reduce (VPU/XLU),
    # not a masked 1-column MXU matmul.
    logit = jnp.sum(squish * wattn_ref[...], axis=-1, keepdims=True)  # (S*B, 1)
    attn3 = jax.nn.sigmoid(logit).reshape(S, B, 1)
    attn_ref[...] = attn3                                            # (S, B, 1)
    # word_attn_vectors = sum_t output_word * attn   -> (1, B, 2H)
    av_ref[0] = jnp.sum(out3 * attn3, axis=0)


def attention_word_rnn(token_ids, state_word, kp):
    """token_ids: (S, B) int32, state_word: (2, B, H) f32, kp: prepare_params(...)."""
    S, B = token_ids.shape
    H = kp["w_hh_f"].shape[0]

    ids2d = token_ids.reshape(S * B, 1).astype(jnp.int32)
    ins = [
        ids2d, state_word, kp["emb"], kp["w_ih_cat"], kp["b_i_cat"],
        kp["w_hh_f"], kp["w_hh_b"], kp["b_hn_f"], kp["b_hn_b"],
        kp["w_lin"], kp["b_lin"], kp["w_attn"],
    ]
    out_shape = (
        jax.ShapeDtypeStruct((1, B, 2 * H), jnp.float32),  # word_attn_vectors
        jax.ShapeDtypeStruct((2, B, H), jnp.float32),      # state_word
        jax.ShapeDtypeStruct((S, B, 1), jnp.float32),      # word_attn
    )
    vmem = lambda: pl.BlockSpec(memory_space=pltpu.MemorySpace.VMEM)
    fn = pl.pallas_call(
        attention_word_rnn_kernel,
        out_shape=out_shape,
        in_specs=[vmem() for _ in ins],
        out_specs=tuple(vmem() for _ in range(3)),
        scratch_shapes=[
            pltpu.VMEM((S, B, 6 * H), jnp.float32),   # fused input-gate pre-activations
            pltpu.VMEM((S, B, 2 * H), jnp.float32),   # output_word (fwd|bwd halves)
        ],
    )
    return fn(*ins)


def init_params(key, V, E, H):
    """PyTorch-shaped raw parameters (GRU + linears + embedding table)."""
    ks = jax.random.split(key, 12)
    kg = 1.0 / (H ** 0.5)
    kl = 1.0 / ((2 * H) ** 0.5)
    u = lambda k, s, b: jax.random.uniform(k, s, jnp.float32, -b, b)
    return {
        "emb": jax.random.normal(ks[0], (V, E), jnp.float32),
        # GRU forward direction (gate order r, z, n)
        "w_ih_f": u(ks[1], (3 * H, E), kg), "w_hh_f": u(ks[2], (3 * H, H), kg),
        "b_ih_f": u(ks[3], (3 * H,), kg),   "b_hh_f": u(ks[4], (3 * H,), kg),
        # GRU reverse direction
        "w_ih_b": u(ks[5], (3 * H, E), kg), "w_hh_b": u(ks[6], (3 * H, H), kg),
        "b_ih_b": u(ks[7], (3 * H,), kg),   "b_hh_b": u(ks[8], (3 * H,), kg),
        # word_lin_layer: Linear(2H -> 2H)
        "w_lin": u(ks[9], (2 * H, 2 * H), kl), "b_lin": u(ks[10], (2 * H,), kl),
        # word_attn_lin: Linear(2H -> 1, bias=False)
        "w_attn": u(ks[11], (1, 2 * H), kl),
    }


def prepare_params(raw, compute_dtype=jnp.bfloat16):
    """One-time kernel-layout prep: transpose + concat weights, fold r/z hh-biases."""
    H = raw["w_hh_f"].shape[1]

    def fold_bias(b_ih, b_hh):   # b_ih + [b_hr, b_hz, 0]
        return b_ih + jnp.concatenate([b_hh[:2 * H], jnp.zeros((H,), b_hh.dtype)])

    return {
        "emb": raw["emb"].astype(compute_dtype),                               # (V, E)
        "w_ih_cat": jnp.concatenate([raw["w_ih_f"].T, raw["w_ih_b"].T],
                                    axis=1).astype(compute_dtype),             # (E, 6H)
        "b_i_cat": jnp.concatenate([fold_bias(raw["b_ih_f"], raw["b_hh_f"]),
                                    fold_bias(raw["b_ih_b"], raw["b_hh_b"])])[None, :],
        "w_hh_f": raw["w_hh_f"].T.astype(compute_dtype),                       # (H, 3H)
        "w_hh_b": raw["w_hh_b"].T.astype(compute_dtype),
        "b_hn_f": raw["b_hh_f"][2 * H:][None, :],                              # (1, H)
        "b_hn_b": raw["b_hh_b"][2 * H:][None, :],
        "w_lin": raw["w_lin"].T.astype(compute_dtype),                         # (2H, 2H)
        "b_lin": raw["b_lin"][None, :],                                        # (1, 2H)
        "w_attn": raw["w_attn"],                                               # (1, 2H)
    }


if __name__ == "__main__":
    S, B, H, E, V = 8, 8, 32, 64, 128   # seq, batch, word_gru_hidden, embed_size, vocab
    key = jax.random.PRNGKey(0)
    k_ids, k_p = jax.random.split(key)

    token_ids = jax.random.randint(k_ids, (S, B), 0, V, dtype=jnp.int32)
    state_word = jnp.zeros((2, B, H), jnp.float32)       # == module.init_hidden()
    params = prepare_params(init_params(k_p, V, E, H), compute_dtype=jnp.bfloat16)

    outs = attention_word_rnn(token_ids, state_word, params)
    jax.block_until_ready(outs)

    word_attn_vectors, state, word_attn = outs
    assert word_attn_vectors.shape == (1, B, 2 * H)
    assert state.shape == (2, B, H)
    assert word_attn.shape == (S, B, 1)
    print("KERNEL_OK")
</pallas_src>

<mosaic_0001>
module attributes {stable_mosaic.version = 11 : i64} {
  func.func @attention_word_rnn_kernel(%arg0: memref<64x1xi32, #tpu.memory_space<vmem>>, %arg1: memref<2x8x32xf32, #tpu.memory_space<vmem>>, %arg2: memref<128x64xbf16, #tpu.memory_space<vmem>>, %arg3: memref<64x192xbf16, #tpu.memory_space<vmem>>, %arg4: memref<1x192xf32, #tpu.memory_space<vmem>>, %arg5: memref<32x96xbf16, #tpu.memory_space<vmem>>, %arg6: memref<32x96xbf16, #tpu.memory_space<vmem>>, %arg7: memref<1x32xf32, #tpu.memory_space<vmem>>, %arg8: memref<1x32xf32, #tpu.memory_space<vmem>>, %arg9: memref<64x64xbf16, #tpu.memory_space<vmem>>, %arg10: memref<1x64xf32, #tpu.memory_space<vmem>>, %arg11: memref<1x64xf32, #tpu.memory_space<vmem>>, %arg12: memref<1x8x64xf32, #tpu.memory_space<vmem>>, %arg13: memref<2x8x32xf32, #tpu.memory_space<vmem>>, %arg14: memref<8x8x1xf32, #tpu.memory_space<vmem>>, %arg15: memref<8x8x192xf32, #tpu.memory_space<vmem>>, %arg16: memref<8x8x64xf32, #tpu.memory_space<vmem>>) attributes {dimension_semantics = [], scalar_prefetch = 0 : i64, scratch_operands = 2 : i64, tpu.core_type = #tpu.core_type<tc>} {
    %c0 = arith.constant 0 : index
    %c0_0 = arith.constant 0 : index
    %0 = vector.load %arg0[%c0, %c0_0] : memref<64x1xi32, #tpu.memory_space<vmem>>, vector<64x1xi32>
    %1 = tpu.iota {dimensions = array<i32: 1>} : vector<64x128xi32>
    %2 = vector.broadcast %0 : vector<64x1xi32> to vector<64x128xi32>
    %3 = arith.cmpi eq, %2, %1 : vector<64x128xi32>
    %cst = arith.constant 1.000000e+00 : f32
    %cst_1 = arith.constant 0.000000e+00 : f32
    %4 = vector.broadcast %cst : f32 to vector<64x128xf32>
    %5 = vector.broadcast %cst_1 : f32 to vector<64x128xf32>
    %6 = arith.select %3, %4, %5 : vector<64x128xi1>, vector<64x128xf32>
    %7 = arith.truncf %6 : vector<64x128xf32> to vector<64x128xbf16>
    %c0_2 = arith.constant 0 : index
    %c0_3 = arith.constant 0 : index
    %8 = vector.load %arg2[%c0_2, %c0_3] : memref<128x64xbf16, #tpu.memory_space<vmem>>, vector<128x64xbf16>
    %cst_4 = arith.constant dense<0.000000e+00> : vector<64x64xf32>
    %9 = tpu.matmul %7, %8, %cst_4 {dimension_numbers = #tpu.dot_dimension_numbers<[1], [0], [0], [1], [0, 0, 1, 1], [], []>} : vector<64x128xbf16>, vector<128x64xbf16>, vector<64x64xf32> -> vector<64x64xf32>
    %10 = arith.truncf %9 : vector<64x64xf32> to vector<64x64xbf16>
    %c0_5 = arith.constant 0 : index
    %c0_6 = arith.constant 0 : index
    %11 = vector.load %arg3[%c0_5, %c0_6] : memref<64x192xbf16, #tpu.memory_space<vmem>>, vector<64x192xbf16>
    %cst_7 = arith.constant dense<0.000000e+00> : vector<64x192xf32>
    %12 = tpu.matmul %10, %11, %cst_7 {dimension_numbers = #tpu.dot_dimension_numbers<[1], [0], [0], [1], [0, 0, 1, 1], [], []>} : vector<64x64xbf16>, vector<64x192xbf16>, vector<64x192xf32> -> vector<64x192xf32>
    %c0_8 = arith.constant 0 : index
    %c0_9 = arith.constant 0 : index
    %13 = vector.load %arg4[%c0_8, %c0_9] : memref<1x192xf32, #tpu.memory_space<vmem>>, vector<1x192xf32>
    %14 = vector.broadcast %13 : vector<1x192xf32> to vector<64x192xf32>
    %15 = arith.addf %12, %14 : vector<64x192xf32>
    %16 = vector.shape_cast %15 : vector<64x192xf32> to vector<8x8x192xf32>
    %c0_10 = arith.constant 0 : index
    %c0_11 = arith.constant 0 : index
    %c0_12 = arith.constant 0 : index
    %17 = vector.load %arg15[%c0_10, %c0_11, %c0_12] : memref<8x8x192xf32, #tpu.memory_space<vmem>>, vector<8x8x192xf32>
    tpu.vector_store %arg15[%c0_10, %c0_11, %c0_12], %16 {strides = array<i32>} : memref<8x8x192xf32, #tpu.memory_space<vmem>>, vector<8x8x192xf32>,
    %c0_13 = arith.constant 0 : index
    %c0_14 = arith.constant 0 : index
    %18 = vector.load %arg5[%c0_13, %c0_14] : memref<32x96xbf16, #tpu.memory_space<vmem>>, vector<32x96xbf16>
    %c0_15 = arith.constant 0 : index
    %c0_16 = arith.constant 0 : index
    %19 = vector.load %arg6[%c0_15, %c0_16] : memref<32x96xbf16, #tpu.memory_space<vmem>>, vector<32x96xbf16>
    %c0_17 = arith.constant 0 : index
    %c0_18 = arith.constant 0 : index
    %20 = vector.load %arg7[%c0_17, %c0_18] : memref<1x32xf32, #tpu.memory_space<vmem>>, vector<1x32xf32>
    %c0_19 = arith.constant 0 : index
    %c0_20 = arith.constant 0 : index
    %21 = vector.load %arg8[%c0_19, %c0_20] : memref<1x32xf32, #tpu.memory_space<vmem>>, vector<1x32xf32>
    %c0_21 = arith.constant 0 : index
    %c0_22 = arith.constant 0 : index
    %c0_23 = arith.constant 0 : index
    %22 = vector.load %arg1[%c0_21, %c0_22, %c0_23] : memref<2x8x32xf32, #tpu.memory_space<vmem>>, vector<1x8x32xf32>
    %23 = vector.shape_cast %22 : vector<1x8x32xf32> to vector<8x32xf32>
    %c1 = arith.constant 1 : index
    %c0_24 = arith.constant 0 : index
    %c0_25 = arith.constant 0 : index
    %24 = vector.load %arg1[%c1, %c0_24, %c0_25] : memref<2x8x32xf32, #tpu.memory_space<vmem>>, vector<1x8x32xf32>
    %25 = vector.shape_cast %24 : vector<1x8x32xf32> to vector<8x32xf32>
    %c0_i32 = arith.constant 0 : i32
    %c7_i32 = arith.constant 7 : i32
    %26 = arith.subi %c7_i32, %c0_i32 : i32
    %27 = arith.index_cast %c0_i32 : i32 to index
    %c0_26 = arith.constant 0 : index
    %c0_27 = arith.constant 0 : index
    %28 = vector.load %arg15[%27, %c0_26, %c0_27] : memref<8x8x192xf32, #tpu.memory_space<vmem>>, vector<1x8x192xf32>
    %29 = vector.shape_cast %28 : vector<1x8x192xf32> to vector<8x192xf32>
    %30 = arith.index_cast %26 : i32 to index
    %c0_28 = arith.constant 0 : index
    %c0_29 = arith.constant 0 : index
    %31 = vector.load %arg15[%30, %c0_28, %c0_29] : memref<8x8x192xf32, #tpu.memory_space<vmem>>, vector<1x8x192xf32>
    %32 = vector.shape_cast %31 : vector<1x8x192xf32> to vector<8x192xf32>
    %33 = arith.truncf %23 : vector<8x32xf32> to vector<8x32xbf16>
    %cst_30 = arith.constant dense<0.000000e+00> : vector<8x96xf32>
    %34 = tpu.matmul %33, %18, %cst_30 {dimension_numbers = #tpu.dot_dimension_numbers<[1], [0], [0], [1], [0, 0, 1, 1], [], []>} : vector<8x32xbf16>, vector<32x96xbf16>, vector<8x96xf32> -> vector<8x96xf32>
    %35 = arith.truncf %25 : vector<8x32xf32> to vector<8x32xbf16>
    %cst_31 = arith.constant dense<0.000000e+00> : vector<8x96xf32>
    %36 = tpu.matmul %35, %19, %cst_31 {dimension_numbers = #tpu.dot_dimension_numbers<[1], [0], [0], [1], [0, 0, 1, 1], [], []>} : vector<8x32xbf16>, vector<32x96xbf16>, vector<8x96xf32> -> vector<8x96xf32>
    %37 = vector.extract_strided_slice %29 {offsets = [0, 0], sizes = [8, 96], strides = [1, 1]} : vector<8x192xf32> to vector<8x96xf32>
    %38 = vector.extract_strided_slice %37 {offsets = [0, 0], sizes = [8, 32], strides = [1, 1]} : vector<8x96xf32> to vector<8x32xf32>
    %39 = vector.extract_strided_slice %34 {offsets = [0, 0], sizes = [8, 32], strides = [1, 1]} : vector<8x96xf32> to vector<8x32xf32>
    %40 = arith.addf %38, %39 : vector<8x32xf32>
    %41 = arith.negf %40 : vector<8x32xf32>
    %42 = math.exp %41 : vector<8x32xf32>
    %cst_32 = arith.constant 1.000000e+00 : f32
    %43 = vector.broadcast %cst_32 : f32 to vector<8x32xf32>
    %44 = arith.addf %43, %42 : vector<8x32xf32>
    %45 = arith.divf %43, %44 : vector<8x32xf32>
    %46 = vector.extract_strided_slice %37 {offsets = [0, 32], sizes = [8, 32], strides = [1, 1]} : vector<8x96xf32> to vector<8x32xf32>
    %47 = vector.extract_strided_slice %34 {offsets = [0, 32], sizes = [8, 32], strides = [1, 1]} : vector<8x96xf32> to vector<8x32xf32>
    %48 = arith.addf %46, %47 : vector<8x32xf32>
    %49 = arith.negf %48 : vector<8x32xf32>
    %50 = math.exp %49 : vector<8x32xf32>
    %cst_33 = arith.constant 1.000000e+00 : f32
    %51 = vector.broadcast %cst_33 : f32 to vector<8x32xf32>
    %52 = arith.addf %51, %50 : vector<8x32xf32>
    %53 = arith.divf %51, %52 : vector<8x32xf32>
    %54 = vector.extract_strided_slice %37 {offsets = [0, 64], sizes = [8, 32], strides = [1, 1]} : vector<8x96xf32> to vector<8x32xf32>
    %55 = vector.extract_strided_slice %34 {offsets = [0, 64], sizes = [8, 32], strides = [1, 1]} : vector<8x96xf32> to vector<8x32xf32>
    %56 = vector.broadcast %20 : vector<1x32xf32> to vector<8x32xf32>
    %57 = arith.addf %55, %56 : vector<8x32xf32>
    %58 = arith.mulf %45, %57 : vector<8x32xf32>
    %59 = arith.addf %54, %58 : vector<8x32xf32>
    %60 = math.tanh %59 : vector<8x32xf32>
    %cst_34 = arith.constant 1.000000e+00 : f32
    %61 = vector.broadcast %cst_34 : f32 to vector<8x32xf32>
    %62 = arith.subf %61, %53 : vector<8x32xf32>
    %63 = arith.mulf %62, %60 : vector<8x32xf32>
    %64 = arith.mulf %53, %23 : vector<8x32xf32>
    %65 = arith.addf %63, %64 : vector<8x32xf32>
    %66 = vector.extract_strided_slice %32 {offsets = [0, 96], sizes = [8, 96], strides = [1, 1]} : vector<8x192xf32> to vector<8x96xf32>
    %67 = vector.extract_strided_slice %66 {offsets = [0, 0], sizes = [8, 32], strides = [1, 1]} : vector<8x96xf32> to vector<8x32xf32>
    %68 = vector.extract_strided_slice %36 {offsets = [0, 0], sizes = [8, 32], strides = [1, 1]} : vector<8x96xf32> to vector<8x32xf32>
    %69 = arith.addf %67, %68 : vector<8x32xf32>
    %70 = arith.negf %69 : vector<8x32xf32>
    %71 = math.exp %70 : vector<8x32xf32>
    %cst_35 = arith.constant 1.000000e+00 : f32
    %72 = vector.broadcast %cst_35 : f32 to vector<8x32xf32>
    %73 = arith.addf %72, %71 : vector<8x32xf32>
    %74 = arith.divf %72, %73 : vector<8x32xf32>
    %75 = vector.extract_strided_slice %66 {offsets = [0, 32], sizes = [8, 32], strides = [1, 1]} : vector<8x96xf32> to vector<8x32xf32>
    %76 = vector.extract_strided_slice %36 {offsets = [0, 32], sizes = [8, 32], strides = [1, 1]} : vector<8x96xf32> to vector<8x32xf32>
    %77 = arith.addf %75, %76 : vector<8x32xf32>
    %78 = arith.negf %77 : vector<8x32xf32>
    %79 = math.exp %78 : vector<8x32xf32>
    %cst_36 = arith.constant 1.000000e+00 : f32
    %80 = vector.broadcast %cst_36 : f32 to vector<8x32xf32>
    %81 = arith.addf %80, %79 : vector<8x32xf32>
    %82 = arith.divf %80, %81 : vector<8x32xf32>
    %83 = vector.extract_strided_slice %66 {offsets = [0, 64], sizes = [8, 32], strides = [1, 1]} : vector<8x96xf32> to vector<8x32xf32>
    %84 = vector.extract_strided_slice %36 {offsets = [0, 64], sizes = [8, 32], strides = [1, 1]} : vector<8x96xf32> to vector<8x32xf32>
    %85 = vector.broadcast %21 : vector<1x32xf32> to vector<8x32xf32>
    %86 = arith.addf %84, %85 : vector<8x32xf32>
    %87 = arith.mulf %74, %86 : vector<8x32xf32>
    %88 = arith.addf %83, %87 : vector<8x32xf32>
    %89 = math.tanh %88 : vector<8x32xf32>
    %cst_37 = arith.constant 1.000000e+00 : f32
    %90 = vector.broadcast %cst_37 : f32 to vector<8x32xf32>
    %91 = arith.subf %90, %82 : vector<8x32xf32>
    %92 = arith.mulf %91, %89 : vector<8x32xf32>
    %93 = arith.mulf %82, %25 : vector<8x32xf32>
    %94 = arith.addf %92, %93 : vector<8x32xf32>
    %95 = arith.index_cast %c0_i32 : i32 to index
    %c0_38 = arith.constant 0 : index
    %c0_39 = arith.constant 0 : index
    %96 = vector.load %arg16[%95, %c0_38, %c0_39] : memref<8x8x64xf32, #tpu.memory_space<vmem>>, vector<1x8x32xf32>
    %97 = vector.shape_cast %96 : vector<1x8x32xf32> to vector<8x32xf32>
    %98 = vector.shape_cast %65 : vector<8x32xf32> to vector<1x8x32xf32>
    tpu.vector_store %arg16[%95, %c0_38, %c0_39], %98 {strides = array<i32>} : memref<8x8x64xf32, #tpu.memory_space<vmem>>, vector<1x8x32xf32>,
    %99 = arith.index_cast %26 : i32 to index
    %c0_40 = arith.constant 0 : index
    %c32 = arith.constant 32 : index
    %100 = vector.load %arg16[%99, %c0_40, %c32] : memref<8x8x64xf32, #tpu.memory_space<vmem>>, vector<1x8x32xf32>
    %101 = vector.shape_cast %100 : vector<1x8x32xf32> to vector<8x32xf32>
    %102 = vector.shape_cast %94 : vector<8x32xf32> to vector<1x8x32xf32>
    tpu.vector_store %arg16[%99, %c0_40, %c32], %102 {strides = array<i32>} : memref<8x8x64xf32, #tpu.memory_space<vmem>>, vector<1x8x32xf32>,
    %c1_i32 = arith.constant 1 : i32
    %c7_i32_41 = arith.constant 7 : i32
    %103 = arith.subi %c7_i32_41, %c1_i32 : i32
    %104 = arith.index_cast %c1_i32 : i32 to index
    %c0_42 = arith.constant 0 : index
    %c0_43 = arith.constant 0 : index
    %105 = vector.load %arg15[%104, %c0_42, %c0_43] : memref<8x8x192xf32, #tpu.memory_space<vmem>>, vector<1x8x192xf32>
    %106 = vector.shape_cast %105 : vector<1x8x192xf32> to vector<8x192xf32>
    %107 = arith.index_cast %103 : i32 to index
    %c0_44 = arith.constant 0 : index
    %c0_45 = arith.constant 0 : index
    %108 = vector.load %arg15[%107, %c0_44, %c0_45] : memref<8x8x192xf32, #tpu.memory_space<vmem>>, vector<1x8x192xf32>
    %109 = vector.shape_cast %108 : vector<1x8x192xf32> to vector<8x192xf32>
    %110 = arith.truncf %65 : vector<8x32xf32> to vector<8x32xbf16>
    %cst_46 = arith.constant dense<0.000000e+00> : vector<8x96xf32>
    %111 = tpu.matmul %110, %18, %cst_46 {dimension_numbers = #tpu.dot_dimension_numbers<[1], [0], [0], [1], [0, 0, 1, 1], [], []>} : vector<8x32xbf16>, vector<32x96xbf16>, vector<8x96xf32> -> vector<8x96xf32>
    %112 = arith.truncf %94 : vector<8x32xf32> to vector<8x32xbf16>
    %cst_47 = arith.constant dense<0.000000e+00> : vector<8x96xf32>
    %113 = tpu.matmul %112, %19, %cst_47 {dimension_numbers = #tpu.dot_dimension_numbers<[1], [0], [0], [1], [0, 0, 1, 1], [], []>} : vector<8x32xbf16>, vector<32x96xbf16>, vector<8x96xf32> -> vector<8x96xf32>
    %114 = vector.extract_strided_slice %106 {offsets = [0, 0], sizes = [8, 96], strides = [1, 1]} : vector<8x192xf32> to vector<8x96xf32>
    %115 = vector.extract_strided_slice %114 {offsets = [0, 0], sizes = [8, 32], strides = [1, 1]} : vector<8x96xf32> to vector<8x32xf32>
    %116 = vector.extract_strided_slice %111 {offsets = [0, 0], sizes = [8, 32], strides = [1, 1]} : vector<8x96xf32> to vector<8x32xf32>
    %117 = arith.addf %115, %116 : vector<8x32xf32>
    %118 = arith.negf %117 : vector<8x32xf32>
    %119 = math.exp %118 : vector<8x32xf32>
    %cst_48 = arith.constant 1.000000e+00 : f32
    %120 = vector.broadcast %cst_48 : f32 to vector<8x32xf32>
    %121 = arith.addf %120, %119 : vector<8x32xf32>
    %122 = arith.divf %120, %121 : vector<8x32xf32>
    %123 = vector.extract_strided_slice %114 {offsets = [0, 32], sizes = [8, 32], strides = [1, 1]} : vector<8x96xf32> to vector<8x32xf32>
    %124 = vector.extract_strided_slice %111 {offsets = [0, 32], sizes = [8, 32], strides = [1, 1]} : vector<8x96xf32> to vector<8x32xf32>
    %125 = arith.addf %123, %124 : vector<8x32xf32>
    %126 = arith.negf %125 : vector<8x32xf32>
    %127 = math.exp %126 : vector<8x32xf32>
    %cst_49 = arith.constant 1.000000e+00 : f32
    %128 = vector.broadcast %cst_49 : f32 to vector<8x32xf32>
    %129 = arith.addf %128, %127 : vector<8x32xf32>
    %130 = arith.divf %128, %129 : vector<8x32xf32>
    %131 = vector.extract_strided_slice %114 {offsets = [0, 64], sizes = [8, 32], strides = [1, 1]} : vector<8x96xf32> to vector<8x32xf32>
    %132 = vector.extract_strided_slice %111 {offsets = [0, 64], sizes = [8, 32], strides = [1, 1]} : vector<8x96xf32> to vector<8x32xf32>
    %133 = vector.broadcast %20 : vector<1x32xf32> to vector<8x32xf32>
    %134 = arith.addf %132, %133 : vector<8x32xf32>
    %135 = arith.mulf %122, %134 : vector<8x32xf32>
    %136 = arith.addf %131, %135 : vector<8x32xf32>
    %137 = math.tanh %136 : vector<8x32xf32>
    %cst_50 = arith.constant 1.000000e+00 : f32
    %138 = vector.broadcast %cst_50 : f32 to vector<8x32xf32>
    %139 = arith.subf %138, %130 : vector<8x32xf32>
    %140 = arith.mulf %139, %137 : vector<8x32xf32>
    %141 = arith.mulf %130, %65 : vector<8x32xf32>
    %142 = arith.addf %140, %141 : vector<8x32xf32>
    %143 = vector.extract_strided_slice %109 {offsets = [0, 96], sizes = [8, 96], strides = [1, 1]} : vector<8x192xf32> to vector<8x96xf32>
    %144 = vector.extract_strided_slice %143 {offsets = [0, 0], sizes = [8, 32], strides = [1, 1]} : vector<8x96xf32> to vector<8x32xf32>
    %145 = vector.extract_strided_slice %113 {offsets = [0, 0], sizes = [8, 32], strides = [1, 1]} : vector<8x96xf32> to vector<8x32xf32>
    %146 = arith.addf %144, %145 : vector<8x32xf32>
    %147 = arith.negf %146 : vector<8x32xf32>
    %148 = math.exp %147 : vector<8x32xf32>
    %cst_51 = arith.constant 1.000000e+00 : f32
    %149 = vector.broadcast %cst_51 : f32 to vector<8x32xf32>
    %150 = arith.addf %149, %148 : vector<8x32xf32>
    %151 = arith.divf %149, %150 : vector<8x32xf32>
    %152 = vector.extract_strided_slice %143 {offsets = [0, 32], sizes = [8, 32], strides = [1, 1]} : vector<8x96xf32> to vector<8x32xf32>
    %153 = vector.extract_strided_slice %113 {offsets = [0, 32], sizes = [8, 32], strides = [1, 1]} : vector<8x96xf32> to vector<8x32xf32>
    %154 = arith.addf %152, %153 : vector<8x32xf32>
    %155 = arith.negf %154 : vector<8x32xf32>
    %156 = math.exp %155 : vector<8x32xf32>
    %cst_52 = arith.constant 1.000000e+00 : f32
    %157 = vector.broadcast %cst_52 : f32 to vector<8x32xf32>
    %158 = arith.addf %157, %156 : vector<8x32xf32>
    %159 = arith.divf %157, %158 : vector<8x32xf32>
    %160 = vector.extract_strided_slice %143 {offsets = [0, 64], sizes = [8, 32], strides = [1, 1]} : vector<8x96xf32> to vector<8x32xf32>
    %161 = vector.extract_strided_slice %113 {offsets = [0, 64], sizes = [8, 32], strides = [1, 1]} : vector<8x96xf32> to vector<8x32xf32>
    %162 = vector.broadcast %21 : vector<1x32xf32> to vector<8x32xf32>
    %163 = arith.addf %161, %162 : vector<8x32xf32>
    %164 = arith.mulf %151, %163 : vector<8x32xf32>
    %165 = arith.addf %160, %164 : vector<8x32xf32>
    %166 = math.tanh %165 : vector<8x32xf32>
    %cst_53 = arith.constant 1.000000e+00 : f32
    %167 = vector.broadcast %cst_53 : f32 to vector<8x32xf32>
    %168 = arith.subf %167, %159 : vector<8x32xf32>
    %169 = arith.mulf %168, %166 : vector<8x32xf32>
    %170 = arith.mulf %159, %94 : vector<8x32xf32>
    %171 = arith.addf %169, %170 : vector<8x32xf32>
    %172 = arith.index_cast %c1_i32 : i32 to index
    %c0_54 = arith.constant 0 : index
    %c0_55 = arith.constant 0 : index
    %173 = vector.load %arg16[%172, %c0_54, %c0_55] : memref<8x8x64xf32, #tpu.memory_space<vmem>>, vector<1x8x32xf32>
    %174 = vector.shape_cast %173 : vector<1x8x32xf32> to vector<8x32xf32>
    %175 = vector.shape_cast %142 : vector<8x32xf32> to vector<1x8x32xf32>
    tpu.vector_store %arg16[%172, %c0_54, %c0_55], %175 {strides = array<i32>} : memref<8x8x64xf32, #tpu.memory_space<vmem>>, vector<1x8x32xf32>,
    %176 = arith.index_cast %103 : i32 to index
    %c0_56 = arith.constant 0 : index
    %c32_57 = arith.constant 32 : index
    %177 = vector.load %arg16[%176, %c0_56, %c32_57] : memref<8x8x64xf32, #tpu.memory_space<vmem>>, vector<1x8x32xf32>
    %178 = vector.shape_cast %177 : vector<1x8x32xf32> to vector<8x32xf32>
    %179 = vector.shape_cast %171 : vector<8x32xf32> to vector<1x8x32xf32>
    tpu.vector_store %arg16[%176, %c0_56, %c32_57], %179 {strides = array<i32>} : memref<8x8x64xf32, #tpu.memory_space<vmem>>, vector<1x8x32xf32>,
    %c2_i32 = arith.constant 2 : i32
    %c7_i32_58 = arith.constant 7 : i32
    %180 = arith.subi %c7_i32_58, %c2_i32 : i32
    %181 = arith.index_cast %c2_i32 : i32 to index
    %c0_59 = arith.constant 0 : index
    %c0_60 = arith.constant 0 : index
    %182 = vector.load %arg15[%181, %c0_59, %c0_60] : memref<8x8x192xf32, #tpu.memory_space<vmem>>, vector<1x8x192xf32>
    %183 = vector.shape_cast %182 : vector<1x8x192xf32> to vector<8x192xf32>
    %184 = arith.index_cast %180 : i32 to index
    %c0_61 = arith.constant 0 : index
    %c0_62 = arith.constant 0 : index
    %185 = vector.load %arg15[%184, %c0_61, %c0_62] : memref<8x8x192xf32, #tpu.memory_space<vmem>>, vector<1x8x192xf32>
    %186 = vector.shape_cast %185 : vector<1x8x192xf32> to vector<8x192xf32>
    %187 = arith.truncf %142 : vector<8x32xf32> to vector<8x32xbf16>
    %cst_63 = arith.constant dense<0.000000e+00> : vector<8x96xf32>
    %188 = tpu.matmul %187, %18, %cst_63 {dimension_numbers = #tpu.dot_dimension_numbers<[1], [0], [0], [1], [0, 0, 1, 1], [], []>} : vector<8x32xbf16>, vector<32x96xbf16>, vector<8x96xf32> -> vector<8x96xf32>
    %189 = arith.truncf %171 : vector<8x32xf32> to vector<8x32xbf16>
    %cst_64 = arith.constant dense<0.000000e+00> : vector<8x96xf32>
    %190 = tpu.matmul %189, %19, %cst_64 {dimension_numbers = #tpu.dot_dimension_numbers<[1], [0], [0], [1], [0, 0, 1, 1], [], []>} : vector<8x32xbf16>, vector<32x96xbf16>, vector<8x96xf32> -> vector<8x96xf32>
    %191 = vector.extract_strided_slice %183 {offsets = [0, 0], sizes = [8, 96], strides = [1, 1]} : vector<8x192xf32> to vector<8x96xf32>
    %192 = vector.extract_strided_slice %191 {offsets = [0, 0], sizes = [8, 32], strides = [1, 1]} : vector<8x96xf32> to vector<8x32xf32>
    %193 = vector.extract_strided_slice %188 {offsets = [0, 0], sizes = [8, 32], strides = [1, 1]} : vector<8x96xf32> to vector<8x32xf32>
    %194 = arith.addf %192, %193 : vector<8x32xf32>
    %195 = arith.negf %194 : vector<8x32xf32>
    %196 = math.exp %195 : vector<8x32xf32>
    %cst_65 = arith.constant 1.000000e+00 : f32
    %197 = vector.broadcast %cst_65 : f32 to vector<8x32xf32>
    %198 = arith.addf %197, %196 : vector<8x32xf32>
    %199 = arith.divf %197, %198 : vector<8x32xf32>
    %200 = vector.extract_strided_slice %191 {offsets = [0, 32], sizes = [8, 32], strides = [1, 1]} : vector<8x96xf32> to vector<8x32xf32>
    %201 = vector.extract_strided_slice %188 {offsets = [0, 32], sizes = [8, 32], strides = [1, 1]} : vector<8x96xf32> to vector<8x32xf32>
    %202 = arith.addf %200, %201 : vector<8x32xf32>
    %203 = arith.negf %202 : vector<8x32xf32>
    %204 = math.exp %203 : vector<8x32xf32>
    %cst_66 = arith.constant 1.000000e+00 : f32
    %205 = vector.broadcast %cst_66 : f32 to vector<8x32xf32>
    %206 = arith.addf %205, %204 : vector<8x32xf32>
    %207 = arith.divf %205, %206 : vector<8x32xf32>
    %208 = vector.extract_strided_slice %191 {offsets = [0, 64], sizes = [8, 32], strides = [1, 1]} : vector<8x96xf32> to vector<8x32xf32>
    %209 = vector.extract_strided_slice %188 {offsets = [0, 64], sizes = [8, 32], strides = [1, 1]} : vector<8x96xf32> to vector<8x32xf32>
    %210 = vector.broadcast %20 : vector<1x32xf32> to vector<8x32xf32>
    %211 = arith.addf %209, %210 : vector<8x32xf32>
    %212 = arith.mulf %199, %211 : vector<8x32xf32>
    %213 = arith.addf %208, %212 : vector<8x32xf32>
    %214 = math.tanh %213 : vector<8x32xf32>
    %cst_67 = arith.constant 1.000000e+00 : f32
    %215 = vector.broadcast %cst_67 : f32 to vector<8x32xf32>
    %216 = arith.subf %215, %207 : vector<8x32xf32>
    %217 = arith.mulf %216, %214 : vector<8x32xf32>
    %218 = arith.mulf %207, %142 : vector<8x32xf32>
    %219 = arith.addf %217, %218 : vector<8x32xf32>
    %220 = vector.extract_strided_slice %186 {offsets = [0, 96], sizes = [8, 96], strides = [1, 1]} : vector<8x192xf32> to vector<8x96xf32>
    %221 = vector.extract_strided_slice %220 {offsets = [0, 0], sizes = [8, 32], strides = [1, 1]} : vector<8x96xf32> to vector<8x32xf32>
    %222 = vector.extract_strided_slice %190 {offsets = [0, 0], sizes = [8, 32], strides = [1, 1]} : vector<8x96xf32> to vector<8x32xf32>
    %223 = arith.addf %221, %222 : vector<8x32xf32>
    %224 = arith.negf %223 : vector<8x32xf32>
    %225 = math.exp %224 : vector<8x32xf32>
    %cst_68 = arith.constant 1.000000e+00 : f32
    %226 = vector.broadcast %cst_68 : f32 to vector<8x32xf32>
    %227 = arith.addf %226, %225 : vector<8x32xf32>
    %228 = arith.divf %226, %227 : vector<8x32xf32>
    %229 = vector.extract_strided_slice %220 {offsets = [0, 32], sizes = [8, 32], strides = [1, 1]} : vector<8x96xf32> to vector<8x32xf32>
    %230 = vector.extract_strided_slice %190 {offsets = [0, 32], sizes = [8, 32], strides = [1, 1]} : vector<8x96xf32> to vector<8x32xf32>
    %231 = arith.addf %229, %230 : vector<8x32xf32>
    %232 = arith.negf %231 : vector<8x32xf32>
    %233 = math.exp %232 : vector<8x32xf32>
    %cst_69 = arith.constant 1.000000e+00 : f32
    %234 = vector.broadcast %cst_69 : f32 to vector<8x32xf32>
    %235 = arith.addf %234, %233 : vector<8x32xf32>
    %236 = arith.divf %234, %235 : vector<8x32xf32>
    %237 = vector.extract_strided_slice %220 {offsets = [0, 64], sizes = [8, 32], strides = [1, 1]} : vector<8x96xf32> to vector<8x32xf32>
    %238 = vector.extract_strided_slice %190 {offsets = [0, 64], sizes = [8, 32], strides = [1, 1]} : vector<8x96xf32> to vector<8x32xf32>
    %239 = vector.broadcast %21 : vector<1x32xf32> to vector<8x32xf32>
    %240 = arith.addf %238, %239 : vector<8x32xf32>
    %241 = arith.mulf %228, %240 : vector<8x32xf32>
    %242 = arith.addf %237, %241 : vector<8x32xf32>
    %243 = math.tanh %242 : vector<8x32xf32>
    %cst_70 = arith.constant 1.000000e+00 : f32
    %244 = vector.broadcast %cst_70 : f32 to vector<8x32xf32>
    %245 = arith.subf %244, %236 : vector<8x32xf32>
    %246 = arith.mulf %245, %243 : vector<8x32xf32>
    %247 = arith.mulf %236, %171 : vector<8x32xf32>
    %248 = arith.addf %246, %247 : vector<8x32xf32>
    %249 = arith.index_cast %c2_i32 : i32 to index
    %c0_71 = arith.constant 0 : index
    %c0_72 = arith.constant 0 : index
    %250 = vector.load %arg16[%249, %c0_71, %c0_72] : memref<8x8x64xf32, #tpu.memory_space<vmem>>, vector<1x8x32xf32>
    %251 = vector.shape_cast %250 : vector<1x8x32xf32> to vector<8x32xf32>
    %252 = vector.shape_cast %219 : vector<8x32xf32> to vector<1x8x32xf32>
    tpu.vector_store %arg16[%249, %c0_71, %c0_72], %252 {strides = array<i32>} : memref<8x8x64xf32, #tpu.memory_space<vmem>>, vector<1x8x32xf32>,
    %253 = arith.index_cast %180 : i32 to index
    %c0_73 = arith.constant 0 : index
    %c32_74 = arith.constant 32 : index
    %254 = vector.load %arg16[%253, %c0_73, %c32_74] : memref<8x8x64xf32, #tpu.memory_space<vmem>>, vector<1x8x32xf32>
    %255 = vector.shape_cast %254 : vector<1x8x32xf32> to vector<8x32xf32>
    %256 = vector.shape_cast %248 : vector<8x32xf32> to vector<1x8x32xf32>
    tpu.vector_store %arg16[%253, %c0_73, %c32_74], %256 {strides = array<i32>} : memref<8x8x64xf32, #tpu.memory_space<vmem>>, vector<1x8x32xf32>,
    %c3_i32 = arith.constant 3 : i32
    %c7_i32_75 = arith.constant 7 : i32
    %257 = arith.subi %c7_i32_75, %c3_i32 : i32
    %258 = arith.index_cast %c3_i32 : i32 to index
    %c0_76 = arith.constant 0 : index
    %c0_77 = arith.constant 0 : index
    %259 = vector.load %arg15[%258, %c0_76, %c0_77] : memref<8x8x192xf32, #tpu.memory_space<vmem>>, vector<1x8x192xf32>
    %260 = vector.shape_cast %259 : vector<1x8x192xf32> to vector<8x192xf32>
    %261 = arith.index_cast %257 : i32 to index
    %c0_78 = arith.constant 0 : index
    %c0_79 = arith.constant 0 : index
    %262 = vector.load %arg15[%261, %c0_78, %c0_79] : memref<8x8x192xf32, #tpu.memory_space<vmem>>, vector<1x8x192xf32>
    %263 = vector.shape_cast %262 : vector<1x8x192xf32> to vector<8x192xf32>
    %264 = arith.truncf %219 : vector<8x32xf32> to vector<8x32xbf16>
    %cst_80 = arith.constant dense<0.000000e+00> : vector<8x96xf32>
    %265 = tpu.matmul %264, %18, %cst_80 {dimension_numbers = #tpu.dot_dimension_numbers<[1], [0], [0], [1], [0, 0, 1, 1], [], []>} : vector<8x32xbf16>, vector<32x96xbf16>, vector<8x96xf32> -> vector<8x96xf32>
    %266 = arith.truncf %248 : vector<8x32xf32> to vector<8x32xbf16>
    %cst_81 = arith.constant dense<0.000000e+00> : vector<8x96xf32>
    %267 = tpu.matmul %266, %19, %cst_81 {dimension_numbers = #tpu.dot_dimension_numbers<[1], [0], [0], [1], [0, 0, 1, 1], [], []>} : vector<8x32xbf16>, vector<32x96xbf16>, vector<8x96xf32> -> vector<8x96xf32>
    %268 = vector.extract_strided_slice %260 {offsets = [0, 0], sizes = [8, 96], strides = [1, 1]} : vector<8x192xf32> to vector<8x96xf32>
    %269 = vector.extract_strided_slice %268 {offsets = [0, 0], sizes = [8, 32], strides = [1, 1]} : vector<8x96xf32> to vector<8x32xf32>
    %270 = vector.extract_strided_slice %265 {offsets = [0, 0], sizes = [8, 32], strides = [1, 1]} : vector<8x96xf32> to vector<8x32xf32>
    %271 = arith.addf %269, %270 : vector<8x32xf32>
    %272 = arith.negf %271 : vector<8x32xf32>
    %273 = math.exp %272 : vector<8x32xf32>
    %cst_82 = arith.constant 1.000000e+00 : f32
    %274 = vector.broadcast %cst_82 : f32 to vector<8x32xf32>
    %275 = arith.addf %274, %273 : vector<8x32xf32>
    %276 = arith.divf %274, %275 : vector<8x32xf32>
    %277 = vector.extract_strided_slice %268 {offsets = [0, 32], sizes = [8, 32], strides = [1, 1]} : vector<8x96xf32> to vector<8x32xf32>
    %278 = vector.extract_strided_slice %265 {offsets = [0, 32], sizes = [8, 32], strides = [1, 1]} : vector<8x96xf32> to vector<8x32xf32>
    %279 = arith.addf %277, %278 : vector<8x32xf32>
    %280 = arith.negf %279 : vector<8x32xf32>
    %281 = math.exp %280 : vector<8x32xf32>
    %cst_83 = arith.constant 1.000000e+00 : f32
    %282 = vector.broadcast %cst_83 : f32 to vector<8x32xf32>
    %283 = arith.addf %282, %281 : vector<8x32xf32>
    %284 = arith.divf %282, %283 : vector<8x32xf32>
    %285 = vector.extract_strided_slice %268 {offsets = [0, 64], sizes = [8, 32], strides = [1, 1]} : vector<8x96xf32> to vector<8x32xf32>
    %286 = vector.extract_strided_slice %265 {offsets = [0, 64], sizes = [8, 32], strides = [1, 1]} : vector<8x96xf32> to vector<8x32xf32>
    %287 = vector.broadcast %20 : vector<1x32xf32> to vector<8x32xf32>
    %288 = arith.addf %286, %287 : vector<8x32xf32>
    %289 = arith.mulf %276, %288 : vector<8x32xf32>
    %290 = arith.addf %285, %289 : vector<8x32xf32>
    %291 = math.tanh %290 : vector<8x32xf32>
    %cst_84 = arith.constant 1.000000e+00 : f32
    %292 = vector.broadcast %cst_84 : f32 to vector<8x32xf32>
    %293 = arith.subf %292, %284 : vector<8x32xf32>
    %294 = arith.mulf %293, %291 : vector<8x32xf32>
    %295 = arith.mulf %284, %219 : vector<8x32xf32>
    %296 = arith.addf %294, %295 : vector<8x32xf32>
    %297 = vector.extract_strided_slice %263 {offsets = [0, 96], sizes = [8, 96], strides = [1, 1]} : vector<8x192xf32> to vector<8x96xf32>
    %298 = vector.extract_strided_slice %297 {offsets = [0, 0], sizes = [8, 32], strides = [1, 1]} : vector<8x96xf32> to vector<8x32xf32>
    %299 = vector.extract_strided_slice %267 {offsets = [0, 0], sizes = [8, 32], strides = [1, 1]} : vector<8x96xf32> to vector<8x32xf32>
    %300 = arith.addf %298, %299 : vector<8x32xf32>
    %301 = arith.negf %300 : vector<8x32xf32>
    %302 = math.exp %301 : vector<8x32xf32>
    %cst_85 = arith.constant 1.000000e+00 : f32
    %303 = vector.broadcast %cst_85 : f32 to vector<8x32xf32>
    %304 = arith.addf %303, %302 : vector<8x32xf32>
    %305 = arith.divf %303, %304 : vector<8x32xf32>
    %306 = vector.extract_strided_slice %297 {offsets = [0, 32], sizes = [8, 32], strides = [1, 1]} : vector<8x96xf32> to vector<8x32xf32>
    %307 = vector.extract_strided_slice %267 {offsets = [0, 32], sizes = [8, 32], strides = [1, 1]} : vector<8x96xf32> to vector<8x32xf32>
    %308 = arith.addf %306, %307 : vector<8x32xf32>
    %309 = arith.negf %308 : vector<8x32xf32>
    %310 = math.exp %309 : vector<8x32xf32>
    %cst_86 = arith.constant 1.000000e+00 : f32
    %311 = vector.broadcast %cst_86 : f32 to vector<8x32xf32>
    %312 = arith.addf %311, %310 : vector<8x32xf32>
    %313 = arith.divf %311, %312 : vector<8x32xf32>
    %314 = vector.extract_strided_slice %297 {offsets = [0, 64], sizes = [8, 32], strides = [1, 1]} : vector<8x96xf32> to vector<8x32xf32>
    %315 = vector.extract_strided_slice %267 {offsets = [0, 64], sizes = [8, 32], strides = [1, 1]} : vector<8x96xf32> to vector<8x32xf32>
    %316 = vector.broadcast %21 : vector<1x32xf32> to vector<8x32xf32>
    %317 = arith.addf %315, %316 : vector<8x32xf32>
    %318 = arith.mulf %305, %317 : vector<8x32xf32>
    %319 = arith.addf %314, %318 : vector<8x32xf32>
    %320 = math.tanh %319 : vector<8x32xf32>
    %cst_87 = arith.constant 1.000000e+00 : f32
    %321 = vector.broadcast %cst_87 : f32 to vector<8x32xf32>
    %322 = arith.subf %321, %313 : vector<8x32xf32>
    %323 = arith.mulf %322, %320 : vector<8x32xf32>
    %324 = arith.mulf %313, %248 : vector<8x32xf32>
    %325 = arith.addf %323, %324 : vector<8x32xf32>
    %326 = arith.index_cast %c3_i32 : i32 to index
    %c0_88 = arith.constant 0 : index
    %c0_89 = arith.constant 0 : index
    %327 = vector.load %arg16[%326, %c0_88, %c0_89] : memref<8x8x64xf32, #tpu.memory_space<vmem>>, vector<1x8x32xf32>
    %328 = vector.shape_cast %327 : vector<1x8x32xf32> to vector<8x32xf32>
    %329 = vector.shape_cast %296 : vector<8x32xf32> to vector<1x8x32xf32>
    tpu.vector_store %arg16[%326, %c0_88, %c0_89], %329 {strides = array<i32>} : memref<8x8x64xf32, #tpu.memory_space<vmem>>, vector<1x8x32xf32>,
    %330 = arith.index_cast %257 : i32 to index
    %c0_90 = arith.constant 0 : index
    %c32_91 = arith.constant 32 : index
    %331 = vector.load %arg16[%330, %c0_90, %c32_91] : memref<8x8x64xf32, #tpu.memory_space<vmem>>, vector<1x8x32xf32>
    %332 = vector.shape_cast %331 : vector<1x8x32xf32> to vector<8x32xf32>
    %333 = vector.shape_cast %325 : vector<8x32xf32> to vector<1x8x32xf32>
    tpu.vector_store %arg16[%330, %c0_90, %c32_91], %333 {strides = array<i32>} : memref<8x8x64xf32, #tpu.memory_space<vmem>>, vector<1x8x32xf32>,
    %c4_i32 = arith.constant 4 : i32
    %c7_i32_92 = arith.constant 7 : i32
    %334 = arith.subi %c7_i32_92, %c4_i32 : i32
    %335 = arith.index_cast %c4_i32 : i32 to index
    %c0_93 = arith.constant 0 : index
    %c0_94 = arith.constant 0 : index
    %336 = vector.load %arg15[%335, %c0_93, %c0_94] : memref<8x8x192xf32, #tpu.memory_space<vmem>>, vector<1x8x192xf32>
    %337 = vector.shape_cast %336 : vector<1x8x192xf32> to vector<8x192xf32>
    %338 = arith.index_cast %334 : i32 to index
    %c0_95 = arith.constant 0 : index
    %c0_96 = arith.constant 0 : index
    %339 = vector.load %arg15[%338, %c0_95, %c0_96] : memref<8x8x192xf32, #tpu.memory_space<vmem>>, vector<1x8x192xf32>
    %340 = vector.shape_cast %339 : vector<1x8x192xf32> to vector<8x192xf32>
    %341 = arith.truncf %296 : vector<8x32xf32> to vector<8x32xbf16>
    %cst_97 = arith.constant dense<0.000000e+00> : vector<8x96xf32>
    %342 = tpu.matmul %341, %18, %cst_97 {dimension_numbers = #tpu.dot_dimension_numbers<[1], [0], [0], [1], [0, 0, 1, 1], [], []>} : vector<8x32xbf16>, vector<32x96xbf16>, vector<8x96xf32> -> vector<8x96xf32>
    %343 = arith.truncf %325 : vector<8x32xf32> to vector<8x32xbf16>
    %cst_98 = arith.constant dense<0.000000e+00> : vector<8x96xf32>
    %344 = tpu.matmul %343, %19, %cst_98 {dimension_numbers = #tpu.dot_dimension_numbers<[1], [0], [0], [1], [0, 0, 1, 1], [], []>} : vector<8x32xbf16>, vector<32x96xbf16>, vector<8x96xf32> -> vector<8x96xf32>
    %345 = vector.extract_strided_slice %337 {offsets = [0, 0], sizes = [8, 96], strides = [1, 1]} : vector<8x192xf32> to vector<8x96xf32>
    %346 = vector.extract_strided_slice %345 {offsets = [0, 0], sizes = [8, 32], strides = [1, 1]} : vector<8x96xf32> to vector<8x32xf32>
    %347 = vector.extract_strided_slice %342 {offsets = [0, 0], sizes = [8, 32], strides = [1, 1]} : vector<8x96xf32> to vector<8x32xf32>
    %348 = arith.addf %346, %347 : vector<8x32xf32>
    %349 = arith.negf %348 : vector<8x32xf32>
    %350 = math.exp %349 : vector<8x32xf32>
    %cst_99 = arith.constant 1.000000e+00 : f32
    %351 = vector.broadcast %cst_99 : f32 to vector<8x32xf32>
    %352 = arith.addf %351, %350 : vector<8x32xf32>
    %353 = arith.divf %351, %352 : vector<8x32xf32>
    %354 = vector.extract_strided_slice %345 {offsets = [0, 32], sizes = [8, 32], strides = [1, 1]} : vector<8x96xf32> to vector<8x32xf32>
    %355 = vector.extract_strided_slice %342 {offsets = [0, 32], sizes = [8, 32], strides = [1, 1]} : vector<8x96xf32> to vector<8x32xf32>
    %356 = arith.addf %354, %355 : vector<8x32xf32>
    %357 = arith.negf %356 : vector<8x32xf32>
    %358 = math.exp %357 : vector<8x32xf32>
    %cst_100 = arith.constant 1.000000e+00 : f32
    %359 = vector.broadcast %cst_100 : f32 to vector<8x32xf32>
    %360 = arith.addf %359, %358 : vector<8x32xf32>
    %361 = arith.divf %359, %360 : vector<8x32xf32>
    %362 = vector.extract_strided_slice %345 {offsets = [0, 64], sizes = [8, 32], strides = [1, 1]} : vector<8x96xf32> to vector<8x32xf32>
    %363 = vector.extract_strided_slice %342 {offsets = [0, 64], sizes = [8, 32], strides = [1, 1]} : vector<8x96xf32> to vector<8x32xf32>
    %364 = vector.broadcast %20 : vector<1x32xf32> to vector<8x32xf32>
    %365 = arith.addf %363, %364 : vector<8x32xf32>
    %366 = arith.mulf %353, %365 : vector<8x32xf32>
    %367 = arith.addf %362, %366 : vector<8x32xf32>
    %368 = math.tanh %367 : vector<8x32xf32>
    %cst_101 = arith.constant 1.000000e+00 : f32
    %369 = vector.broadcast %cst_101 : f32 to vector<8x32xf32>
    %370 = arith.subf %369, %361 : vector<8x32xf32>
    %371 = arith.mulf %370, %368 : vector<8x32xf32>
    %372 = arith.mulf %361, %296 : vector<8x32xf32>
    %373 = arith.addf %371, %372 : vector<8x32xf32>
    %374 = vector.extract_strided_slice %340 {offsets = [0, 96], sizes = [8, 96], strides = [1, 1]} : vector<8x192xf32> to vector<8x96xf32>
    %375 = vector.extract_strided_slice %374 {offsets = [0, 0], sizes = [8, 32], strides = [1, 1]} : vector<8x96xf32> to vector<8x32xf32>
    %376 = vector.extract_strided_slice %344 {offsets = [0, 0], sizes = [8, 32], strides = [1, 1]} : vector<8x96xf32> to vector<8x32xf32>
    %377 = arith.addf %375, %376 : vector<8x32xf32>
    %378 = arith.negf %377 : vector<8x32xf32>
    %379 = math.exp %378 : vector<8x32xf32>
    %cst_102 = arith.constant 1.000000e+00 : f32
    %380 = vector.broadcast %cst_102 : f32 to vector<8x32xf32>
    %381 = arith.addf %380, %379 : vector<8x32xf32>
    %382 = arith.divf %380, %381 : vector<8x32xf32>
    %383 = vector.extract_strided_slice %374 {offsets = [0, 32], sizes = [8, 32], strides = [1, 1]} : vector<8x96xf32> to vector<8x32xf32>
    %384 = vector.extract_strided_slice %344 {offsets = [0, 32], sizes = [8, 32], strides = [1, 1]} : vector<8x96xf32> to vector<8x32xf32>
    %385 = arith.addf %383, %384 : vector<8x32xf32>
    %386 = arith.negf %385 : vector<8x32xf32>
    %387 = math.exp %386 : vector<8x32xf32>
    %cst_103 = arith.constant 1.000000e+00 : f32
    %388 = vector.broadcast %cst_103 : f32 to vector<8x32xf32>
    %389 = arith.addf %388, %387 : vector<8x32xf32>
    %390 = arith.divf %388, %389 : vector<8x32xf32>
    %391 = vector.extract_strided_slice %374 {offsets = [0, 64], sizes = [8, 32], strides = [1, 1]} : vector<8x96xf32> to vector<8x32xf32>
    %392 = vector.extract_strided_slice %344 {offsets = [0, 64], sizes = [8, 32], strides = [1, 1]} : vector<8x96xf32> to vector<8x32xf32>
    %393 = vector.broadcast %21 : vector<1x32xf32> to vector<8x32xf32>
    %394 = arith.addf %392, %393 : vector<8x32xf32>
    %395 = arith.mulf %382, %394 : vector<8x32xf32>
    %396 = arith.addf %391, %395 : vector<8x32xf32>
    %397 = math.tanh %396 : vector<8x32xf32>
    %cst_104 = arith.constant 1.000000e+00 : f32
    %398 = vector.broadcast %cst_104 : f32 to vector<8x32xf32>
    %399 = arith.subf %398, %390 : vector<8x32xf32>
    %400 = arith.mulf %399, %397 : vector<8x32xf32>
    %401 = arith.mulf %390, %325 : vector<8x32xf32>
    %402 = arith.addf %400, %401 : vector<8x32xf32>
    %403 = arith.index_cast %c4_i32 : i32 to index
    %c0_105 = arith.constant 0 : index
    %c0_106 = arith.constant 0 : index
    %404 = vector.load %arg16[%403, %c0_105, %c0_106] : memref<8x8x64xf32, #tpu.memory_space<vmem>>, vector<1x8x32xf32>
    %405 = vector.shape_cast %404 : vector<1x8x32xf32> to vector<8x32xf32>
    %406 = vector.shape_cast %373 : vector<8x32xf32> to vector<1x8x32xf32>
    tpu.vector_store %arg16[%403, %c0_105, %c0_106], %406 {strides = array<i32>} : memref<8x8x64xf32, #tpu.memory_space<vmem>>, vector<1x8x32xf32>,
    %407 = arith.index_cast %334 : i32 to index
    %c0_107 = arith.constant 0 : index
    %c32_108 = arith.constant 32 : index
    %408 = vector.load %arg16[%407, %c0_107, %c32_108] : memref<8x8x64xf32, #tpu.memory_space<vmem>>, vector<1x8x32xf32>
    %409 = vector.shape_cast %408 : vector<1x8x32xf32> to vector<8x32xf32>
    %410 = vector.shape_cast %402 : vector<8x32xf32> to vector<1x8x32xf32>
    tpu.vector_store %arg16[%407, %c0_107, %c32_108], %410 {strides = array<i32>} : memref<8x8x64xf32, #tpu.memory_space<vmem>>, vector<1x8x32xf32>,
    %c5_i32 = arith.constant 5 : i32
    %c7_i32_109 = arith.constant 7 : i32
    %411 = arith.subi %c7_i32_109, %c5_i32 : i32
    %412 = arith.index_cast %c5_i32 : i32 to index
    %c0_110 = arith.constant 0 : index
    %c0_111 = arith.constant 0 : index
    %413 = vector.load %arg15[%412, %c0_110, %c0_111] : memref<8x8x192xf32, #tpu.memory_space<vmem>>, vector<1x8x192xf32>
    %414 = vector.shape_cast %413 : vector<1x8x192xf32> to vector<8x192xf32>
    %415 = arith.index_cast %411 : i32 to index
    %c0_112 = arith.constant 0 : index
    %c0_113 = arith.constant 0 : index
    %416 = vector.load %arg15[%415, %c0_112, %c0_113] : memref<8x8x192xf32, #tpu.memory_space<vmem>>, vector<1x8x192xf32>
    %417 = vector.shape_cast %416 : vector<1x8x192xf32> to vector<8x192xf32>
    %418 = arith.truncf %373 : vector<8x32xf32> to vector<8x32xbf16>
    %cst_114 = arith.constant dense<0.000000e+00> : vector<8x96xf32>
    %419 = tpu.matmul %418, %18, %cst_114 {dimension_numbers = #tpu.dot_dimension_numbers<[1], [0], [0], [1], [0, 0, 1, 1], [], []>} : vector<8x32xbf16>, vector<32x96xbf16>, vector<8x96xf32> -> vector<8x96xf32>
    %420 = arith.truncf %402 : vector<8x32xf32> to vector<8x32xbf16>
    %cst_115 = arith.constant dense<0.000000e+00> : vector<8x96xf32>
    %421 = tpu.matmul %420, %19, %cst_115 {dimension_numbers = #tpu.dot_dimension_numbers<[1], [0], [0], [1], [0, 0, 1, 1], [], []>} : vector<8x32xbf16>, vector<32x96xbf16>, vector<8x96xf32> -> vector<8x96xf32>
    %422 = vector.extract_strided_slice %414 {offsets = [0, 0], sizes = [8, 96], strides = [1, 1]} : vector<8x192xf32> to vector<8x96xf32>
    %423 = vector.extract_strided_slice %422 {offsets = [0, 0], sizes = [8, 32], strides = [1, 1]} : vector<8x96xf32> to vector<8x32xf32>
    %424 = vector.extract_strided_slice %419 {offsets = [0, 0], sizes = [8, 32], strides = [1, 1]} : vector<8x96xf32> to vector<8x32xf32>
    %425 = arith.addf %423, %424 : vector<8x32xf32>
    %426 = arith.negf %425 : vector<8x32xf32>
    %427 = math.exp %426 : vector<8x32xf32>
    %cst_116 = arith.constant 1.000000e+00 : f32
    %428 = vector.broadcast %cst_116 : f32 to vector<8x32xf32>
    %429 = arith.addf %428, %427 : vector<8x32xf32>
    %430 = arith.divf %428, %429 : vector<8x32xf32>
    %431 = vector.extract_strided_slice %422 {offsets = [0, 32], sizes = [8, 32], strides = [1, 1]} : vector<8x96xf32> to vector<8x32xf32>
    %432 = vector.extract_strided_slice %419 {offsets = [0, 32], sizes = [8, 32], strides = [1, 1]} : vector<8x96xf32> to vector<8x32xf32>
    %433 = arith.addf %431, %432 : vector<8x32xf32>
    %434 = arith.negf %433 : vector<8x32xf32>
    %435 = math.exp %434 : vector<8x32xf32>
    %cst_117 = arith.constant 1.000000e+00 : f32
    %436 = vector.broadcast %cst_117 : f32 to vector<8x32xf32>
    %437 = arith.addf %436, %435 : vector<8x32xf32>
    %438 = arith.divf %436, %437 : vector<8x32xf32>
    %439 = vector.extract_strided_slice %422 {offsets = [0, 64], sizes = [8, 32], strides = [1, 1]} : vector<8x96xf32> to vector<8x32xf32>
    %440 = vector.extract_strided_slice %419 {offsets = [0, 64], sizes = [8, 32], strides = [1, 1]} : vector<8x96xf32> to vector<8x32xf32>
    %441 = vector.broadcast %20 : vector<1x32xf32> to vector<8x32xf32>
    %442 = arith.addf %440, %441 : vector<8x32xf32>
    %443 = arith.mulf %430, %442 : vector<8x32xf32>
    %444 = arith.addf %439, %443 : vector<8x32xf32>
    %445 = math.tanh %444 : vector<8x32xf32>
    %cst_118 = arith.constant 1.000000e+00 : f32
    %446 = vector.broadcast %cst_118 : f32 to vector<8x32xf32>
    %447 = arith.subf %446, %438 : vector<8x32xf32>
    %448 = arith.mulf %447, %445 : vector<8x32xf32>
    %449 = arith.mulf %438, %373 : vector<8x32xf32>
    %450 = arith.addf %448, %449 : vector<8x32xf32>
    %451 = vector.extract_strided_slice %417 {offsets = [0, 96], sizes = [8, 96], strides = [1, 1]} : vector<8x192xf32> to vector<8x96xf32>
    %452 = vector.extract_strided_slice %451 {offsets = [0, 0], sizes = [8, 32], strides = [1, 1]} : vector<8x96xf32> to vector<8x32xf32>
    %453 = vector.extract_strided_slice %421 {offsets = [0, 0], sizes = [8, 32], strides = [1, 1]} : vector<8x96xf32> to vector<8x32xf32>
    %454 = arith.addf %452, %453 : vector<8x32xf32>
    %455 = arith.negf %454 : vector<8x32xf32>
    %456 = math.exp %455 : vector<8x32xf32>
    %cst_119 = arith.constant 1.000000e+00 : f32
    %457 = vector.broadcast %cst_119 : f32 to vector<8x32xf32>
    %458 = arith.addf %457, %456 : vector<8x32xf32>
    %459 = arith.divf %457, %458 : vector<8x32xf32>
    %460 = vector.extract_strided_slice %451 {offsets = [0, 32], sizes = [8, 32], strides = [1, 1]} : vector<8x96xf32> to vector<8x32xf32>
    %461 = vector.extract_strided_slice %421 {offsets = [0, 32], sizes = [8, 32], strides = [1, 1]} : vector<8x96xf32> to vector<8x32xf32>
    %462 = arith.addf %460, %461 : vector<8x32xf32>
    %463 = arith.negf %462 : vector<8x32xf32>
    %464 = math.exp %463 : vector<8x32xf32>
    %cst_120 = arith.constant 1.000000e+00 : f32
    %465 = vector.broadcast %cst_120 : f32 to vector<8x32xf32>
    %466 = arith.addf %465, %464 : vector<8x32xf32>
    %467 = arith.divf %465, %466 : vector<8x32xf32>
    %468 = vector.extract_strided_slice %451 {offsets = [0, 64], sizes = [8, 32], strides = [1, 1]} : vector<8x96xf32> to vector<8x32xf32>
    %469 = vector.extract_strided_slice %421 {offsets = [0, 64], sizes = [8, 32], strides = [1, 1]} : vector<8x96xf32> to vector<8x32xf32>
    %470 = vector.broadcast %21 : vector<1x32xf32> to vector<8x32xf32>
    %471 = arith.addf %469, %470 : vector<8x32xf32>
    %472 = arith.mulf %459, %471 : vector<8x32xf32>
    %473 = arith.addf %468, %472 : vector<8x32xf32>
    %474 = math.tanh %473 : vector<8x32xf32>
    %cst_121 = arith.constant 1.000000e+00 : f32
    %475 = vector.broadcast %cst_121 : f32 to vector<8x32xf32>
    %476 = arith.subf %475, %467 : vector<8x32xf32>
    %477 = arith.mulf %476, %474 : vector<8x32xf32>
    %478 = arith.mulf %467, %402 : vector<8x32xf32>
    %479 = arith.addf %477, %478 : vector<8x32xf32>
    %480 = arith.index_cast %c5_i32 : i32 to index
    %c0_122 = arith.constant 0 : index
    %c0_123 = arith.constant 0 : index
    %481 = vector.load %arg16[%480, %c0_122, %c0_123] : memref<8x8x64xf32, #tpu.memory_space<vmem>>, vector<1x8x32xf32>
    %482 = vector.shape_cast %481 : vector<1x8x32xf32> to vector<8x32xf32>
    %483 = vector.shape_cast %450 : vector<8x32xf32> to vector<1x8x32xf32>
    tpu.vector_store %arg16[%480, %c0_122, %c0_123], %483 {strides = array<i32>} : memref<8x8x64xf32, #tpu.memory_space<vmem>>, vector<1x8x32xf32>,
    %484 = arith.index_cast %411 : i32 to index
    %c0_124 = arith.constant 0 : index
    %c32_125 = arith.constant 32 : index
    %485 = vector.load %arg16[%484, %c0_124, %c32_125] : memref<8x8x64xf32, #tpu.memory_space<vmem>>, vector<1x8x32xf32>
    %486 = vector.shape_cast %485 : vector<1x8x32xf32> to vector<8x32xf32>
    %487 = vector.shape_cast %479 : vector<8x32xf32> to vector<1x8x32xf32>
    tpu.vector_store %arg16[%484, %c0_124, %c32_125], %487 {strides = array<i32>} : memref<8x8x64xf32, #tpu.memory_space<vmem>>, vector<1x8x32xf32>,
    %c6_i32 = arith.constant 6 : i32
    %c7_i32_126 = arith.constant 7 : i32
    %488 = arith.subi %c7_i32_126, %c6_i32 : i32
    %489 = arith.index_cast %c6_i32 : i32 to index
    %c0_127 = arith.constant 0 : index
    %c0_128 = arith.constant 0 : index
    %490 = vector.load %arg15[%489, %c0_127, %c0_128] : memref<8x8x192xf32, #tpu.memory_space<vmem>>, vector<1x8x192xf32>
    %491 = vector.shape_cast %490 : vector<1x8x192xf32> to vector<8x192xf32>
    %492 = arith.index_cast %488 : i32 to index
    %c0_129 = arith.constant 0 : index
    %c0_130 = arith.constant 0 : index
    %493 = vector.load %arg15[%492, %c0_129, %c0_130] : memref<8x8x192xf32, #tpu.memory_space<vmem>>, vector<1x8x192xf32>
    %494 = vector.shape_cast %493 : vector<1x8x192xf32> to vector<8x192xf32>
    %495 = arith.truncf %450 : vector<8x32xf32> to vector<8x32xbf16>
    %cst_131 = arith.constant dense<0.000000e+00> : vector<8x96xf32>
    %496 = tpu.matmul %495, %18, %cst_131 {dimension_numbers = #tpu.dot_dimension_numbers<[1], [0], [0], [1], [0, 0, 1, 1], [], []>} : vector<8x32xbf16>, vector<32x96xbf16>, vector<8x96xf32> -> vector<8x96xf32>
    %497 = arith.truncf %479 : vector<8x32xf32> to vector<8x32xbf16>
    %cst_132 = arith.constant dense<0.000000e+00> : vector<8x96xf32>
    %498 = tpu.matmul %497, %19, %cst_132 {dimension_numbers = #tpu.dot_dimension_numbers<[1], [0], [0], [1], [0, 0, 1, 1], [], []>} : vector<8x32xbf16>, vector<32x96xbf16>, vector<8x96xf32> -> vector<8x96xf32>
    %499 = vector.extract_strided_slice %491 {offsets = [0, 0], sizes = [8, 96], strides = [1, 1]} : vector<8x192xf32> to vector<8x96xf32>
    %500 = vector.extract_strided_slice %499 {offsets = [0, 0], sizes = [8, 32], strides = [1, 1]} : vector<8x96xf32> to vector<8x32xf32>
    %501 = vector.extract_strided_slice %496 {offsets = [0, 0], sizes = [8, 32], strides = [1, 1]} : vector<8x96xf32> to vector<8x32xf32>
    %502 = arith.addf %500, %501 : vector<8x32xf32>
    %503 = arith.negf %502 : vector<8x32xf32>
    %504 = math.exp %503 : vector<8x32xf32>
    %cst_133 = arith.constant 1.000000e+00 : f32
    %505 = vector.broadcast %cst_133 : f32 to vector<8x32xf32>
    %506 = arith.addf %505, %504 : vector<8x32xf32>
    %507 = arith.divf %505, %506 : vector<8x32xf32>
    %508 = vector.extract_strided_slice %499 {offsets = [0, 32], sizes = [8, 32], strides = [1, 1]} : vector<8x96xf32> to vector<8x32xf32>
    %509 = vector.extract_strided_slice %496 {offsets = [0, 32], sizes = [8, 32], strides = [1, 1]} : vector<8x96xf32> to vector<8x32xf32>
    %510 = arith.addf %508, %509 : vector<8x32xf32>
    %511 = arith.negf %510 : vector<8x32xf32>
    %512 = math.exp %511 : vector<8x32xf32>
    %cst_134 = arith.constant 1.000000e+00 : f32
    %513 = vector.broadcast %cst_134 : f32 to vector<8x32xf32>
    %514 = arith.addf %513, %512 : vector<8x32xf32>
    %515 = arith.divf %513, %514 : vector<8x32xf32>
    %516 = vector.extract_strided_slice %499 {offsets = [0, 64], sizes = [8, 32], strides = [1, 1]} : vector<8x96xf32> to vector<8x32xf32>
    %517 = vector.extract_strided_slice %496 {offsets = [0, 64], sizes = [8, 32], strides = [1, 1]} : vector<8x96xf32> to vector<8x32xf32>
    %518 = vector.broadcast %20 : vector<1x32xf32> to vector<8x32xf32>
    %519 = arith.addf %517, %518 : vector<8x32xf32>
    %520 = arith.mulf %507, %519 : vector<8x32xf32>
    %521 = arith.addf %516, %520 : vector<8x32xf32>
    %522 = math.tanh %521 : vector<8x32xf32>
    %cst_135 = arith.constant 1.000000e+00 : f32
    %523 = vector.broadcast %cst_135 : f32 to vector<8x32xf32>
    %524 = arith.subf %523, %515 : vector<8x32xf32>
    %525 = arith.mulf %524, %522 : vector<8x32xf32>
    %526 = arith.mulf %515, %450 : vector<8x32xf32>
    %527 = arith.addf %525, %526 : vector<8x32xf32>
    %528 = vector.extract_strided_slice %494 {offsets = [0, 96], sizes = [8, 96], strides = [1, 1]} : vector<8x192xf32> to vector<8x96xf32>
    %529 = vector.extract_strided_slice %528 {offsets = [0, 0], sizes = [8, 32], strides = [1, 1]} : vector<8x96xf32> to vector<8x32xf32>
    %530 = vector.extract_strided_slice %498 {offsets = [0, 0], sizes = [8, 32], strides = [1, 1]} : vector<8x96xf32> to vector<8x32xf32>
    %531 = arith.addf %529, %530 : vector<8x32xf32>
    %532 = arith.negf %531 : vector<8x32xf32>
    %533 = math.exp %532 : vector<8x32xf32>
    %cst_136 = arith.constant 1.000000e+00 : f32
    %534 = vector.broadcast %cst_136 : f32 to vector<8x32xf32>
    %535 = arith.addf %534, %533 : vector<8x32xf32>
    %536 = arith.divf %534, %535 : vector<8x32xf32>
    %537 = vector.extract_strided_slice %528 {offsets = [0, 32], sizes = [8, 32], strides = [1, 1]} : vector<8x96xf32> to vector<8x32xf32>
    %538 = vector.extract_strided_slice %498 {offsets = [0, 32], sizes = [8, 32], strides = [1, 1]} : vector<8x96xf32> to vector<8x32xf32>
    %539 = arith.addf %537, %538 : vector<8x32xf32>
    %540 = arith.negf %539 : vector<8x32xf32>
    %541 = math.exp %540 : vector<8x32xf32>
    %cst_137 = arith.constant 1.000000e+00 : f32
    %542 = vector.broadcast %cst_137 : f32 to vector<8x32xf32>
    %543 = arith.addf %542, %541 : vector<8x32xf32>
    %544 = arith.divf %542, %543 : vector<8x32xf32>
    %545 = vector.extract_strided_slice %528 {offsets = [0, 64], sizes = [8, 32], strides = [1, 1]} : vector<8x96xf32> to vector<8x32xf32>
    %546 = vector.extract_strided_slice %498 {offsets = [0, 64], sizes = [8, 32], strides = [1, 1]} : vector<8x96xf32> to vector<8x32xf32>
    %547 = vector.broadcast %21 : vector<1x32xf32> to vector<8x32xf32>
    %548 = arith.addf %546, %547 : vector<8x32xf32>
    %549 = arith.mulf %536, %548 : vector<8x32xf32>
    %550 = arith.addf %545, %549 : vector<8x32xf32>
    %551 = math.tanh %550 : vector<8x32xf32>
    %cst_138 = arith.constant 1.000000e+00 : f32
    %552 = vector.broadcast %cst_138 : f32 to vector<8x32xf32>
    %553 = arith.subf %552, %544 : vector<8x32xf32>
    %554 = arith.mulf %553, %551 : vector<8x32xf32>
    %555 = arith.mulf %544, %479 : vector<8x32xf32>
    %556 = arith.addf %554, %555 : vector<8x32xf32>
    %557 = arith.index_cast %c6_i32 : i32 to index
    %c0_139 = arith.constant 0 : index
    %c0_140 = arith.constant 0 : index
    %558 = vector.load %arg16[%557, %c0_139, %c0_140] : memref<8x8x64xf32, #tpu.memory_space<vmem>>, vector<1x8x32xf32>
    %559 = vector.shape_cast %558 : vector<1x8x32xf32> to vector<8x32xf32>
    %560 = vector.shape_cast %527 : vector<8x32xf32> to vector<1x8x32xf32>
    tpu.vector_store %arg16[%557, %c0_139, %c0_140], %560 {strides = array<i32>} : memref<8x8x64xf32, #tpu.memory_space<vmem>>, vector<1x8x32xf32>,
    %561 = arith.index_cast %488 : i32 to index
    %c0_141 = arith.constant 0 : index
    %c32_142 = arith.constant 32 : index
    %562 = vector.load %arg16[%561, %c0_141, %c32_142] : memref<8x8x64xf32, #tpu.memory_space<vmem>>, vector<1x8x32xf32>
    %563 = vector.shape_cast %562 : vector<1x8x32xf32> to vector<8x32xf32>
    %564 = vector.shape_cast %556 : vector<8x32xf32> to vector<1x8x32xf32>
    tpu.vector_store %arg16[%561, %c0_141, %c32_142], %564 {strides = array<i32>} : memref<8x8x64xf32, #tpu.memory_space<vmem>>, vector<1x8x32xf32>,
    %c7_i32_143 = arith.constant 7 : i32
    %c7_i32_144 = arith.constant 7 : i32
    %565 = arith.subi %c7_i32_144, %c7_i32_143 : i32
    %566 = arith.index_cast %c7_i32_143 : i32 to index
    %c0_145 = arith.constant 0 : index
    %c0_146 = arith.constant 0 : index
    %567 = vector.load %arg15[%566, %c0_145, %c0_146] : memref<8x8x192xf32, #tpu.memory_space<vmem>>, vector<1x8x192xf32>
    %568 = vector.shape_cast %567 : vector<1x8x192xf32> to vector<8x192xf32>
    %569 = arith.index_cast %565 : i32 to index
    %c0_147 = arith.constant 0 : index
    %c0_148 = arith.constant 0 : index
    %570 = vector.load %arg15[%569, %c0_147, %c0_148] : memref<8x8x192xf32, #tpu.memory_space<vmem>>, vector<1x8x192xf32>
    %571 = vector.shape_cast %570 : vector<1x8x192xf32> to vector<8x192xf32>
    %572 = arith.truncf %527 : vector<8x32xf32> to vector<8x32xbf16>
    %cst_149 = arith.constant dense<0.000000e+00> : vector<8x96xf32>
    %573 = tpu.matmul %572, %18, %cst_149 {dimension_numbers = #tpu.dot_dimension_numbers<[1], [0], [0], [1], [0, 0, 1, 1], [], []>} : vector<8x32xbf16>, vector<32x96xbf16>, vector<8x96xf32> -> vector<8x96xf32>
    %574 = arith.truncf %556 : vector<8x32xf32> to vector<8x32xbf16>
    %cst_150 = arith.constant dense<0.000000e+00> : vector<8x96xf32>
    %575 = tpu.matmul %574, %19, %cst_150 {dimension_numbers = #tpu.dot_dimension_numbers<[1], [0], [0], [1], [0, 0, 1, 1], [], []>} : vector<8x32xbf16>, vector<32x96xbf16>, vector<8x96xf32> -> vector<8x96xf32>
    %576 = vector.extract_strided_slice %568 {offsets = [0, 0], sizes = [8, 96], strides = [1, 1]} : vector<8x192xf32> to vector<8x96xf32>
    %577 = vector.extract_strided_slice %576 {offsets = [0, 0], sizes = [8, 32], strides = [1, 1]} : vector<8x96xf32> to vector<8x32xf32>
    %578 = vector.extract_strided_slice %573 {offsets = [0, 0], sizes = [8, 32], strides = [1, 1]} : vector<8x96xf32> to vector<8x32xf32>
    %579 = arith.addf %577, %578 : vector<8x32xf32>
    %580 = arith.negf %579 : vector<8x32xf32>
    %581 = math.exp %580 : vector<8x32xf32>
    %cst_151 = arith.constant 1.000000e+00 : f32
    %582 = vector.broadcast %cst_151 : f32 to vector<8x32xf32>
    %583 = arith.addf %582, %581 : vector<8x32xf32>
    %584 = arith.divf %582, %583 : vector<8x32xf32>
    %585 = vector.extract_strided_slice %576 {offsets = [0, 32], sizes = [8, 32], strides = [1, 1]} : vector<8x96xf32> to vector<8x32xf32>
    %586 = vector.extract_strided_slice %573 {offsets = [0, 32], sizes = [8, 32], strides = [1, 1]} : vector<8x96xf32> to vector<8x32xf32>
    %587 = arith.addf %585, %586 : vector<8x32xf32>
    %588 = arith.negf %587 : vector<8x32xf32>
    %589 = math.exp %588 : vector<8x32xf32>
    %cst_152 = arith.constant 1.000000e+00 : f32
    %590 = vector.broadcast %cst_152 : f32 to vector<8x32xf32>
    %591 = arith.addf %590, %589 : vector<8x32xf32>
    %592 = arith.divf %590, %591 : vector<8x32xf32>
    %593 = vector.extract_strided_slice %576 {offsets = [0, 64], sizes = [8, 32], strides = [1, 1]} : vector<8x96xf32> to vector<8x32xf32>
    %594 = vector.extract_strided_slice %573 {offsets = [0, 64], sizes = [8, 32], strides = [1, 1]} : vector<8x96xf32> to vector<8x32xf32>
    %595 = vector.broadcast %20 : vector<1x32xf32> to vector<8x32xf32>
    %596 = arith.addf %594, %595 : vector<8x32xf32>
    %597 = arith.mulf %584, %596 : vector<8x32xf32>
    %598 = arith.addf %593, %597 : vector<8x32xf32>
    %599 = math.tanh %598 : vector<8x32xf32>
    %cst_153 = arith.constant 1.000000e+00 : f32
    %600 = vector.broadcast %cst_153 : f32 to vector<8x32xf32>
    %601 = arith.subf %600, %592 : vector<8x32xf32>
    %602 = arith.mulf %601, %599 : vector<8x32xf32>
    %603 = arith.mulf %592, %527 : vector<8x32xf32>
    %604 = arith.addf %602, %603 : vector<8x32xf32>
    %605 = vector.extract_strided_slice %571 {offsets = [0, 96], sizes = [8, 96], strides = [1, 1]} : vector<8x192xf32> to vector<8x96xf32>
    %606 = vector.extract_strided_slice %605 {offsets = [0, 0], sizes = [8, 32], strides = [1, 1]} : vector<8x96xf32> to vector<8x32xf32>
    %607 = vector.extract_strided_slice %575 {offsets = [0, 0], sizes = [8, 32], strides = [1, 1]} : vector<8x96xf32> to vector<8x32xf32>
    %608 = arith.addf %606, %607 : vector<8x32xf32>
    %609 = arith.negf %608 : vector<8x32xf32>
    %610 = math.exp %609 : vector<8x32xf32>
    %cst_154 = arith.constant 1.000000e+00 : f32
    %611 = vector.broadcast %cst_154 : f32 to vector<8x32xf32>
    %612 = arith.addf %611, %610 : vector<8x32xf32>
    %613 = arith.divf %611, %612 : vector<8x32xf32>
    %614 = vector.extract_strided_slice %605 {offsets = [0, 32], sizes = [8, 32], strides = [1, 1]} : vector<8x96xf32> to vector<8x32xf32>
    %615 = vector.extract_strided_slice %575 {offsets = [0, 32], sizes = [8, 32], strides = [1, 1]} : vector<8x96xf32> to vector<8x32xf32>
    %616 = arith.addf %614, %615 : vector<8x32xf32>
    %617 = arith.negf %616 : vector<8x32xf32>
    %618 = math.exp %617 : vector<8x32xf32>
    %cst_155 = arith.constant 1.000000e+00 : f32
    %619 = vector.broadcast %cst_155 : f32 to vector<8x32xf32>
    %620 = arith.addf %619, %618 : vector<8x32xf32>
    %621 = arith.divf %619, %620 : vector<8x32xf32>
    %622 = vector.extract_strided_slice %605 {offsets = [0, 64], sizes = [8, 32], strides = [1, 1]} : vector<8x96xf32> to vector<8x32xf32>
    %623 = vector.extract_strided_slice %575 {offsets = [0, 64], sizes = [8, 32], strides = [1, 1]} : vector<8x96xf32> to vector<8x32xf32>
    %624 = vector.broadcast %21 : vector<1x32xf32> to vector<8x32xf32>
    %625 = arith.addf %623, %624 : vector<8x32xf32>
    %626 = arith.mulf %613, %625 : vector<8x32xf32>
    %627 = arith.addf %622, %626 : vector<8x32xf32>
    %628 = math.tanh %627 : vector<8x32xf32>
    %cst_156 = arith.constant 1.000000e+00 : f32
    %629 = vector.broadcast %cst_156 : f32 to vector<8x32xf32>
    %630 = arith.subf %629, %621 : vector<8x32xf32>
    %631 = arith.mulf %630, %628 : vector<8x32xf32>
    %632 = arith.mulf %621, %556 : vector<8x32xf32>
    %633 = arith.addf %631, %632 : vector<8x32xf32>
    %634 = arith.index_cast %c7_i32_143 : i32 to index
    %c0_157 = arith.constant 0 : index
    %c0_158 = arith.constant 0 : index
    %635 = vector.load %arg16[%634, %c0_157, %c0_158] : memref<8x8x64xf32, #tpu.memory_space<vmem>>, vector<1x8x32xf32>
    %636 = vector.shape_cast %635 : vector<1x8x32xf32> to vector<8x32xf32>
    %637 = vector.shape_cast %604 : vector<8x32xf32> to vector<1x8x32xf32>
    tpu.vector_store %arg16[%634, %c0_157, %c0_158], %637 {strides = array<i32>} : memref<8x8x64xf32, #tpu.memory_space<vmem>>, vector<1x8x32xf32>,
    %638 = arith.index_cast %565 : i32 to index
    %c0_159 = arith.constant 0 : index
    %c32_160 = arith.constant 32 : index
    %639 = vector.load %arg16[%638, %c0_159, %c32_160] : memref<8x8x64xf32, #tpu.memory_space<vmem>>, vector<1x8x32xf32>
    %640 = vector.shape_cast %639 : vector<1x8x32xf32> to vector<8x32xf32>
    %641 = vector.shape_cast %633 : vector<8x32xf32> to vector<1x8x32xf32>
    tpu.vector_store %arg16[%638, %c0_159, %c32_160], %641 {strides = array<i32>} : memref<8x8x64xf32, #tpu.memory_space<vmem>>, vector<1x8x32xf32>,
    %c8_i32 = arith.constant 8 : i32
    %c0_161 = arith.constant 0 : index
    %c0_162 = arith.constant 0 : index
    %c0_163 = arith.constant 0 : index
    %642 = vector.load %arg13[%c0_161, %c0_162, %c0_163] : memref<2x8x32xf32, #tpu.memory_space<vmem>>, vector<1x8x32xf32>
    %643 = vector.shape_cast %642 : vector<1x8x32xf32> to vector<8x32xf32>
    %644 = vector.shape_cast %604 : vector<8x32xf32> to vector<1x8x32xf32>
    tpu.vector_store %arg13[%c0_161, %c0_162, %c0_163], %644 {strides = array<i32>} : memref<2x8x32xf32, #tpu.memory_space<vmem>>, vector<1x8x32xf32>,
    %c1_164 = arith.constant 1 : index
    %c0_165 = arith.constant 0 : index
    %c0_166 = arith.constant 0 : index
    %645 = vector.load %arg13[%c1_164, %c0_165, %c0_166] : memref<2x8x32xf32, #tpu.memory_space<vmem>>, vector<1x8x32xf32>
    %646 = vector.shape_cast %645 : vector<1x8x32xf32> to vector<8x32xf32>
    %647 = vector.shape_cast %633 : vector<8x32xf32> to vector<1x8x32xf32>
    tpu.vector_store %arg13[%c1_164, %c0_165, %c0_166], %647 {strides = array<i32>} : memref<2x8x32xf32, #tpu.memory_space<vmem>>, vector<1x8x32xf32>,
    %c0_167 = arith.constant 0 : index
    %c0_168 = arith.constant 0 : index
    %c0_169 = arith.constant 0 : index
    %648 = vector.load %arg16[%c0_167, %c0_168, %c0_169] : memref<8x8x64xf32, #tpu.memory_space<vmem>>, vector<8x8x64xf32>
    %649 = vector.shape_cast %648 : vector<8x8x64xf32> to vector<64x64xf32>
    %650 = arith.truncf %649 : vector<64x64xf32> to vector<64x64xbf16>
    %c0_170 = arith.constant 0 : index
    %c0_171 = arith.constant 0 : index
    %651 = vector.load %arg9[%c0_170, %c0_171] : memref<64x64xbf16, #tpu.memory_space<vmem>>, vector<64x64xbf16>
    %cst_172 = arith.constant dense<0.000000e+00> : vector<64x64xf32>
    %652 = tpu.matmul %650, %651, %cst_172 {dimension_numbers = #tpu.dot_dimension_numbers<[1], [0], [0], [1], [0, 0, 1, 1], [], []>} : vector<64x64xbf16>, vector<64x64xbf16>, vector<64x64xf32> -> vector<64x64xf32>
    %c0_173 = arith.constant 0 : index
    %c0_174 = arith.constant 0 : index
    %653 = vector.load %arg10[%c0_173, %c0_174] : memref<1x64xf32, #tpu.memory_space<vmem>>, vector<1x64xf32>
    %654 = vector.broadcast %653 : vector<1x64xf32> to vector<64x64xf32>
    %655 = arith.addf %652, %654 : vector<64x64xf32>
    %656 = arith.negf %655 : vector<64x64xf32>
    %657 = math.exp %656 : vector<64x64xf32>
    %cst_175 = arith.constant 1.000000e+00 : f32
    %658 = vector.broadcast %cst_175 : f32 to vector<64x64xf32>
    %659 = arith.addf %658, %657 : vector<64x64xf32>
    %660 = arith.divf %658, %659 : vector<64x64xf32>
    %c0_176 = arith.constant 0 : index
    %c0_177 = arith.constant 0 : index
    %661 = vector.load %arg11[%c0_176, %c0_177] : memref<1x64xf32, #tpu.memory_space<vmem>>, vector<1x64xf32>
    %662 = vector.broadcast %661 : vector<1x64xf32> to vector<64x64xf32>
    %663 = arith.mulf %660, %662 : vector<64x64xf32>
    %cst_178 = arith.constant dense<0.000000e+00> : vector<64xf32>
    %664 = vector.multi_reduction <add>, %663, %cst_178 [1] : vector<64x64xf32> to vector<64xf32>
    %665 = vector.shape_cast %664 : vector<64xf32> to vector<64x1xf32>
    %666 = arith.negf %665 : vector<64x1xf32>
    %667 = math.exp %666 : vector<64x1xf32>
    %cst_179 = arith.constant 1.000000e+00 : f32
    %668 = vector.broadcast %cst_179 : f32 to vector<64x1xf32>
    %669 = arith.addf %668, %667 : vector<64x1xf32>
    %670 = arith.divf %668, %669 : vector<64x1xf32>
    %671 = vector.shape_cast %670 : vector<64x1xf32> to vector<8x8x1xf32>
    %c0_180 = arith.constant 0 : index
    %c0_181 = arith.constant 0 : index
    %c0_182 = arith.constant 0 : index
    %672 = vector.load %arg14[%c0_180, %c0_181, %c0_182] : memref<8x8x1xf32, #tpu.memory_space<vmem>>, vector<8x8x1xf32>
    tpu.vector_store %arg14[%c0_180, %c0_181, %c0_182], %671 {strides = array<i32>} : memref<8x8x1xf32, #tpu.memory_space<vmem>>, vector<8x8x1xf32>,
    %673 = vector.broadcast %671 : vector<8x8x1xf32> to vector<8x8x64xf32>
    %674 = arith.mulf %648, %673 : vector<8x8x64xf32>
    %cst_183 = arith.constant dense<0.000000e+00> : vector<8x64xf32>
    %675 = vector.multi_reduction <add>, %674, %cst_183 [0] : vector<8x8x64xf32> to vector<8x64xf32>
    %c0_184 = arith.constant 0 : index
    %c0_185 = arith.constant 0 : index
    %c0_186 = arith.constant 0 : index
    %676 = vector.load %arg12[%c0_184, %c0_185, %c0_186] : memref<1x8x64xf32, #tpu.memory_space<vmem>>, vector<1x8x64xf32>
    %677 = vector.shape_cast %676 : vector<1x8x64xf32> to vector<8x64xf32>
    %678 = vector.shape_cast %675 : vector<8x64xf32> to vector<1x8x64xf32>
    tpu.vector_store %arg12[%c0_184, %c0_185, %c0_186], %678 {strides = array<i32>} : memref<1x8x64xf32, #tpu.memory_space<vmem>>, vector<1x8x64xf32>,
    return
  }
}

</mosaic_0001>

<llo_original>
// kernel: tpu_custom_call.1
$region0: #{tpu_custom_call.1}
  #allocation0 [shape = 'u32[]', space=smem, size = 0x4, offset = 0x4, fixed_abs, tag = 'smem constant byte address 0x4 - core index']
  #allocation1 [shape = 'u32[144,128]{1,0:T(1,128)}', space=vmem, size = 0x12000, scoped, tag = 'internal scratch']
  #allocation2 [shape = 'f32[8,8,192]{2,1,0:T(8,128)}', space=vmem, size = 0x10000, scoped, tag = 'scratch operand']
  #allocation3 [shape = 'f32[8,8,64]{2,1,0:T(8,128)}', space=vmem, size = 0x8000, scoped, tag = 'scratch operand']
  %s0 = inlined_call_operand.vmem [shape: s32[64,1], index: 0, kind: input, shape index: {}]
  %s1 = inlined_call_operand.vmem [shape: f32[2,8,32], index: 1, kind: input, shape index: {}]
  %s2 = inlined_call_operand.vmem [shape: bf16[128,64], index: 2, kind: input, shape index: {}]
  %s3 = inlined_call_operand.vmem [shape: bf16[64,192], index: 3, kind: input, shape index: {}]
  %s4 = inlined_call_operand.hbm [shape: f32[1,192], index: 4, kind: input, shape index: {}]
  %s5 = inlined_call_operand.vmem [shape: bf16[32,96], index: 5, kind: input, shape index: {}]
  %s6 = inlined_call_operand.vmem [shape: bf16[32,96], index: 6, kind: input, shape index: {}]
  %s7 = inlined_call_operand.vmem [shape: f32[1,32], index: 7, kind: input, shape index: {}]
  %s8 = inlined_call_operand.vmem [shape: f32[1,32], index: 8, kind: input, shape index: {}]
  %s9 = inlined_call_operand.vmem [shape: bf16[64,64], index: 9, kind: input, shape index: {}]
  %s10 = inlined_call_operand.vmem [shape: f32[1,64], index: 10, kind: input, shape index: {}]
  %s11 = inlined_call_operand.vmem [shape: f32[1,64], index: 11, kind: input, shape index: {}]
  %s12 = inlined_call_operand.hbm [shape: f32[1,8,64], index: 12, kind: output, shape index: {0}]
  %s13 = inlined_call_operand.hbm [shape: f32[2,8,32], index: 13, kind: output, shape index: {1}]
  %s14 = inlined_call_operand.vmem [shape: f32[8,8,1], index: 14, kind: output, shape index: {2}]
  %15 = xla_tuple %s12, %s13, %s14
  %s16 = sld [smem:[#allocation0]]
  $region78: #{tpu_custom_call.1} parent=0
    _
  %s18 = ssub.s32 1, %s16
  %s19 = scalar_select 0, %s18, %s16
  $region1: #{tpu_custom_call.1} parent=0
    #allocation4 [shape = 'u8[1024]{0}', space=vmem, size = 0x400, scoped, tag = 'input window, operand 4, single buffered']
    #allocation5 [shape = 's32[1]{0}', space=sflag, size = 0x4, scoped, tag = 'scoped memory for tpu_custom_call.1']
    #allocation6 [shape = 's32[1]{0}', space=sflag, size = 0x4, scoped, tag = 'scoped memory for tpu_custom_call.1']
    #allocation7 [shape = 'u8[4096]{0}', space=vmem, size = 0x1000, scoped, tag = 'output window, operand 0, single buffered']
    #allocation8 [shape = 'u8[8192]{0}', space=vmem, size = 0x2000, scoped, tag = 'output window, operand 1, single buffered']
    #allocation9 [shape = 's32[1]{0}', space=sflag, size = 0x4, scoped, tag = 'scoped memory for tpu_custom_call.1']
    %20 = vsyncpa [#allocation5], 0
    %21 = vsyncpa [#allocation6], 0
    %22 = vsyncpa [#allocation9], 0
    // Predicated region
    $region2: #{tpu_custom_call.1} parent=1 // pred_check
      _
    $region3: #{tpu_custom_call.1} parent=1 // pred_check_branch
      %24 = sbr.rel (0) target = $region5
    $region4: #{tpu_custom_call.1} parent=1 // pred_region
      _
    $region5: #{tpu_custom_call.1} parent=1 // pred_fallthru
      _
    // Predicated region
    $region6: #{tpu_custom_call.1} parent=1 // pred_check
      _
    $region7: #{tpu_custom_call.1} parent=1 // pred_check_branch
      %26 = sbr.rel (0) target = $region9
    $region8: #{tpu_custom_call.1} parent=1 // pred_region
      _
    $region9: #{tpu_custom_call.1} parent=1 // pred_fallthru
      _
    // Predicated region
    $region10: #{tpu_custom_call.1} parent=1 // pred_check
      _
    $region11: #{tpu_custom_call.1} parent=1 // pred_check_branch
      %28 = sbr.rel (0) target = $region13
    $region12: #{tpu_custom_call.1} parent=1 // pred_region
      _
    $region13: #{tpu_custom_call.1} parent=1 // pred_fallthru
      _
    // Predicated region
    $region14: #{tpu_custom_call.1} parent=1 // pred_check
      _
    $region15: #{tpu_custom_call.1} parent=1 // pred_check_branch
      %30 = sbr.rel (0) target = $region17
    $region16: #{tpu_custom_call.1} parent=1 // pred_region
      _
    $region17: #{tpu_custom_call.1} parent=1 // pred_fallthru
      _
    // Predicated region
    $region18: #{tpu_custom_call.1} parent=1 // pred_check
      _
    $region19: #{tpu_custom_call.1} parent=1 // pred_check_branch
      %32 = sbr.rel (0) target = $region21
    $region20: #{tpu_custom_call.1} parent=1 // pred_region
      %s34 = ssub.s32 32, 32
      %35 = vsyncadd [#allocation5], %s34
      %s37 = sshll.u32 [#allocation4], 4
      %s38 = int_to_ptr.vmem [resolvable:$true] %s37
      %40 = dma.hbm_to_vmem [thread:$0]  %s4, 32, %s38, [#allocation5]
    $region21: #{tpu_custom_call.1} parent=1 // pred_fallthru
      _
    // Predicated region
    $region22: #{tpu_custom_call.1} parent=1 // pred_check
      _
    $region23: #{tpu_custom_call.1} parent=1 // pred_check_branch
      %42 = sbr.rel (0) target = $region25
    $region24: #{tpu_custom_call.1} parent=1 // pred_region
      _
    $region25: #{tpu_custom_call.1} parent=1 // pred_fallthru
      _
    // Predicated region
    $region26: #{tpu_custom_call.1} parent=1 // pred_check
      _
    $region27: #{tpu_custom_call.1} parent=1 // pred_check_branch
      %44 = sbr.rel (0) target = $region29
    $region28: #{tpu_custom_call.1} parent=1 // pred_region
      _
    $region29: #{tpu_custom_call.1} parent=1 // pred_fallthru
      _
    // Predicated region
    $region30: #{tpu_custom_call.1} parent=1 // pred_check
      _
    $region31: #{tpu_custom_call.1} parent=1 // pred_check_branch
      %46 = sbr.rel (0) target = $region33
    $region32: #{tpu_custom_call.1} parent=1 // pred_region
      _
    $region33: #{tpu_custom_call.1} parent=1 // pred_fallthru
      _
    // Predicated region
    $region34: #{tpu_custom_call.1} parent=1 // pred_check
      _
    $region35: #{tpu_custom_call.1} parent=1 // pred_check_branch
      %48 = sbr.rel (0) target = $region37
    $region36: #{tpu_custom_call.1} parent=1 // pred_region
      _
    $region37: #{tpu_custom_call.1} parent=1 // pred_fallthru
      _
    // Predicated region
    $region38: #{tpu_custom_call.1} parent=1 // pred_check
      _
    $region39: #{tpu_custom_call.1} parent=1 // pred_check_branch
      %50 = sbr.rel (0) target = $region41
    $region40: #{tpu_custom_call.1} parent=1 // pred_region
      _
    $region41: #{tpu_custom_call.1} parent=1 // pred_fallthru
      _
    // Predicated region
    $region42: #{tpu_custom_call.1} parent=1 // pred_check
      _
    $region43: #{tpu_custom_call.1} parent=1 // pred_check_branch
      %52 = sbr.rel (0) target = $region45
    $region44: #{tpu_custom_call.1} parent=1 // pred_region
      _
    $region45: #{tpu_custom_call.1} parent=1 // pred_fallthru
      _
    // Predicated region
    $region46: #{tpu_custom_call.1} parent=1 // pred_check
      _
    $region47: #{tpu_custom_call.1} parent=1 // pred_check_branch
      %54 = sbr.rel (0) target = $region49
    $region48: #{tpu_custom_call.1} parent=1 // pred_region
      _
    $region49: #{tpu_custom_call.1} parent=1 // pred_fallthru
      _
    // Predicated region
    $region50: #{tpu_custom_call.1} parent=1 // pred_check
      _
    $region51: #{tpu_custom_call.1} parent=1 // pred_check_branch
      %56 = sbr.rel (0) target = $region53
    $region52: #{tpu_custom_call.1} parent=1 // pred_region
      %57 = dma.done [#allocation5], 32
    $region53: #{tpu_custom_call.1} parent=1 // pred_fallthru
      _
    %v59 = vld [vmem:[%s0] sm:$0xff]
    %v60 = vld [vmem:[%s0 + $0x8] sm:$0xff]
    %v61 = vld [vmem:[%s0 + $0x10] sm:$0xff]
    %v62 = vld [vmem:[%s0 + $0x18] sm:$0xff]
    %v63 = vld [vmem:[%s0 + $0x20] sm:$0xff]
    %v64 = vld [vmem:[%s0 + $0x28] sm:$0xff]
    %v65 = vld [vmem:[%s0 + $0x30] sm:$0xff]
    %v66 = vld [vmem:[%s0 + $0x38] sm:$0xff]
    %v67 = vlaneseq
    %v68 = vand.u32 %v67, 127
    %69 = vset.pattern.permute.xlu0 0
    %70 = vperm.xlu0 %69, %v59
    %v71 = vpop.permute.xlu0 %70
    %72 = vset.pattern.permute.xlu0 0
    %73 = vperm.xlu0 %72, %v60
    %v74 = vpop.permute.xlu0 %73
    %75 = vset.pattern.permute.xlu0 0
    %76 = vperm.xlu0 %75, %v61
    %v77 = vpop.permute.xlu0 %76
    %78 = vset.pattern.permute.xlu0 0
    %79 = vperm.xlu0 %78, %v62
    %v80 = vpop.permute.xlu0 %79
    %81 = vset.pattern.permute.xlu0 0
    %82 = vperm.xlu0 %81, %v63
    %v83 = vpop.permute.xlu0 %82
    %84 = vset.pattern.permute.xlu0 0
    %85 = vperm.xlu0 %84, %v64
    %v86 = vpop.permute.xlu0 %85
    %87 = vset.pattern.permute.xlu0 0
    %88 = vperm.xlu0 %87, %v65
    %v89 = vpop.permute.xlu0 %88
    %90 = vset.pattern.permute.xlu0 0
    %91 = vperm.xlu0 %90, %v66
    %v92 = vpop.permute.xlu0 %91
    %vm93 = vcmp.eq.s32.totalorder %v71, %v68
    %vm94 = vcmp.eq.s32.totalorder %v74, %v68
    %vm95 = vcmp.eq.s32.totalorder %v77, %v68
    %vm96 = vcmp.eq.s32.totalorder %v80, %v68
    %vm97 = vcmp.eq.s32.totalorder %v83, %v68
    %vm98 = vcmp.eq.s32.totalorder %v86, %v68
    %vm99 = vcmp.eq.s32.totalorder %v89, %v68
    %vm100 = vcmp.eq.s32.totalorder %v92, %v68
    %v101 = vsel %vm93, 1.0, 0.0
    %v102 = vsel %vm94, 1.0, 0.0
    %v103 = vsel %vm95, 1.0, 0.0
    %v104 = vsel %vm96, 1.0, 0.0
    %v105 = vsel %vm97, 1.0, 0.0
    %v106 = vsel %vm98, 1.0, 0.0
    %v107 = vsel %vm99, 1.0, 0.0
    %v108 = vsel %vm100, 1.0, 0.0
    %v109 = vpack.c.bf16 %v102, %v101
    %v110 = vpack.c.bf16 %v104, %v103
    %v111 = vpack.c.bf16 %v106, %v105
    %v112 = vpack.c.bf16 %v108, %v107
    %v113 = vld [vmem:[%s2] sm:$0xf]
    %v114 = vld [vmem:[%s2 + $0x4] sm:$0xf]
    %v115 = vld [vmem:[%s2 + $0x8] sm:$0xf]
    %v116 = vld [vmem:[%s2 + $0xc] sm:$0xf]
    %v117 = vld [vmem:[%s2 + $0x10] sm:$0xf]
    %v118 = vld [vmem:[%s2 + $0x14] sm:$0xf]
    %v119 = vld [vmem:[%s2 + $0x18] sm:$0xf]
    %v120 = vld [vmem:[%s2 + $0x1c] sm:$0xf]
    %v121 = vld [vmem:[%s2 + $0x20] sm:$0xf]
    %v122 = vld [vmem:[%s2 + $0x24] sm:$0xf]
    %v123 = vld [vmem:[%s2 + $0x28] sm:$0xf]
    %v124 = vld [vmem:[%s2 + $0x2c] sm:$0xf]
    %v125 = vld [vmem:[%s2 + $0x30] sm:$0xf]
    %v126 = vld [vmem:[%s2 + $0x34] sm:$0xf]
    %v127 = vld [vmem:[%s2 + $0x38] sm:$0xf]
    %v128 = vld [vmem:[%s2 + $0x3c] sm:$0xf]
    %v145 = vunpack.c.l.b16 %v113
    %v146 = vunpack.c.l.b16 %v114
    %v147 = vunpack.c.l.b16 %v115
    %v148 = vunpack.c.l.b16 %v116
    %v149 = vunpack.c.l.b16 %v117
    %v150 = vunpack.c.l.b16 %v118
    %v151 = vunpack.c.l.b16 %v119
    %v152 = vunpack.c.l.b16 %v120
    %v153 = vunpack.c.l.b16 %v121
    %v154 = vunpack.c.l.b16 %v122
    %v155 = vunpack.c.l.b16 %v123
    %v156 = vunpack.c.l.b16 %v124
    %v157 = vunpack.c.l.b16 %v125
    %v158 = vunpack.c.l.b16 %v126
    %v159 = vunpack.c.l.b16 %v127
    %v160 = vunpack.c.l.b16 %v128
    %v161 = vpack.c.b16 %v146, %v145
    %v162 = vpack.c.b16 %v148, %v147
    %v163 = vpack.c.b16 %v150, %v149
    %v164 = vpack.c.b16 %v152, %v151
    %v165 = vpack.c.b16 %v154, %v153
    %v166 = vpack.c.b16 %v156, %v155
    %v167 = vpack.c.b16 %v158, %v157
    %v168 = vpack.c.b16 %v160, %v159
    %177 = vmatprep.subr.bf16.mxu0 0
    %178 = vmatpush1.bf16.msra.mxu0 %v161
    %179 = vmatprep.subr.bf16.mxu0 0
    %180 = vmatpush1.bf16.msra.mxu0 %v162
    %181 = vmatprep.subr.bf16.mxu0 0
    %182 = vmatpush1.bf16.msra.mxu0 %v163
    %183 = vmatprep.subr.bf16.mxu0 0
    %184 = vmatpush1.bf16.msra.mxu0 %v164
    %185 = vmatprep.subr.bf16.mxu0 0
    %186 = vmatpush1.bf16.msra.mxu0 %v165
    %187 = vmatprep.subr.bf16.mxu0 0
    %188 = vmatpush1.bf16.msra.mxu0 %v166
    %189 = vmatprep.subr.bf16.mxu0 0
    %190 = vmatpush1.bf16.msra.mxu0 %v167
    %191 = vmatprep.subr.bf16.mxu0 0
    %192 = vmatpush1.bf16.msra.mxu0 %v168
    %193 = vmatprep.subr.bf16.mxu0 0
    %194 = vmatpush1.bf16.msra.mxu0 0
    %195 = vmatprep.subr.bf16.mxu0 0
    %196 = vmatpush1.bf16.msra.mxu0 0
    %197 = vmatprep.subr.bf16.mxu0 0
    %198 = vmatpush1.bf16.msra.mxu0 0
    %199 = vmatprep.subr.bf16.mxu0 0
    %200 = vmatpush1.bf16.msra.mxu0 0
    %201 = vmatprep.subr.bf16.mxu0 0
    %202 = vmatpush1.bf16.msra.mxu0 0
    %203 = vmatprep.subr.bf16.mxu0 0
    %204 = vmatpush1.bf16.msra.mxu0 0
    %205 = vmatprep.subr.bf16.mxu0 0
    %206 = vmatpush1.bf16.msra.mxu0 0
    %207 = vmatprep.subr.bf16.mxu0 0
    %208 = vmatpush1.bf16.msra.mxu0 0
    %209 = vmatprep.mubr.bf16.mxu0 0
    %210 = vmatmul.mubr.bf16.gmra.mrb[0].mxu0 %v109
    %v211 = vpop.f32.mrb[0].mxu0
    %v212 = vadd.f32 0.0, %v211
    %v213 = vpop.f32.mrb[0].mxu0
    %v214 = vpop.f32.mrb[0].mxu0
    %v215 = vadd.f32 0.0, %v214
    %v216 = vpop.f32.mrb[0].mxu0
    %217 = vmatprep.mubr.bf16.mxu0 0
    %218 = vmatmul.mubr.bf16.gmra.mrb[0].mxu0 %v110
    %v219 = vpop.f32.mrb[0].mxu0
    %v220 = vadd.f32 0.0, %v219
    %v221 = vpop.f32.mrb[0].mxu0
    %v222 = vpop.f32.mrb[0].mxu0
    %v223 = vadd.f32 0.0, %v222
    %v224 = vpop.f32.mrb[0].mxu0
    %225 = vmatprep.mubr.bf16.mxu0 0
    %226 = vmatmul.mubr.bf16.gmra.mrb[0].mxu0 %v111
    %v227 = vpop.f32.mrb[0].mxu0
    %v228 = vadd.f32 0.0, %v227
    %v229 = vpop.f32.mrb[0].mxu0
    %v230 = vpop.f32.mrb[0].mxu0
    %v231 = vadd.f32 0.0, %v230
    %v232 = vpop.f32.mrb[0].mxu0
    %233 = vmatprep.mubr.bf16.mxu0 0
    %234 = vmatmul.mubr.bf16.gmra.mrb[0].mxu0 %v112
    %v235 = vpop.f32.mrb[0].mxu0
    %v236 = vadd.f32 0.0, %v235
    %v237 = vpop.f32.mrb[0].mxu0
    %v238 = vpop.f32.mrb[0].mxu0
    %v239 = vadd.f32 0.0, %v238
    %v240 = vpop.f32.mrb[0].mxu0
    %241 = vdwg.mxu0
    %v242 = vpack.c.bf16 %v215, %v212
    %v243 = vpack.c.bf16 %v223, %v220
    %v244 = vpack.c.bf16 %v231, %v228
    %v245 = vpack.c.bf16 %v239, %v236
    %v246 = vld [vmem:[%s3] sm:$0xff]
    %v247 = vld [vmem:[%s3 + $0x8] sm:$0xff]
    %v248 = vld [vmem:[%s3 + $0x10] sm:$0xff]
    %v249 = vld [vmem:[%s3 + $0x18] sm:$0xff]
    %v250 = vld [vmem:[%s3 + $0x20] sm:$0xff]
    %v251 = vld [vmem:[%s3 + $0x28] sm:$0xff]
    %v252 = vld [vmem:[%s3 + $0x30] sm:$0xff]
    %v253 = vld [vmem:[%s3 + $0x38] sm:$0xff]
    %v254 = vld [vmem:[#allocation4] sm:$0x3]
    %v256 = vlaneseq
    %v257 = vshrl.u32 %v256, 7
    %v258 = vsub.s32 0, %v257
    %v259 = vrot.slane %v254, %v258
    %v260 = vlaneseq
    %v261 = vshrl.u32 %v260, 7
    %v262 = vsub.s32 1, %v261
    %v263 = vrot.slane %v254, %v262
    %v274 = vunpack.c.l.b16 %v246
    %v275 = vunpack.c.h.b16 %v246
    %v276 = vunpack.c.l.b16 %v247
    %v277 = vunpack.c.h.b16 %v247
    %v278 = vunpack.c.l.b16 %v248
    %v279 = vunpack.c.h.b16 %v248
    %v280 = vunpack.c.l.b16 %v249
    %v281 = vunpack.c.h.b16 %v249
    %v282 = vunpack.c.l.b16 %v250
    %v283 = vunpack.c.h.b16 %v250
    %v284 = vunpack.c.l.b16 %v251
    %v285 = vunpack.c.h.b16 %v251
    %v286 = vunpack.c.l.b16 %v252
    %v287 = vunpack.c.h.b16 %v252
    %v288 = vunpack.c.l.b16 %v253
    %v289 = vunpack.c.h.b16 %v253
    %v290 = vpack.c.b16 %v276, %v274
    %v291 = vpack.c.b16 %v277, %v275
    %v292 = vpack.c.b16 %v280, %v278
    %v293 = vpack.c.b16 %v281, %v279
    %v294 = vpack.c.b16 %v284, %v282
    %v295 = vpack.c.b16 %v285, %v283
    %v296 = vpack.c.b16 %v288, %v286
    %v297 = vpack.c.b16 %v289, %v287
    %vm306 = vcmask 523264
    %v308 = vsel %vm306, %v242, 0
    %v311 = vsel %vm306, %v243, 0
    %v314 = vsel %vm306, %v244, 0
    %v317 = vsel %vm306, %v245, 0
    %319 = vmatprep.subr.bf16.mxu0 %v291
    %320 = vmatpush1.bf16.msra.mxu0 %v290
    %321 = vmatprep.subr.bf16.mxu0 %v293
    %322 = vmatpush1.bf16.msra.mxu0 %v292
    %323 = vmatprep.subr.bf16.mxu0 %v295
    %324 = vmatpush1.bf16.msra.mxu0 %v294
    %325 = vmatprep.subr.bf16.mxu0 %v297
    %326 = vmatpush1.bf16.msra.mxu0 %v296
    %327 = vmatprep.subr.bf16.mxu0 0
    %328 = vmatpush1.bf16.msra.mxu0 0
    %329 = vmatprep.subr.bf16.mxu0 0
    %330 = vmatpush1.bf16.msra.mxu0 0
    %331 = vmatprep.subr.bf16.mxu0 0
    %332 = vmatpush1.bf16.msra.mxu0 0
    %333 = vmatprep.subr.bf16.mxu0 0
    %334 = vmatpush1.bf16.msra.mxu0 0
    %335 = vmatprep.subr.bf16.mxu0 0
    %336 = vmatpush1.bf16.msra.mxu0 0
    %337 = vmatprep.subr.bf16.mxu0 0
    %338 = vmatpush1.bf16.msra.mxu0 0
    %339 = vmatprep.subr.bf16.mxu0 0
    %340 = vmatpush1.bf16.msra.mxu0 0
    %341 = vmatprep.subr.bf16.mxu0 0
    %342 = vmatpush1.bf16.msra.mxu0 0
    %343 = vmatprep.subr.bf16.mxu0 0
    %344 = vmatpush1.bf16.msra.mxu0 0
    %345 = vmatprep.subr.bf16.mxu0 0
    %346 = vmatpush1.bf16.msra.mxu0 0
    %347 = vmatprep.subr.bf16.mxu0 0
    %348 = vmatpush1.bf16.msra.mxu0 0
    %349 = vmatprep.subr.bf16.mxu0 0
    %350 = vmatpush1.bf16.msra.mxu0 0
    %351 = vmatprep.mubr.bf16.mxu0 0
    %352 = vmatmul.mubr.bf16.gmra.mrb[0].mxu0 %v308
    %v353 = vpop.f32.mrb[0].mxu0
    %v354 = vadd.f32 %v259, %v353
    %v355 = vpop.f32.mrb[0].mxu0
    %v356 = vadd.f32 %v263, %v355
    %v357 = vpop.f32.mrb[0].mxu0
    %v358 = vadd.f32 %v259, %v357
    %v359 = vpop.f32.mrb[0].mxu0
    %v360 = vadd.f32 %v263, %v359
    %361 = vmatprep.mubr.bf16.mxu0 0
    %362 = vmatmul.mubr.bf16.gmra.mrb[0].mxu0 %v311
    %v363 = vpop.f32.mrb[0].mxu0
    %v364 = vadd.f32 %v259, %v363
    %v365 = vpop.f32.mrb[0].mxu0
    %v366 = vadd.f32 %v263, %v365
    %v367 = vpop.f32.mrb[0].mxu0
    %v368 = vadd.f32 %v259, %v367
    %v369 = vpop.f32.mrb[0].mxu0
    %v370 = vadd.f32 %v263, %v369
    %371 = vmatprep.mubr.bf16.mxu0 0
    %372 = vmatmul.mubr.bf16.gmra.mrb[0].mxu0 %v314
    %v373 = vpop.f32.mrb[0].mxu0
    %v374 = vadd.f32 %v259, %v373
    %v375 = vpop.f32.mrb[0].mxu0
    %v376 = vadd.f32 %v263, %v375
    %v377 = vpop.f32.mrb[0].mxu0
    %v378 = vadd.f32 %v259, %v377
    %v379 = vpop.f32.mrb[0].mxu0
    %v380 = vadd.f32 %v263, %v379
    %381 = vmatprep.mubr.bf16.mxu0 0
    %382 = vmatmul.mubr.bf16.gmra.mrb[0].mxu0 %v317
    %v383 = vpop.f32.mrb[0].mxu0
    %v384 = vadd.f32 %v259, %v383
    %v385 = vpop.f32.mrb[0].mxu0
    %v386 = vadd.f32 %v263, %v385
    %v387 = vpop.f32.mrb[0].mxu0
    %v388 = vadd.f32 %v259, %v387
    %v389 = vpop.f32.mrb[0].mxu0
    %v390 = vadd.f32 %v263, %v389
    %391 = vdwg.mxu0
    %392 = vst [vmem:[#allocation2] sm:$0xff] %v354
    %393 = vst.msk [vmem:[#allocation2 + $0x8] sm:$0xff] %vm306, %v356
    %394 = vst [vmem:[#allocation2 + $0x10] sm:$0xff] %v358
    %395 = vst.msk [vmem:[#allocation2 + $0x18] sm:$0xff] %vm306, %v360
    %396 = vst [vmem:[#allocation2 + $0x20] sm:$0xff] %v364
    %397 = vst.msk [vmem:[#allocation2 + $0x28] sm:$0xff] %vm306, %v366
    %398 = vst [vmem:[#allocation2 + $0x30] sm:$0xff] %v368
    %399 = vst.msk [vmem:[#allocation2 + $0x38] sm:$0xff] %vm306, %v370
    %400 = vst [vmem:[#allocation2 + $0x40] sm:$0xff] %v374
    %401 = vst.msk [vmem:[#allocation2 + $0x48] sm:$0xff] %vm306, %v376
    %402 = vst [vmem:[#allocation2 + $0x50] sm:$0xff] %v378
    %403 = vst.msk [vmem:[#allocation2 + $0x58] sm:$0xff] %vm306, %v380
    %404 = vst [vmem:[#allocation2 + $0x60] sm:$0xff] %v384
    %405 = vst.msk [vmem:[#allocation2 + $0x68] sm:$0xff] %vm306, %v386
    %406 = vst [vmem:[#allocation2 + $0x70] sm:$0xff] %v388
    %407 = vst.msk [vmem:[#allocation2 + $0x78] sm:$0xff] %vm306, %v390
    %v408 = vld [vmem:[%s5] sm:$0xf]
    %v409 = vld [vmem:[%s5 + $0x4] sm:$0xf]
    %v410 = vld [vmem:[%s5 + $0x8] sm:$0xf]
    %v411 = vld [vmem:[%s5 + $0xc] sm:$0xf]
    %v412 = vld [vmem:[%s6] sm:$0xf]
    %v413 = vld [vmem:[%s6 + $0x4] sm:$0xf]
    %v414 = vld [vmem:[%s6 + $0x8] sm:$0xf]
    %v415 = vld [vmem:[%s6 + $0xc] sm:$0xf]
    %v416 = vld [vmem:[%s7] sm:$0x1]
    %v417 = vld [vmem:[%s8] sm:$0x1]
    %v418 = vld [vmem:[%s1] sm:$0xff]
    %s419 = scalar_lea.vmem %s1, 8
    %v420 = vld [vmem:[%s419] sm:$0xff]
    %v421 = vld [vmem:[#allocation2] sm:$0xff]
    %s422 = scalar_lea.vmem [#allocation2], 112
    %v423 = vld [vmem:[%s422] sm:$0xff]
    %v424 = vld [vmem:[%s422 + $0x8] sm:$0xff]
    %v425 = vpack.c.bf16 %v418, %v418
    %v430 = vunpack.c.l.b16 %v408
    %v431 = vunpack.c.l.b16 %v409
    %v432 = vunpack.c.l.b16 %v410
    %v433 = vunpack.c.l.b16 %v411
    %v434 = vpack.c.b16 %v431, %v430
    %v435 = vpack.c.b16 %v433, %v432
    %vm438 = vcmask 261120
    %v440 = vsel %vm438, %v425, 0
    %442 = vmatprep.subr.bf16.mxu0 0
    %443 = vmatpush1.bf16.msra.mxu0 %v434
    %444 = vmatprep.subr.bf16.mxu0 0
    %445 = vmatpush1.bf16.msra.mxu0 %v435
    %446 = vmatprep.subr.bf16.mxu0 0
    %447 = vmatpush1.bf16.msra.mxu0 0
    %448 = vmatprep.subr.bf16.mxu0 0
    %449 = vmatpush1.bf16.msra.mxu0 0
    %450 = vmatprep.subr.bf16.mxu0 0
    %451 = vmatpush1.bf16.msra.mxu0 0
    %452 = vmatprep.subr.bf16.mxu0 0
    %453 = vmatpush1.bf16.msra.mxu0 0
    %454 = vmatprep.subr.bf16.mxu0 0
    %455 = vmatpush1.bf16.msra.mxu0 0
    %456 = vmatprep.subr.bf16.mxu0 0
    %457 = vmatpush1.bf16.msra.mxu0 0
    %458 = vmatprep.subr.bf16.mxu0 0
    %459 = vmatpush1.bf16.msra.mxu0 0
    %460 = vmatprep.subr.bf16.mxu0 0
    %461 = vmatpush1.bf16.msra.mxu0 0
    %462 = vmatprep.subr.bf16.mxu0 0
    %463 = vmatpush1.bf16.msra.mxu0 0
    %464 = vmatprep.subr.bf16.mxu0 0
    %465 = vmatpush1.bf16.msra.mxu0 0
    %466 = vmatprep.subr.bf16.mxu0 0
    %467 = vmatpush1.bf16.msra.mxu0 0
    %468 = vmatprep.subr.bf16.mxu0 0
    %469 = vmatpush1.bf16.msra.mxu0 0
    %470 = vmatprep.subr.bf16.mxu0 0
    %471 = vmatpush1.bf16.msra.mxu0 0
    %472 = vmatprep.subr.bf16.mxu0 0
    %473 = vmatpush1.bf16.msra.mxu0 0
    %474 = vmatprep.mubr.bf16.mxu0 0
    %475 = vmatmul.mubr.bf16.gmra.mrb[0].mxu0 %v440
    %v476 = vpop.f32.mrb[0].mxu0
    %v477 = vadd.f32 0.0, %v476
    %v478 = vpop.f32.mrb[0].mxu0
    %v479 = vpop.f32.mrb[0].mxu0
    %v480 = vpop.f32.mrb[0].mxu0
    %481 = vdwg.mxu0
    %v482 = vpack.c.bf16 %v420, %v420
    %v487 = vunpack.c.l.b16 %v412
    %v488 = vunpack.c.l.b16 %v413
    %v489 = vunpack.c.l.b16 %v414
    %v490 = vunpack.c.l.b16 %v415
    %v491 = vpack.c.b16 %v488, %v487
    %v492 = vpack.c.b16 %v490, %v489
    %v496 = vsel %vm438, %v482, 0
    %498 = vmatprep.subr.bf16.mxu0 0
    %499 = vmatpush1.bf16.msra.mxu0 %v491
    %500 = vmatprep.subr.bf16.mxu0 0
    %501 = vmatpush1.bf16.msra.mxu0 %v492
    %502 = vmatprep.subr.bf16.mxu0 0
    %503 = vmatpush1.bf16.msra.mxu0 0
    %504 = vmatprep.subr.bf16.mxu0 0
    %505 = vmatpush1.bf16.msra.mxu0 0
    %506 = vmatprep.subr.bf16.mxu0 0
    %507 = vmatpush1.bf16.msra.mxu0 0
    %508 = vmatprep.subr.bf16.mxu0 0
    %509 = vmatpush1.bf16.msra.mxu0 0
    %510 = vmatprep.subr.bf16.mxu0 0
    %511 = vmatpush1.bf16.msra.mxu0 0
    %512 = vmatprep.subr.bf16.mxu0 0
    %513 = vmatpush1.bf16.msra.mxu0 0
    %514 = vmatprep.subr.bf16.mxu0 0
    %515 = vmatpush1.bf16.msra.mxu0 0
    %516 = vmatprep.subr.bf16.mxu0 0
    %517 = vmatpush1.bf16.msra.mxu0 0
    %518 = vmatprep.subr.bf16.mxu0 0
    %519 = vmatpush1.bf16.msra.mxu0 0
    %520 = vmatprep.subr.bf16.mxu0 0
    %521 = vmatpush1.bf16.msra.mxu0 0
    %522 = vmatprep.subr.bf16.mxu0 0
    %523 = vmatpush1.bf16.msra.mxu0 0
    %524 = vmatprep.subr.bf16.mxu0 0
    %525 = vmatpush1.bf16.msra.mxu0 0
    %526 = vmatprep.subr.bf16.mxu0 0
    %527 = vmatpush1.bf16.msra.mxu0 0
    %528 = vmatprep.subr.bf16.mxu0 0
    %529 = vmatpush1.bf16.msra.mxu0 0
    %530 = vmatprep.mubr.bf16.mxu0 0
    %531 = vmatmul.mubr.bf16.gmra.mrb[0].mxu0 %v496
    %v532 = vpop.f32.mrb[0].mxu0
    %v533 = vadd.f32 0.0, %v532
    %v534 = vpop.f32.mrb[0].mxu0
    %v535 = vpop.f32.mrb[0].mxu0
    %v536 = vpop.f32.mrb[0].mxu0
    %537 = vdwg.mxu0
    %v538 = vadd.f32 %v421, %v477
    %v539 = vxor.u32 %v538, 2147483648
    %v540 = vmul.f32 %v539, 1.442695
    %v541 = vpow.pop %v540
    %v542 = vadd.f32 %v541, 1.0
    %v543 = vrcp.pop %v542
    %v544 = vmul.f32 1.0, %v543
    %v546 = vlaneseq
    %v547 = vshrl.u32 %v546, 7
    %v548 = vsub.s32 0, %v547
    %v549 = vrot.slane %v416, %v548
    %550 = vrot.lane.b32.xlu0 %v549, 64
    %v551 = vpop.permute.xlu0 %550
    %v553 = vadd.f32 %v477, %v551
    %555 = vrot.lane.b32.xlu0 %v553, 64
    %v556 = vpop.permute.xlu0 %555
    %v558 = vmul.f32 %v544, %v556
    %560 = vrot.lane.b32.xlu0 %v558, 64
    %v561 = vpop.permute.xlu0 %560
    %v563 = vadd.f32 %v421, %v561
    %v564 = vtanh.pop %v563
    %v565 = vsub.f32 1.0, %v544
    %567 = vrot.lane.b32.xlu0 %v564, 96
    %v568 = vpop.permute.xlu0 %567
    %v570 = vmul.f32 %v565, %v568
    %572 = vrot.lane.b32.xlu0 %v418, 32
    %v573 = vpop.permute.xlu0 %572
    %v575 = vmul.f32 %v544, %v573
    %v576 = vadd.f32 %v570, %v575
    %578 = vrot.lane.b32.xlu0 %v533, 96
    %v579 = vpop.permute.xlu0 %578
    %v581 = vadd.f32 %v423, %v579
    %v582 = vxor.u32 %v581, 2147483648
    %v583 = vmul.f32 %v582, 1.442695
    %v584 = vpow.pop %v583
    %v585 = vadd.f32 %v584, 1.0
    %v586 = vrcp.pop %v585
    %v587 = vmul.f32 1.0, %v586
    %v588 = vadd.f32 %v424, %v579
    %v589 = vxor.u32 %v588, 2147483648
    %v590 = vmul.f32 %v589, 1.442695
    %v591 = vpow.pop %v590
    %v592 = vadd.f32 %v591, 1.0
    %v593 = vrcp.pop %v592
    %v594 = vmul.f32 1.0, %v593
    %v596 = vlaneseq
    %v597 = vshrl.u32 %v596, 7
    %v598 = vsub.s32 0, %v597
    %v599 = vrot.slane %v417, %v598
    %600 = vrot.lane.b32.xlu0 %v599, 64
    %v601 = vpop.permute.xlu0 %600
    %v603 = vadd.f32 %v533, %v601
    %605 = vrot.lane.b32.xlu0 %v603, 32
    %v606 = vpop.permute.xlu0 %605
    %v608 = vmul.f32 %v587, %v606
    %610 = vrot.lane.b32.xlu0 %v608, 64
    %v611 = vpop.permute.xlu0 %610
    %v613 = vadd.f32 %v424, %v611
    %v614 = vtanh.pop %v613
    %v615 = vsub.f32 1.0, %v594
    %617 = vrot.lane.b32.xlu0 %v614, 96
    %v618 = vpop.permute.xlu0 %617
    %v620 = vmul.f32 %v615, %v618
    %v621 = vmul.f32 %v594, %v420
    %v622 = vadd.f32 %v620, %v621
    %624 = vrot.lane.b32.xlu0 %v576, 96
    %v625 = vpop.permute.xlu0 %624
    %627 = vst.msk [vmem:[#allocation3] sm:$0xff] %vm438, %v625
    %629 = vrot.lane.b32.xlu0 %v622, 32
    %v630 = vpop.permute.xlu0 %629
    %s632 = scalar_lea.vmem [#allocation3], 56
    %vm633 = vcmask 523520
    %634 = vst.msk [vmem:[%s632] sm:$0xff] %vm633, %v630
    %s635 = scalar_lea.vmem [#allocation2], 16
    %v636 = vld [vmem:[%s635] sm:$0xff]
    %s637 = scalar_lea.vmem [#allocation2], 96
    %v638 = vld [vmem:[%s637] sm:$0xff]
    %v639 = vld [vmem:[%s637 + $0x8] sm:$0xff]
    %v640 = vpack.c.bf16 %v576, %v576
    %642 = vrot.lane.b32.xlu0 %v640, 96
    %v643 = vpop.permute.xlu0 %642
    %v645 = vsel %vm438, %v643, 0
    %647 = vmatprep.subr.bf16.mxu0 0
    %648 = vmatpush1.bf16.msra.mxu0 %v434
    %649 = vmatprep.subr.bf16.mxu0 0
    %650 = vmatpush1.bf16.msra.mxu0 %v435
    %651 = vmatprep.subr.bf16.mxu0 0
    %652 = vmatpush1.bf16.msra.mxu0 0
    %653 = vmatprep.subr.bf16.mxu0 0
    %654 = vmatpush1.bf16.msra.mxu0 0
    %655 = vmatprep.subr.bf16.mxu0 0
    %656 = vmatpush1.bf16.msra.mxu0 0
    %657 = vmatprep.subr.bf16.mxu0 0
    %658 = vmatpush1.bf16.msra.mxu0 0
    %659 = vmatprep.subr.bf16.mxu0 0
    %660 = vmatpush1.bf16.msra.mxu0 0
    %661 = vmatprep.subr.bf16.mxu0 0
    %662 = vmatpush1.bf16.msra.mxu0 0
    %663 = vmatprep.subr.bf16.mxu0 0
    %664 = vmatpush1.bf16.msra.mxu0 0
    %665 = vmatprep.subr.bf16.mxu0 0
    %666 = vmatpush1.bf16.msra.mxu0 0
    %667 = vmatprep.subr.bf16.mxu0 0
    %668 = vmatpush1.bf16.msra.mxu0 0
    %669 = vmatprep.subr.bf16.mxu0 0
    %670 = vmatpush1.bf16.msra.mxu0 0
    %671 = vmatprep.subr.bf16.mxu0 0
    %672 = vmatpush1.bf16.msra.mxu0 0
    %673 = vmatprep.subr.bf16.mxu0 0
    %674 = vmatpush1.bf16.msra.mxu0 0
    %675 = vmatprep.subr.bf16.mxu0 0
    %676 = vmatpush1.bf16.msra.mxu0 0
    %677 = vmatprep.subr.bf16.mxu0 0
    %678 = vmatpush1.bf16.msra.mxu0 0
    %679 = vmatprep.mubr.bf16.mxu0 0
    %680 = vmatmul.mubr.bf16.gmra.mrb[0].mxu0 %v645
    %v681 = vpop.f32.mrb[0].mxu0
    %v682 = vadd.f32 0.0, %v681
    %v683 = vpop.f32.mrb[0].mxu0
    %v684 = vpop.f32.mrb[0].mxu0
    %v685 = vpop.f32.mrb[0].mxu0
    %686 = vdwg.mxu0
    %v687 = vpack.c.bf16 %v622, %v622
    %v689 = vsel %vm438, %v687, 0
    %691 = vmatprep.subr.bf16.mxu0 0
    %692 = vmatpush1.bf16.msra.mxu0 %v491
    %693 = vmatprep.subr.bf16.mxu0 0
    %694 = vmatpush1.bf16.msra.mxu0 %v492
    %695 = vmatprep.subr.bf16.mxu0 0
    %696 = vmatpush1.bf16.msra.mxu0 0
    %697 = vmatprep.subr.bf16.mxu0 0
    %698 = vmatpush1.bf16.msra.mxu0 0
    %699 = vmatprep.subr.bf16.mxu0 0
    %700 = vmatpush1.bf16.msra.mxu0 0
    %701 = vmatprep.subr.bf16.mxu0 0
    %702 = vmatpush1.bf16.msra.mxu0 0
    %703 = vmatprep.subr.bf16.mxu0 0
    %704 = vmatpush1.bf16.msra.mxu0 0
    %705 = vmatprep.subr.bf16.mxu0 0
    %706 = vmatpush1.bf16.msra.mxu0 0
    %707 = vmatprep.subr.bf16.mxu0 0
    %708 = vmatpush1.bf16.msra.mxu0 0
    %709 = vmatprep.subr.bf16.mxu0 0
    %710 = vmatpush1.bf16.msra.mxu0 0
    %711 = vmatprep.subr.bf16.mxu0 0
    %712 = vmatpush1.bf16.msra.mxu0 0
    %713 = vmatprep.subr.bf16.mxu0 0
    %714 = vmatpush1.bf16.msra.mxu0 0
    %715 = vmatprep.subr.bf16.mxu0 0
    %716 = vmatpush1.bf16.msra.mxu0 0
    %717 = vmatprep.subr.bf16.mxu0 0
    %718 = vmatpush1.bf16.msra.mxu0 0
    %719 = vmatprep.subr.bf16.mxu0 0
    %720 = vmatpush1.bf16.msra.mxu0 0
    %721 = vmatprep.subr.bf16.mxu0 0
    %722 = vmatpush1.bf16.msra.mxu0 0
    %723 = vmatprep.mubr.bf16.mxu0 0
    %724 = vmatmul.mubr.bf16.gmra.mrb[0].mxu0 %v689
    %v725 = vpop.f32.mrb[0].mxu0
    %v726 = vadd.f32 0.0, %v725
    %v727 = vpop.f32.mrb[0].mxu0
    %v728 = vpop.f32.mrb[0].mxu0
    %v729 = vpop.f32.mrb[0].mxu0
    %730 = vdwg.mxu0
    %v731 = vadd.f32 %v636, %v682
    %v732 = vxor.u32 %v731, 2147483648
    %v733 = vmul.f32 %v732, 1.442695
    %v734 = vpow.pop %v733
    %v735 = vadd.f32 %v734, 1.0
    %v736 = vrcp.pop %v735
    %v737 = vmul.f32 1.0, %v736
    %v738 = vadd.f32 %v682, %v551
    %740 = vrot.lane.b32.xlu0 %v738, 64
    %v741 = vpop.permute.xlu0 %740
    %v743 = vmul.f32 %v737, %v741
    %745 = vrot.lane.b32.xlu0 %v743, 64
    %v746 = vpop.permute.xlu0 %745
    %v748 = vadd.f32 %v636, %v746
    %v749 = vtanh.pop %v748
    %v750 = vsub.f32 1.0, %v737
    %752 = vrot.lane.b32.xlu0 %v749, 96
    %v753 = vpop.permute.xlu0 %752
    %v755 = vmul.f32 %v750, %v753
    %v756 = vmul.f32 %v737, %v576
    %v757 = vadd.f32 %v755, %v756
    %759 = vrot.lane.b32.xlu0 %v726, 96
    %v760 = vpop.permute.xlu0 %759
    %v762 = vadd.f32 %v638, %v760
    %v763 = vxor.u32 %v762, 2147483648
    %v764 = vmul.f32 %v763, 1.442695
    %v765 = vpow.pop %v764
    %v766 = vadd.f32 %v765, 1.0
    %v767 = vrcp.pop %v766
    %v768 = vmul.f32 1.0, %v767
    %v769 = vadd.f32 %v639, %v760
    %v770 = vxor.u32 %v769, 2147483648
    %v771 = vmul.f32 %v770, 1.442695
    %v772 = vpow.pop %v771
    %v773 = vadd.f32 %v772, 1.0
    %v774 = vrcp.pop %v773
    %v775 = vmul.f32 1.0, %v774
    %v776 = vadd.f32 %v726, %v601
    %778 = vrot.lane.b32.xlu0 %v776, 32
    %v779 = vpop.permute.xlu0 %778
    %v781 = vmul.f32 %v768, %v779
    %783 = vrot.lane.b32.xlu0 %v781, 64
    %v784 = vpop.permute.xlu0 %783
    %v786 = vadd.f32 %v639, %v784
    %v787 = vtanh.pop %v786
    %v788 = vsub.f32 1.0, %v775
    %790 = vrot.lane.b32.xlu0 %v787, 96
    %v791 = vpop.permute.xlu0 %790
    %v793 = vmul.f32 %v788, %v791
    %v794 = vmul.f32 %v775, %v622
    %v795 = vadd.f32 %v793, %v794
    %797 = vrot.lane.b32.xlu0 %v757, 96
    %v798 = vpop.permute.xlu0 %797
    %s800 = scalar_lea.vmem [#allocation3], 8
    %801 = vst.msk [vmem:[%s800] sm:$0xff] %vm438, %v798
    %803 = vrot.lane.b32.xlu0 %v795, 32
    %v804 = vpop.permute.xlu0 %803
    %s806 = scalar_lea.vmem [#allocation3], 48
    %807 = vst.msk [vmem:[%s806] sm:$0xff] %vm633, %v804
    %s808 = scalar_lea.vmem [#allocation2], 32
    %v809 = vld [vmem:[%s808] sm:$0xff]
    %s810 = scalar_lea.vmem [#allocation2], 80
    %v811 = vld [vmem:[%s810] sm:$0xff]
    %v812 = vld [vmem:[%s810 + $0x8] sm:$0xff]
    %v813 = vpack.c.bf16 %v757, %v757
    %815 = vrot.lane.b32.xlu0 %v813, 96
    %v816 = vpop.permute.xlu0 %815
    %v818 = vsel %vm438, %v816, 0
    %820 = vmatprep.subr.bf16.mxu0 0
    %821 = vmatpush1.bf16.msra.mxu0 %v434
    %822 = vmatprep.subr.bf16.mxu0 0
    %823 = vmatpush1.bf16.msra.mxu0 %v435
    %824 = vmatprep.subr.bf16.mxu0 0
    %825 = vmatpush1.bf16.msra.mxu0 0
    %826 = vmatprep.subr.bf16.mxu0 0
    %827 = vmatpush1.bf16.msra.mxu0 0
    %828 = vmatprep.subr.bf16.mxu0 0
    %829 = vmatpush1.bf16.msra.mxu0 0
    %830 = vmatprep.subr.bf16.mxu0 0
    %831 = vmatpush1.bf16.msra.mxu0 0
    %832 = vmatprep.subr.bf16.mxu0 0
    %833 = vmatpush1.bf16.msra.mxu0 0
    %834 = vmatprep.subr.bf16.mxu0 0
    %835 = vmatpush1.bf16.msra.mxu0 0
    %836 = vmatprep.subr.bf16.mxu0 0
    %837 = vmatpush1.bf16.msra.mxu0 0
    %838 = vmatprep.subr.bf16.mxu0 0
    %839 = vmatpush1.bf16.msra.mxu0 0
    %840 = vmatprep.subr.bf16.mxu0 0
    %841 = vmatpush1.bf16.msra.mxu0 0
    %842 = vmatprep.subr.bf16.mxu0 0
    %843 = vmatpush1.bf16.msra.mxu0 0
    %844 = vmatprep.subr.bf16.mxu0 0
    %845 = vmatpush1.bf16.msra.mxu0 0
    %846 = vmatprep.subr.bf16.mxu0 0
    %847 = vmatpush1.bf16.msra.mxu0 0
    %848 = vmatprep.subr.bf16.mxu0 0
    %849 = vmatpush1.bf16.msra.mxu0 0
    %850 = vmatprep.subr.bf16.mxu0 0
    %851 = vmatpush1.bf16.msra.mxu0 0
    %852 = vmatprep.mubr.bf16.mxu0 0
    %853 = vmatmul.mubr.bf16.gmra.mrb[0].mxu0 %v818
    %v854 = vpop.f32.mrb[0].mxu0
    %v855 = vadd.f32 0.0, %v854
    %v856 = vpop.f32.mrb[0].mxu0
    %v857 = vpop.f32.mrb[0].mxu0
    %v858 = vpop.f32.mrb[0].mxu0
    %859 = vdwg.mxu0
    %v860 = vpack.c.bf16 %v795, %v795
    %v862 = vsel %vm438, %v860, 0
    %864 = vmatprep.subr.bf16.mxu0 0
    %865 = vmatpush1.bf16.msra.mxu0 %v491
    %866 = vmatprep.subr.bf16.mxu0 0
    %867 = vmatpush1.bf16.msra.mxu0 %v492
    %868 = vmatprep.subr.bf16.mxu0 0
    %869 = vmatpush1.bf16.msra.mxu0 0
    %870 = vmatprep.subr.bf16.mxu0 0
    %871 = vmatpush1.bf16.msra.mxu0 0
    %872 = vmatprep.subr.bf16.mxu0 0
    %873 = vmatpush1.bf16.msra.mxu0 0
    %874 = vmatprep.subr.bf16.mxu0 0
    %875 = vmatpush1.bf16.msra.mxu0 0
    %876 = vmatprep.subr.bf16.mxu0 0
    %877 = vmatpush1.bf16.msra.mxu0 0
    %878 = vmatprep.subr.bf16.mxu0 0
    %879 = vmatpush1.bf16.msra.mxu0 0
    %880 = vmatprep.subr.bf16.mxu0 0
    %881 = vmatpush1.bf16.msra.mxu0 0
    %882 = vmatprep.subr.bf16.mxu0 0
    %883 = vmatpush1.bf16.msra.mxu0 0
    %884 = vmatprep.subr.bf16.mxu0 0
    %885 = vmatpush1.bf16.msra.mxu0 0
    %886 = vmatprep.subr.bf16.mxu0 0
    %887 = vmatpush1.bf16.msra.mxu0 0
    %888 = vmatprep.subr.bf16.mxu0 0
    %889 = vmatpush1.bf16.msra.mxu0 0
    %890 = vmatprep.subr.bf16.mxu0 0
    %891 = vmatpush1.bf16.msra.mxu0 0
    %892 = vmatprep.subr.bf16.mxu0 0
    %893 = vmatpush1.bf16.msra.mxu0 0
    %894 = vmatprep.subr.bf16.mxu0 0
    %895 = vmatpush1.bf16.msra.mxu0 0
    %896 = vmatprep.mubr.bf16.mxu0 0
    %897 = vmatmul.mubr.bf16.gmra.mrb[0].mxu0 %v862
    %v898 = vpop.f32.mrb[0].mxu0
    %v899 = vadd.f32 0.0, %v898
    %v900 = vpop.f32.mrb[0].mxu0
    %v901 = vpop.f32.mrb[0].mxu0
    %v902 = vpop.f32.mrb[0].mxu0
    %903 = vdwg.mxu0
    %v904 = vadd.f32 %v809, %v855
    %v905 = vxor.u32 %v904, 2147483648
    %v906 = vmul.f32 %v905, 1.442695
    %v907 = vpow.pop %v906
    %v908 = vadd.f32 %v907, 1.0
    %v909 = vrcp.pop %v908
    %v910 = vmul.f32 1.0, %v909
    %v911 = vadd.f32 %v855, %v551
    %913 = vrot.lane.b32.xlu0 %v911, 64
    %v914 = vpop.permute.xlu0 %913
    %v916 = vmul.f32 %v910, %v914
    %918 = vrot.lane.b32.xlu0 %v916, 64
    %v919 = vpop.permute.xlu0 %918
    %v921 = vadd.f32 %v809, %v919
    %v922 = vtanh.pop %v921
    %v923 = vsub.f32 1.0, %v910
    %925 = vrot.lane.b32.xlu0 %v922, 96
    %v926 = vpop.permute.xlu0 %925
    %v928 = vmul.f32 %v923, %v926
    %v929 = vmul.f32 %v910, %v757
    %v930 = vadd.f32 %v928, %v929
    %932 = vrot.lane.b32.xlu0 %v899, 96
    %v933 = vpop.permute.xlu0 %932
    %v935 = vadd.f32 %v811, %v933
    %v936 = vxor.u32 %v935, 2147483648
    %v937 = vmul.f32 %v936, 1.442695
    %v938 = vpow.pop %v937
    %v939 = vadd.f32 %v938, 1.0
    %v940 = vrcp.pop %v939
    %v941 = vmul.f32 1.0, %v940
    %v942 = vadd.f32 %v812, %v933
    %v943 = vxor.u32 %v942, 2147483648
    %v944 = vmul.f32 %v943, 1.442695
    %v945 = vpow.pop %v944
    %v946 = vadd.f32 %v945, 1.0
    %v947 = vrcp.pop %v946
    %v948 = vmul.f32 1.0, %v947
    %v949 = vadd.f32 %v899, %v601
    %951 = vrot.lane.b32.xlu0 %v949, 32
    %v952 = vpop.permute.xlu0 %951
    %v954 = vmul.f32 %v941, %v952
    %956 = vrot.lane.b32.xlu0 %v954, 64
    %v957 = vpop.permute.xlu0 %956
    %v959 = vadd.f32 %v812, %v957
    %v960 = vtanh.pop %v959
    %v961 = vsub.f32 1.0, %v948
    %963 = vrot.lane.b32.xlu0 %v960, 96
    %v964 = vpop.permute.xlu0 %963
    %v966 = vmul.f32 %v961, %v964
    %v967 = vmul.f32 %v948, %v795
    %v968 = vadd.f32 %v966, %v967
    %970 = vrot.lane.b32.xlu0 %v930, 96
    %v971 = vpop.permute.xlu0 %970
    %s973 = scalar_lea.vmem [#allocation3], 16
    %974 = vst.msk [vmem:[%s973] sm:$0xff] %vm438, %v971
    %976 = vrot.lane.b32.xlu0 %v968, 32
    %v977 = vpop.permute.xlu0 %976
    %s979 = scalar_lea.vmem [#allocation3], 40
    %980 = vst.msk [vmem:[%s979] sm:$0xff] %vm633, %v977
    %s981 = scalar_lea.vmem [#allocation2], 48
    %v982 = vld [vmem:[%s981] sm:$0xff]
    %s983 = scalar_lea.vmem [#allocation2], 64
    %v984 = vld [vmem:[%s983] sm:$0xff]
    %v985 = vld [vmem:[%s983 + $0x8] sm:$0xff]
    %v986 = vpack.c.bf16 %v930, %v930
    %988 = vrot.lane.b32.xlu0 %v986, 96
    %v989 = vpop.permute.xlu0 %988
    %v991 = vsel %vm438, %v989, 0
    %993 = vmatprep.subr.bf16.mxu0 0
    %994 = vmatpush1.bf16.msra.mxu0 %v434
    %995 = vmatprep.subr.bf16.mxu0 0
    %996 = vmatpush1.bf16.msra.mxu0 %v435
    %997 = vmatprep.subr.bf16.mxu0 0
    %998 = vmatpush1.bf16.msra.mxu0 0
    %999 = vmatprep.subr.bf16.mxu0 0
    %1000 = vmatpush1.bf16.msra.mxu0 0
    %1001 = vmatprep.subr.bf16.mxu0 0
    %1002 = vmatpush1.bf16.msra.mxu0 0
    %1003 = vmatprep.subr.bf16.mxu0 0
    %1004 = vmatpush1.bf16.msra.mxu0 0
    %1005 = vmatprep.subr.bf16.mxu0 0
    %1006 = vmatpush1.bf16.msra.mxu0 0
    %1007 = vmatprep.subr.bf16.mxu0 0
    %1008 = vmatpush1.bf16.msra.mxu0 0
    %1009 = vmatprep.subr.bf16.mxu0 0
    %1010 = vmatpush1.bf16.msra.mxu0 0
    %1011 = vmatprep.subr.bf16.mxu0 0
    %1012 = vmatpush1.bf16.msra.mxu0 0
    %1013 = vmatprep.subr.bf16.mxu0 0
    %1014 = vmatpush1.bf16.msra.mxu0 0
    %1015 = vmatprep.subr.bf16.mxu0 0
    %1016 = vmatpush1.bf16.msra.mxu0 0
    %1017 = vmatprep.subr.bf16.mxu0 0
    %1018 = vmatpush1.bf16.msra.mxu0 0
    %1019 = vmatprep.subr.bf16.mxu0 0
    %1020 = vmatpush1.bf16.msra.mxu0 0
    %1021 = vmatprep.subr.bf16.mxu0 0
    %1022 = vmatpush1.bf16.msra.mxu0 0
    %1023 = vmatprep.subr.bf16.mxu0 0
    %1024 = vmatpush1.bf16.msra.mxu0 0
    %1025 = vmatprep.mubr.bf16.mxu0 0
    %1026 = vmatmul.mubr.bf16.gmra.mrb[0].mxu0 %v991
    %v1027 = vpop.f32.mrb[0].mxu0
    %v1028 = vadd.f32 0.0, %v1027
    %v1029 = vpop.f32.mrb[0].mxu0
    %v1030 = vpop.f32.mrb[0].mxu0
    %v1031 = vpop.f32.mrb[0].mxu0
    %1032 = vdwg.mxu0
    %v1033 = vpack.c.bf16 %v968, %v968
    %v1035 = vsel %vm438, %v1033, 0
    %1037 = vmatprep.subr.bf16.mxu0 0
    %1038 = vmatpush1.bf16.msra.mxu0 %v491
    %1039 = vmatprep.subr.bf16.mxu0 0
    %1040 = vmatpush1.bf16.msra.mxu0 %v492
    %1041 = vmatprep.subr.bf16.mxu0 0
    %1042 = vmatpush1.bf16.msra.mxu0 0
    %1043 = vmatprep.subr.bf16.mxu0 0
    %1044 = vmatpush1.bf16.msra.mxu0 0
    %1045 = vmatprep.subr.bf16.mxu0 0
    %1046 = vmatpush1.bf16.msra.mxu0 0
    %1047 = vmatprep.subr.bf16.mxu0 0
    %1048 = vmatpush1.bf16.msra.mxu0 0
    %1049 = vmatprep.subr.bf16.mxu0 0
    %1050 = vmatpush1.bf16.msra.mxu0 0
    %1051 = vmatprep.subr.bf16.mxu0 0
    %1052 = vmatpush1.bf16.msra.mxu0 0
    %1053 = vmatprep.subr.bf16.mxu0 0
    %1054 = vmatpush1.bf16.msra.mxu0 0
    %1055 = vmatprep.subr.bf16.mxu0 0
    %1056 = vmatpush1.bf16.msra.mxu0 0
    %1057 = vmatprep.subr.bf16.mxu0 0
    %1058 = vmatpush1.bf16.msra.mxu0 0
    %1059 = vmatprep.subr.bf16.mxu0 0
    %1060 = vmatpush1.bf16.msra.mxu0 0
    %1061 = vmatprep.subr.bf16.mxu0 0
    %1062 = vmatpush1.bf16.msra.mxu0 0
    %1063 = vmatprep.subr.bf16.mxu0 0
    %1064 = vmatpush1.bf16.msra.mxu0 0
    %1065 = vmatprep.subr.bf16.mxu0 0
    %1066 = vmatpush1.bf16.msra.mxu0 0
    %1067 = vmatprep.subr.bf16.mxu0 0
    %1068 = vmatpush1.bf16.msra.mxu0 0
    %1069 = vmatprep.mubr.bf16.mxu0 0
    %1070 = vmatmul.mubr.bf16.gmra.mrb[0].mxu0 %v1035
    %v1071 = vpop.f32.mrb[0].mxu0
    %v1072 = vadd.f32 0.0, %v1071
    %v1073 = vpop.f32.mrb[0].mxu0
    %v1074 = vpop.f32.mrb[0].mxu0
    %v1075 = vpop.f32.mrb[0].mxu0
    %1076 = vdwg.mxu0
    %v1077 = vadd.f32 %v982, %v1028
    %v1078 = vxor.u32 %v1077, 2147483648
    %v1079 = vmul.f32 %v1078, 1.442695
    %v1080 = vpow.pop %v1079
    %v1081 = vadd.f32 %v1080, 1.0
    %v1082 = vrcp.pop %v1081
    %v1083 = vmul.f32 1.0, %v1082
    %v1084 = vadd.f32 %v1028, %v551
    %1086 = vrot.lane.b32.xlu0 %v1084, 64
    %v1087 = vpop.permute.xlu0 %1086
    %v1089 = vmul.f32 %v1083, %v1087
    %1091 = vrot.lane.b32.xlu0 %v1089, 64
    %v1092 = vpop.permute.xlu0 %1091
    %v1094 = vadd.f32 %v982, %v1092
    %v1095 = vtanh.pop %v1094
    %v1096 = vsub.f32 1.0, %v1083
    %1098 = vrot.lane.b32.xlu0 %v1095, 96
    %v1099 = vpop.permute.xlu0 %1098
    %v1101 = vmul.f32 %v1096, %v1099
    %v1102 = vmul.f32 %v1083, %v930
    %v1103 = vadd.f32 %v1101, %v1102
    %1105 = vrot.lane.b32.xlu0 %v1072, 96
    %v1106 = vpop.permute.xlu0 %1105
    %v1108 = vadd.f32 %v984, %v1106
    %v1109 = vxor.u32 %v1108, 2147483648
    %v1110 = vmul.f32 %v1109, 1.442695
    %v1111 = vpow.pop %v1110
    %v1112 = vadd.f32 %v1111, 1.0
    %v1113 = vrcp.pop %v1112
    %v1114 = vmul.f32 1.0, %v1113
    %v1115 = vadd.f32 %v985, %v1106
    %v1116 = vxor.u32 %v1115, 2147483648
    %v1117 = vmul.f32 %v1116, 1.442695
    %v1118 = vpow.pop %v1117
    %v1119 = vadd.f32 %v1118, 1.0
    %v1120 = vrcp.pop %v1119
    %v1121 = vmul.f32 1.0, %v1120
    %v1122 = vadd.f32 %v1072, %v601
    %1124 = vrot.lane.b32.xlu0 %v1122, 32
    %v1125 = vpop.permute.xlu0 %1124
    %v1127 = vmul.f32 %v1114, %v1125
    %1129 = vrot.lane.b32.xlu0 %v1127, 64
    %v1130 = vpop.permute.xlu0 %1129
    %v1132 = vadd.f32 %v985, %v1130
    %v1133 = vtanh.pop %v1132
    %v1134 = vsub.f32 1.0, %v1121
    %1136 = vrot.lane.b32.xlu0 %v1133, 96
    %v1137 = vpop.permute.xlu0 %1136
    %v1139 = vmul.f32 %v1134, %v1137
    %v1140 = vmul.f32 %v1121, %v968
    %v1141 = vadd.f32 %v1139, %v1140
    %1143 = vrot.lane.b32.xlu0 %v1103, 96
    %v1144 = vpop.permute.xlu0 %1143
    %s1146 = scalar_lea.vmem [#allocation3], 24
    %1147 = vst.msk [vmem:[%s1146] sm:$0xff] %vm438, %v1144
    %1149 = vrot.lane.b32.xlu0 %v1141, 32
    %v1150 = vpop.permute.xlu0 %1149
    %s1152 = scalar_lea.vmem [#allocation3], 32
    %1153 = vst.msk [vmem:[%s1152] sm:$0xff] %vm633, %v1150
    %v1154 = vld [vmem:[%s983] sm:$0xff]
    %v1155 = vld [vmem:[%s981] sm:$0xff]
    %v1156 = vld [vmem:[%s981 + $0x8] sm:$0xff]
    %v1157 = vpack.c.bf16 %v1103, %v1103
    %1159 = vrot.lane.b32.xlu0 %v1157, 96
    %v1160 = vpop.permute.xlu0 %1159
    %v1162 = vsel %vm438, %v1160, 0
    %1164 = vmatprep.subr.bf16.mxu0 0
    %1165 = vmatpush1.bf16.msra.mxu0 %v434
    %1166 = vmatprep.subr.bf16.mxu0 0
    %1167 = vmatpush1.bf16.msra.mxu0 %v435
    %1168 = vmatprep.subr.bf16.mxu0 0
    %1169 = vmatpush1.bf16.msra.mxu0 0
    %1170 = vmatprep.subr.bf16.mxu0 0
    %1171 = vmatpush1.bf16.msra.mxu0 0
    %1172 = vmatprep.subr.bf16.mxu0 0
    %1173 = vmatpush1.bf16.msra.mxu0 0
    %1174 = vmatprep.subr.bf16.mxu0 0
    %1175 = vmatpush1.bf16.msra.mxu0 0
    %1176 = vmatprep.subr.bf16.mxu0 0
    %1177 = vmatpush1.bf16.msra.mxu0 0
    %1178 = vmatprep.subr.bf16.mxu0 0
    %1179 = vmatpush1.bf16.msra.mxu0 0
    %1180 = vmatprep.subr.bf16.mxu0 0
    %1181 = vmatpush1.bf16.msra.mxu0 0
    %1182 = vmatprep.subr.bf16.mxu0 0
    %1183 = vmatpush1.bf16.msra.mxu0 0
    %1184 = vmatprep.subr.bf16.mxu0 0
    %1185 = vmatpush1.bf16.msra.mxu0 0
    %1186 = vmatprep.subr.bf16.mxu0 0
    %1187 = vmatpush1.bf16.msra.mxu0 0
    %1188 = vmatprep.subr.bf16.mxu0 0
    %1189 = vmatpush1.bf16.msra.mxu0 0
    %1190 = vmatprep.subr.bf16.mxu0 0
    %1191 = vmatpush1.bf16.msra.mxu0 0
    %1192 = vmatprep.subr.bf16.mxu0 0
    %1193 = vmatpush1.bf16.msra.mxu0 0
    %1194 = vmatprep.subr.bf16.mxu0 0
    %1195 = vmatpush1.bf16.msra.mxu0 0
    %1196 = vmatprep.mubr.bf16.mxu0 0
    %1197 = vmatmul.mubr.bf16.gmra.mrb[0].mxu0 %v1162
    %v1198 = vpop.f32.mrb[0].mxu0
    %v1199 = vadd.f32 0.0, %v1198
    %v1200 = vpop.f32.mrb[0].mxu0
    %v1201 = vpop.f32.mrb[0].mxu0
    %v1202 = vpop.f32.mrb[0].mxu0
    %1203 = vdwg.mxu0
    %v1204 = vpack.c.bf16 %v1141, %v1141
    %v1206 = vsel %vm438, %v1204, 0
    %1208 = vmatprep.subr.bf16.mxu0 0
    %1209 = vmatpush1.bf16.msra.mxu0 %v491
    %1210 = vmatprep.subr.bf16.mxu0 0
    %1211 = vmatpush1.bf16.msra.mxu0 %v492
    %1212 = vmatprep.subr.bf16.mxu0 0
    %1213 = vmatpush1.bf16.msra.mxu0 0
    %1214 = vmatprep.subr.bf16.mxu0 0
    %1215 = vmatpush1.bf16.msra.mxu0 0
    %1216 = vmatprep.subr.bf16.mxu0 0
    %1217 = vmatpush1.bf16.msra.mxu0 0
    %1218 = vmatprep.subr.bf16.mxu0 0
    %1219 = vmatpush1.bf16.msra.mxu0 0
    %1220 = vmatprep.subr.bf16.mxu0 0
    %1221 = vmatpush1.bf16.msra.mxu0 0
    %1222 = vmatprep.subr.bf16.mxu0 0
    %1223 = vmatpush1.bf16.msra.mxu0 0
    %1224 = vmatprep.subr.bf16.mxu0 0
    %1225 = vmatpush1.bf16.msra.mxu0 0
    %1226 = vmatprep.subr.bf16.mxu0 0
    %1227 = vmatpush1.bf16.msra.mxu0 0
    %1228 = vmatprep.subr.bf16.mxu0 0
    %1229 = vmatpush1.bf16.msra.mxu0 0
    %1230 = vmatprep.subr.bf16.mxu0 0
    %1231 = vmatpush1.bf16.msra.mxu0 0
    %1232 = vmatprep.subr.bf16.mxu0 0
    %1233 = vmatpush1.bf16.msra.mxu0 0
    %1234 = vmatprep.subr.bf16.mxu0 0
    %1235 = vmatpush1.bf16.msra.mxu0 0
    %1236 = vmatprep.subr.bf16.mxu0 0
    %1237 = vmatpush1.bf16.msra.mxu0 0
    %1238 = vmatprep.subr.bf16.mxu0 0
    %1239 = vmatpush1.bf16.msra.mxu0 0
    %1240 = vmatprep.mubr.bf16.mxu0 0
    %1241 = vmatmul.mubr.bf16.gmra.mrb[0].mxu0 %v1206
    %v1242 = vpop.f32.mrb[0].mxu0
    %v1243 = vadd.f32 0.0, %v1242
    %v1244 = vpop.f32.mrb[0].mxu0
    %v1245 = vpop.f32.mrb[0].mxu0
    %v1246 = vpop.f32.mrb[0].mxu0
    %1247 = vdwg.mxu0
    %v1248 = vadd.f32 %v1154, %v1199
    %v1249 = vxor.u32 %v1248, 2147483648
    %v1250 = vmul.f32 %v1249, 1.442695
    %v1251 = vpow.pop %v1250
    %v1252 = vadd.f32 %v1251, 1.0
    %v1253 = vrcp.pop %v1252
    %v1254 = vmul.f32 1.0, %v1253
    %v1255 = vadd.f32 %v1199, %v551
    %1257 = vrot.lane.b32.xlu0 %v1255, 64
    %v1258 = vpop.permute.xlu0 %1257
    %v1260 = vmul.f32 %v1254, %v1258
    %1262 = vrot.lane.b32.xlu0 %v1260, 64
    %v1263 = vpop.permute.xlu0 %1262
    %v1265 = vadd.f32 %v1154, %v1263
    %v1266 = vtanh.pop %v1265
    %v1267 = vsub.f32 1.0, %v1254
    %1269 = vrot.lane.b32.xlu0 %v1266, 96
    %v1270 = vpop.permute.xlu0 %1269
    %v1272 = vmul.f32 %v1267, %v1270
    %v1273 = vmul.f32 %v1254, %v1103
    %v1274 = vadd.f32 %v1272, %v1273
    %1276 = vrot.lane.b32.xlu0 %v1243, 96
    %v1277 = vpop.permute.xlu0 %1276
    %v1279 = vadd.f32 %v1155, %v1277
    %v1280 = vxor.u32 %v1279, 2147483648
    %v1281 = vmul.f32 %v1280, 1.442695
    %v1282 = vpow.pop %v1281
    %v1283 = vadd.f32 %v1282, 1.0
    %v1284 = vrcp.pop %v1283
    %v1285 = vmul.f32 1.0, %v1284
    %v1286 = vadd.f32 %v1156, %v1277
    %v1287 = vxor.u32 %v1286, 2147483648
    %v1288 = vmul.f32 %v1287, 1.442695
    %v1289 = vpow.pop %v1288
    %v1290 = vadd.f32 %v1289, 1.0
    %v1291 = vrcp.pop %v1290
    %v1292 = vmul.f32 1.0, %v1291
    %v1293 = vadd.f32 %v1243, %v601
    %1295 = vrot.lane.b32.xlu0 %v1293, 32
    %v1296 = vpop.permute.xlu0 %1295
    %v1298 = vmul.f32 %v1285, %v1296
    %1300 = vrot.lane.b32.xlu0 %v1298, 64
    %v1301 = vpop.permute.xlu0 %1300
    %v1303 = vadd.f32 %v1156, %v1301
    %v1304 = vtanh.pop %v1303
    %v1305 = vsub.f32 1.0, %v1292
    %1307 = vrot.lane.b32.xlu0 %v1304, 96
    %v1308 = vpop.permute.xlu0 %1307
    %v1310 = vmul.f32 %v1305, %v1308
    %v1311 = vmul.f32 %v1292, %v1141
    %v1312 = vadd.f32 %v1310, %v1311
    %1314 = vrot.lane.b32.xlu0 %v1274, 96
    %v1315 = vpop.permute.xlu0 %1314
    %1317 = vst.msk [vmem:[%s1152] sm:$0xff] %vm438, %v1315
    %1319 = vrot.lane.b32.xlu0 %v1312, 32
    %v1320 = vpop.permute.xlu0 %1319
    %1322 = vst.msk [vmem:[%s1146] sm:$0xff] %vm633, %v1320
    %v1323 = vld [vmem:[%s810] sm:$0xff]
    %v1324 = vld [vmem:[%s808] sm:$0xff]
    %v1325 = vld [vmem:[%s808 + $0x8] sm:$0xff]
    %v1326 = vpack.c.bf16 %v1274, %v1274
    %1328 = vrot.lane.b32.xlu0 %v1326, 96
    %v1329 = vpop.permute.xlu0 %1328
    %v1331 = vsel %vm438, %v1329, 0
    %1333 = vmatprep.subr.bf16.mxu0 0
    %1334 = vmatpush1.bf16.msra.mxu0 %v434
    %1335 = vmatprep.subr.bf16.mxu0 0
    %1336 = vmatpush1.bf16.msra.mxu0 %v435
    %1337 = vmatprep.subr.bf16.mxu0 0
    %1338 = vmatpush1.bf16.msra.mxu0 0
    %1339 = vmatprep.subr.bf16.mxu0 0
    %1340 = vmatpush1.bf16.msra.mxu0 0
    %1341 = vmatprep.subr.bf16.mxu0 0
    %1342 = vmatpush1.bf16.msra.mxu0 0
    %1343 = vmatprep.subr.bf16.mxu0 0
    %1344 = vmatpush1.bf16.msra.mxu0 0
    %1345 = vmatprep.subr.bf16.mxu0 0
    %1346 = vmatpush1.bf16.msra.mxu0 0
    %1347 = vmatprep.subr.bf16.mxu0 0
    %1348 = vmatpush1.bf16.msra.mxu0 0
    %1349 = vmatprep.subr.bf16.mxu0 0
    %1350 = vmatpush1.bf16.msra.mxu0 0
    %1351 = vmatprep.subr.bf16.mxu0 0
    %1352 = vmatpush1.bf16.msra.mxu0 0
    %1353 = vmatprep.subr.bf16.mxu0 0
    %1354 = vmatpush1.bf16.msra.mxu0 0
    %1355 = vmatprep.subr.bf16.mxu0 0
    %1356 = vmatpush1.bf16.msra.mxu0 0
    %1357 = vmatprep.subr.bf16.mxu0 0
    %1358 = vmatpush1.bf16.msra.mxu0 0
    %1359 = vmatprep.subr.bf16.mxu0 0
    %1360 = vmatpush1.bf16.msra.mxu0 0
    %1361 = vmatprep.subr.bf16.mxu0 0
    %1362 = vmatpush1.bf16.msra.mxu0 0
    %1363 = vmatprep.subr.bf16.mxu0 0
    %1364 = vmatpush1.bf16.msra.mxu0 0
    %1365 = vmatprep.mubr.bf16.mxu0 0
    %1366 = vmatmul.mubr.bf16.gmra.mrb[0].mxu0 %v1331
    %v1367 = vpop.f32.mrb[0].mxu0
    %v1368 = vadd.f32 0.0, %v1367
    %v1369 = vpop.f32.mrb[0].mxu0
    %v1370 = vpop.f32.mrb[0].mxu0
    %v1371 = vpop.f32.mrb[0].mxu0
    %1372 = vdwg.mxu0
    %v1373 = vpack.c.bf16 %v1312, %v1312
    %v1375 = vsel %vm438, %v1373, 0
    %1377 = vmatprep.subr.bf16.mxu0 0
    %1378 = vmatpush1.bf16.msra.mxu0 %v491
    %1379 = vmatprep.subr.bf16.mxu0 0
    %1380 = vmatpush1.bf16.msra.mxu0 %v492
    %1381 = vmatprep.subr.bf16.mxu0 0
    %1382 = vmatpush1.bf16.msra.mxu0 0
    %1383 = vmatprep.subr.bf16.mxu0 0
    %1384 = vmatpush1.bf16.msra.mxu0 0
    %1385 = vmatprep.subr.bf16.mxu0 0
    %1386 = vmatpush1.bf16.msra.mxu0 0
    %1387 = vmatprep.subr.bf16.mxu0 0
    %1388 = vmatpush1.bf16.msra.mxu0 0
    %1389 = vmatprep.subr.bf16.mxu0 0
    %1390 = vmatpush1.bf16.msra.mxu0 0
    %1391 = vmatprep.subr.bf16.mxu0 0
    %1392 = vmatpush1.bf16.msra.mxu0 0
    %1393 = vmatprep.subr.bf16.mxu0 0
    %1394 = vmatpush1.bf16.msra.mxu0 0
    %1395 = vmatprep.subr.bf16.mxu0 0
    %1396 = vmatpush1.bf16.msra.mxu0 0
    %1397 = vmatprep.subr.bf16.mxu0 0
    %1398 = vmatpush1.bf16.msra.mxu0 0
    %1399 = vmatprep.subr.bf16.mxu0 0
    %1400 = vmatpush1.bf16.msra.mxu0 0
    %1401 = vmatprep.subr.bf16.mxu0 0
    %1402 = vmatpush1.bf16.msra.mxu0 0
    %1403 = vmatprep.subr.bf16.mxu0 0
    %1404 = vmatpush1.bf16.msra.mxu0 0
    %1405 = vmatprep.subr.bf16.mxu0 0
    %1406 = vmatpush1.bf16.msra.mxu0 0
    %1407 = vmatprep.subr.bf16.mxu0 0
    %1408 = vmatpush1.bf16.msra.mxu0 0
    %1409 = vmatprep.mubr.bf16.mxu0 0
    %1410 = vmatmul.mubr.bf16.gmra.mrb[0].mxu0 %v1375
    %v1411 = vpop.f32.mrb[0].mxu0
    %v1412 = vadd.f32 0.0, %v1411
    %v1413 = vpop.f32.mrb[0].mxu0
    %v1414 = vpop.f32.mrb[0].mxu0
    %v1415 = vpop.f32.mrb[0].mxu0
    %1416 = vdwg.mxu0
    %v1417 = vadd.f32 %v1323, %v1368
    %v1418 = vxor.u32 %v1417, 2147483648
    %v1419 = vmul.f32 %v1418, 1.442695
    %v1420 = vpow.pop %v1419
    %v1421 = vadd.f32 %v1420, 1.0
    %v1422 = vrcp.pop %v1421
    %v1423 = vmul.f32 1.0, %v1422
    %v1424 = vadd.f32 %v1368, %v551
    %1426 = vrot.lane.b32.xlu0 %v1424, 64
    %v1427 = vpop.permute.xlu0 %1426
    %v1429 = vmul.f32 %v1423, %v1427
    %1431 = vrot.lane.b32.xlu0 %v1429, 64
    %v1432 = vpop.permute.xlu0 %1431
    %v1434 = vadd.f32 %v1323, %v1432
    %v1435 = vtanh.pop %v1434
    %v1436 = vsub.f32 1.0, %v1423
    %1438 = vrot.lane.b32.xlu0 %v1435, 96
    %v1439 = vpop.permute.xlu0 %1438
    %v1441 = vmul.f32 %v1436, %v1439
    %v1442 = vmul.f32 %v1423, %v1274
    %v1443 = vadd.f32 %v1441, %v1442
    %1445 = vrot.lane.b32.xlu0 %v1412, 96
    %v1446 = vpop.permute.xlu0 %1445
    %v1448 = vadd.f32 %v1324, %v1446
    %v1449 = vxor.u32 %v1448, 2147483648
    %v1450 = vmul.f32 %v1449, 1.442695
    %v1451 = vpow.pop %v1450
    %v1452 = vadd.f32 %v1451, 1.0
    %v1453 = vrcp.pop %v1452
    %v1454 = vmul.f32 1.0, %v1453
    %v1455 = vadd.f32 %v1325, %v1446
    %v1456 = vxor.u32 %v1455, 2147483648
    %v1457 = vmul.f32 %v1456, 1.442695
    %v1458 = vpow.pop %v1457
    %v1459 = vadd.f32 %v1458, 1.0
    %v1460 = vrcp.pop %v1459
    %v1461 = vmul.f32 1.0, %v1460
    %v1462 = vadd.f32 %v1412, %v601
    %1464 = vrot.lane.b32.xlu0 %v1462, 32
    %v1465 = vpop.permute.xlu0 %1464
    %v1467 = vmul.f32 %v1454, %v1465
    %1469 = vrot.lane.b32.xlu0 %v1467, 64
    %v1470 = vpop.permute.xlu0 %1469
    %v1472 = vadd.f32 %v1325, %v1470
    %v1473 = vtanh.pop %v1472
    %v1474 = vsub.f32 1.0, %v1461
    %1476 = vrot.lane.b32.xlu0 %v1473, 96
    %v1477 = vpop.permute.xlu0 %1476
    %v1479 = vmul.f32 %v1474, %v1477
    %v1480 = vmul.f32 %v1461, %v1312
    %v1481 = vadd.f32 %v1479, %v1480
    %1483 = vrot.lane.b32.xlu0 %v1443, 96
    %v1484 = vpop.permute.xlu0 %1483
    %1486 = vst.msk [vmem:[%s979] sm:$0xff] %vm438, %v1484
    %1488 = vrot.lane.b32.xlu0 %v1481, 32
    %v1489 = vpop.permute.xlu0 %1488
    %1491 = vst.msk [vmem:[%s973] sm:$0xff] %vm633, %v1489
    %v1492 = vld [vmem:[%s637] sm:$0xff]
    %v1493 = vld [vmem:[%s635] sm:$0xff]
    %v1494 = vld [vmem:[%s635 + $0x8] sm:$0xff]
    %v1495 = vpack.c.bf16 %v1443, %v1443
    %1497 = vrot.lane.b32.xlu0 %v1495, 96
    %v1498 = vpop.permute.xlu0 %1497
    %v1500 = vsel %vm438, %v1498, 0
    %1502 = vmatprep.subr.bf16.mxu0 0
    %1503 = vmatpush1.bf16.msra.mxu0 %v434
    %1504 = vmatprep.subr.bf16.mxu0 0
    %1505 = vmatpush1.bf16.msra.mxu0 %v435
    %1506 = vmatprep.subr.bf16.mxu0 0
    %1507 = vmatpush1.bf16.msra.mxu0 0
    %1508 = vmatprep.subr.bf16.mxu0 0
    %1509 = vmatpush1.bf16.msra.mxu0 0
    %1510 = vmatprep.subr.bf16.mxu0 0
    %1511 = vmatpush1.bf16.msra.mxu0 0
    %1512 = vmatprep.subr.bf16.mxu0 0
    %1513 = vmatpush1.bf16.msra.mxu0 0
    %1514 = vmatprep.subr.bf16.mxu0 0
    %1515 = vmatpush1.bf16.msra.mxu0 0
    %1516 = vmatprep.subr.bf16.mxu0 0
    %1517 = vmatpush1.bf16.msra.mxu0 0
    %1518 = vmatprep.subr.bf16.mxu0 0
    %1519 = vmatpush1.bf16.msra.mxu0 0
    %1520 = vmatprep.subr.bf16.mxu0 0
    %1521 = vmatpush1.bf16.msra.mxu0 0
    %1522 = vmatprep.subr.bf16.mxu0 0
    %1523 = vmatpush1.bf16.msra.mxu0 0
    %1524 = vmatprep.subr.bf16.mxu0 0
    %1525 = vmatpush1.bf16.msra.mxu0 0
    %1526 = vmatprep.subr.bf16.mxu0 0
    %1527 = vmatpush1.bf16.msra.mxu0 0
    %1528 = vmatprep.subr.bf16.mxu0 0
    %1529 = vmatpush1.bf16.msra.mxu0 0
    %1530 = vmatprep.subr.bf16.mxu0 0
    %1531 = vmatpush1.bf16.msra.mxu0 0
    %1532 = vmatprep.subr.bf16.mxu0 0
    %1533 = vmatpush1.bf16.msra.mxu0 0
    %1534 = vmatprep.mubr.bf16.mxu0 0
    %1535 = vmatmul.mubr.bf16.gmra.mrb[0].mxu0 %v1500
    %v1536 = vpop.f32.mrb[0].mxu0
    %v1537 = vadd.f32 0.0, %v1536
    %v1538 = vpop.f32.mrb[0].mxu0
    %v1539 = vpop.f32.mrb[0].mxu0
    %v1540 = vpop.f32.mrb[0].mxu0
    %1541 = vdwg.mxu0
    %v1542 = vpack.c.bf16 %v1481, %v1481
    %v1544 = vsel %vm438, %v1542, 0
    %1546 = vmatprep.subr.bf16.mxu0 0
    %1547 = vmatpush1.bf16.msra.mxu0 %v491
    %1548 = vmatprep.subr.bf16.mxu0 0
    %1549 = vmatpush1.bf16.msra.mxu0 %v492
    %1550 = vmatprep.subr.bf16.mxu0 0
    %1551 = vmatpush1.bf16.msra.mxu0 0
    %1552 = vmatprep.subr.bf16.mxu0 0
    %1553 = vmatpush1.bf16.msra.mxu0 0
    %1554 = vmatprep.subr.bf16.mxu0 0
    %1555 = vmatpush1.bf16.msra.mxu0 0
    %1556 = vmatprep.subr.bf16.mxu0 0
    %1557 = vmatpush1.bf16.msra.mxu0 0
    %1558 = vmatprep.subr.bf16.mxu0 0
    %1559 = vmatpush1.bf16.msra.mxu0 0
    %1560 = vmatprep.subr.bf16.mxu0 0
    %1561 = vmatpush1.bf16.msra.mxu0 0
    %1562 = vmatprep.subr.bf16.mxu0 0
    %1563 = vmatpush1.bf16.msra.mxu0 0
    %1564 = vmatprep.subr.bf16.mxu0 0
    %1565 = vmatpush1.bf16.msra.mxu0 0
    %1566 = vmatprep.subr.bf16.mxu0 0
    %1567 = vmatpush1.bf16.msra.mxu0 0
    %1568 = vmatprep.subr.bf16.mxu0 0
    %1569 = vmatpush1.bf16.msra.mxu0 0
    %1570 = vmatprep.subr.bf16.mxu0 0
    %1571 = vmatpush1.bf16.msra.mxu0 0
    %1572 = vmatprep.subr.bf16.mxu0 0
    %1573 = vmatpush1.bf16.msra.mxu0 0
    %1574 = vmatprep.subr.bf16.mxu0 0
    %1575 = vmatpush1.bf16.msra.mxu0 0
    %1576 = vmatprep.subr.bf16.mxu0 0
    %1577 = vmatpush1.bf16.msra.mxu0 0
    %1578 = vmatprep.mubr.bf16.mxu0 0
    %1579 = vmatmul.mubr.bf16.gmra.mrb[0].mxu0 %v1544
    %v1580 = vpop.f32.mrb[0].mxu0
    %v1581 = vadd.f32 0.0, %v1580
    %v1582 = vpop.f32.mrb[0].mxu0
    %v1583 = vpop.f32.mrb[0].mxu0
    %v1584 = vpop.f32.mrb[0].mxu0
    %1585 = vdwg.mxu0
    %v1586 = vadd.f32 %v1492, %v1537
    %v1587 = vxor.u32 %v1586, 2147483648
    %v1588 = vmul.f32 %v1587, 1.442695
    %v1589 = vpow.pop %v1588
    %v1590 = vadd.f32 %v1589, 1.0
    %v1591 = vrcp.pop %v1590
    %v1592 = vmul.f32 1.0, %v1591
    %v1593 = vadd.f32 %v1537, %v551
    %1595 = vrot.lane.b32.xlu0 %v1593, 64
    %v1596 = vpop.permute.xlu0 %1595
    %v1598 = vmul.f32 %v1592, %v1596
    %1600 = vrot.lane.b32.xlu0 %v1598, 64
    %v1601 = vpop.permute.xlu0 %1600
    %v1603 = vadd.f32 %v1492, %v1601
    %v1604 = vtanh.pop %v1603
    %v1605 = vsub.f32 1.0, %v1592
    %1607 = vrot.lane.b32.xlu0 %v1604, 96
    %v1608 = vpop.permute.xlu0 %1607
    %v1610 = vmul.f32 %v1605, %v1608
    %v1611 = vmul.f32 %v1592, %v1443
    %v1612 = vadd.f32 %v1610, %v1611
    %1614 = vrot.lane.b32.xlu0 %v1581, 96
    %v1615 = vpop.permute.xlu0 %1614
    %v1617 = vadd.f32 %v1493, %v1615
    %v1618 = vxor.u32 %v1617, 2147483648
    %v1619 = vmul.f32 %v1618, 1.442695
    %v1620 = vpow.pop %v1619
    %v1621 = vadd.f32 %v1620, 1.0
    %v1622 = vrcp.pop %v1621
    %v1623 = vmul.f32 1.0, %v1622
    %v1624 = vadd.f32 %v1494, %v1615
    %v1625 = vxor.u32 %v1624, 2147483648
    %v1626 = vmul.f32 %v1625, 1.442695
    %v1627 = vpow.pop %v1626
    %v1628 = vadd.f32 %v1627, 1.0
    %v1629 = vrcp.pop %v1628
    %v1630 = vmul.f32 1.0, %v1629
    %v1631 = vadd.f32 %v1581, %v601
    %1633 = vrot.lane.b32.xlu0 %v1631, 32
    %v1634 = vpop.permute.xlu0 %1633
    %v1636 = vmul.f32 %v1623, %v1634
    %1638 = vrot.lane.b32.xlu0 %v1636, 64
    %v1639 = vpop.permute.xlu0 %1638
    %v1641 = vadd.f32 %v1494, %v1639
    %v1642 = vtanh.pop %v1641
    %v1643 = vsub.f32 1.0, %v1630
    %1645 = vrot.lane.b32.xlu0 %v1642, 96
    %v1646 = vpop.permute.xlu0 %1645
    %v1648 = vmul.f32 %v1643, %v1646
    %v1649 = vmul.f32 %v1630, %v1481
    %v1650 = vadd.f32 %v1648, %v1649
    %1652 = vrot.lane.b32.xlu0 %v1612, 96
    %v1653 = vpop.permute.xlu0 %1652
    %1655 = vst.msk [vmem:[%s806] sm:$0xff] %vm438, %v1653
    %1657 = vrot.lane.b32.xlu0 %v1650, 32
    %v1658 = vpop.permute.xlu0 %1657
    %1660 = vst.msk [vmem:[%s800] sm:$0xff] %vm633, %v1658
    %v1661 = vld [vmem:[%s422] sm:$0xff]
    %v1662 = vld [vmem:[#allocation2] sm:$0xff]
    %v1663 = vld [vmem:[#allocation2 + $0x8] sm:$0xff]
    %v1664 = vpack.c.bf16 %v1612, %v1612
    %1666 = vrot.lane.b32.xlu0 %v1664, 96
    %v1667 = vpop.permute.xlu0 %1666
    %v1669 = vsel %vm438, %v1667, 0
    %1671 = vmatprep.subr.bf16.mxu0 0
    %1672 = vmatpush1.bf16.msra.mxu0 %v434
    %1673 = vmatprep.subr.bf16.mxu0 0
    %1674 = vmatpush1.bf16.msra.mxu0 %v435
    %1675 = vmatprep.subr.bf16.mxu0 0
    %1676 = vmatpush1.bf16.msra.mxu0 0
    %1677 = vmatprep.subr.bf16.mxu0 0
    %1678 = vmatpush1.bf16.msra.mxu0 0
    %1679 = vmatprep.subr.bf16.mxu0 0
    %1680 = vmatpush1.bf16.msra.mxu0 0
    %1681 = vmatprep.subr.bf16.mxu0 0
    %1682 = vmatpush1.bf16.msra.mxu0 0
    %1683 = vmatprep.subr.bf16.mxu0 0
    %1684 = vmatpush1.bf16.msra.mxu0 0
    %1685 = vmatprep.subr.bf16.mxu0 0
    %1686 = vmatpush1.bf16.msra.mxu0 0
    %1687 = vmatprep.subr.bf16.mxu0 0
    %1688 = vmatpush1.bf16.msra.mxu0 0
    %1689 = vmatprep.subr.bf16.mxu0 0
    %1690 = vmatpush1.bf16.msra.mxu0 0
    %1691 = vmatprep.subr.bf16.mxu0 0
    %1692 = vmatpush1.bf16.msra.mxu0 0
    %1693 = vmatprep.subr.bf16.mxu0 0
    %1694 = vmatpush1.bf16.msra.mxu0 0
    %1695 = vmatprep.subr.bf16.mxu0 0
    %1696 = vmatpush1.bf16.msra.mxu0 0
    %1697 = vmatprep.subr.bf16.mxu0 0
    %1698 = vmatpush1.bf16.msra.mxu0 0
    %1699 = vmatprep.subr.bf16.mxu0 0
    %1700 = vmatpush1.bf16.msra.mxu0 0
    %1701 = vmatprep.subr.bf16.mxu0 0
    %1702 = vmatpush1.bf16.msra.mxu0 0
    %1703 = vmatprep.mubr.bf16.mxu0 0
    %1704 = vmatmul.mubr.bf16.gmra.mrb[0].mxu0 %v1669
    %v1705 = vpop.f32.mrb[0].mxu0
    %v1706 = vadd.f32 0.0, %v1705
    %v1707 = vpop.f32.mrb[0].mxu0
    %v1708 = vpop.f32.mrb[0].mxu0
    %v1709 = vpop.f32.mrb[0].mxu0
    %1710 = vdwg.mxu0
    %v1711 = vpack.c.bf16 %v1650, %v1650
    %v1713 = vsel %vm438, %v1711, 0
    %1715 = vmatprep.subr.bf16.mxu0 0
    %1716 = vmatpush1.bf16.msra.mxu0 %v491
    %1717 = vmatprep.subr.bf16.mxu0 0
    %1718 = vmatpush1.bf16.msra.mxu0 %v492
    %1719 = vmatprep.subr.bf16.mxu0 0
    %1720 = vmatpush1.bf16.msra.mxu0 0
    %1721 = vmatprep.subr.bf16.mxu0 0
    %1722 = vmatpush1.bf16.msra.mxu0 0
    %1723 = vmatprep.subr.bf16.mxu0 0
    %1724 = vmatpush1.bf16.msra.mxu0 0
    %1725 = vmatprep.subr.bf16.mxu0 0
    %1726 = vmatpush1.bf16.msra.mxu0 0
    %1727 = vmatprep.subr.bf16.mxu0 0
    %1728 = vmatpush1.bf16.msra.mxu0 0
    %1729 = vmatprep.subr.bf16.mxu0 0
    %1730 = vmatpush1.bf16.msra.mxu0 0
    %1731 = vmatprep.subr.bf16.mxu0 0
    %1732 = vmatpush1.bf16.msra.mxu0 0
    %1733 = vmatprep.subr.bf16.mxu0 0
    %1734 = vmatpush1.bf16.msra.mxu0 0
    %1735 = vmatprep.subr.bf16.mxu0 0
    %1736 = vmatpush1.bf16.msra.mxu0 0
    %1737 = vmatprep.subr.bf16.mxu0 0
    %1738 = vmatpush1.bf16.msra.mxu0 0
    %1739 = vmatprep.subr.bf16.mxu0 0
    %1740 = vmatpush1.bf16.msra.mxu0 0
    %1741 = vmatprep.subr.bf16.mxu0 0
    %1742 = vmatpush1.bf16.msra.mxu0 0
    %1743 = vmatprep.subr.bf16.mxu0 0
    %1744 = vmatpush1.bf16.msra.mxu0 0
    %1745 = vmatprep.subr.bf16.mxu0 0
    %1746 = vmatpush1.bf16.msra.mxu0 0
    %1747 = vmatprep.mubr.bf16.mxu0 0
    %1748 = vmatmul.mubr.bf16.gmra.mrb[0].mxu0 %v1713
    %v1749 = vpop.f32.mrb[0].mxu0
    %v1750 = vadd.f32 0.0, %v1749
    %v1751 = vpop.f32.mrb[0].mxu0
    %v1752 = vpop.f32.mrb[0].mxu0
    %v1753 = vpop.f32.mrb[0].mxu0
    %1754 = vdwg.mxu0
    %v1755 = vadd.f32 %v1661, %v1706
    %v1756 = vxor.u32 %v1755, 2147483648
    %v1757 = vmul.f32 %v1756, 1.442695
    %v1758 = vpow.pop %v1757
    %v1759 = vadd.f32 %v1758, 1.0
    %v1760 = vrcp.pop %v1759
    %v1761 = vmul.f32 1.0, %v1760
    %v1762 = vadd.f32 %v1706, %v551
    %1764 = vrot.lane.b32.xlu0 %v1762, 64
    %v1765 = vpop.permute.xlu0 %1764
    %v1767 = vmul.f32 %v1761, %v1765
    %1769 = vrot.lane.b32.xlu0 %v1767, 64
    %v1770 = vpop.permute.xlu0 %1769
    %v1772 = vadd.f32 %v1661, %v1770
    %v1773 = vtanh.pop %v1772
    %v1774 = vsub.f32 1.0, %v1761
    %1776 = vrot.lane.b32.xlu0 %v1773, 96
    %v1777 = vpop.permute.xlu0 %1776
    %v1779 = vmul.f32 %v1774, %v1777
    %v1780 = vmul.f32 %v1761, %v1612
    %v1781 = vadd.f32 %v1779, %v1780
    %1783 = vrot.lane.b32.xlu0 %v1750, 96
    %v1784 = vpop.permute.xlu0 %1783
    %v1786 = vadd.f32 %v1662, %v1784
    %v1787 = vxor.u32 %v1786, 2147483648
    %v1788 = vmul.f32 %v1787, 1.442695
    %v1789 = vpow.pop %v1788
    %v1790 = vadd.f32 %v1789, 1.0
    %v1791 = vrcp.pop %v1790
    %v1792 = vmul.f32 1.0, %v1791
    %v1793 = vadd.f32 %v1663, %v1784
    %v1794 = vxor.u32 %v1793, 2147483648
    %v1795 = vmul.f32 %v1794, 1.442695
    %v1796 = vpow.pop %v1795
    %v1797 = vadd.f32 %v1796, 1.0
    %v1798 = vrcp.pop %v1797
    %v1799 = vmul.f32 1.0, %v1798
    %v1800 = vadd.f32 %v1750, %v601
    %1802 = vrot.lane.b32.xlu0 %v1800, 32
    %v1803 = vpop.permute.xlu0 %1802
    %v1805 = vmul.f32 %v1792, %v1803
    %1807 = vrot.lane.b32.xlu0 %v1805, 64
    %v1808 = vpop.permute.xlu0 %1807
    %v1810 = vadd.f32 %v1663, %v1808
    %v1811 = vtanh.pop %v1810
    %v1812 = vsub.f32 1.0, %v1799
    %1814 = vrot.lane.b32.xlu0 %v1811, 96
    %v1815 = vpop.permute.xlu0 %1814
    %v1817 = vmul.f32 %v1812, %v1815
    %v1818 = vmul.f32 %v1799, %v1650
    %v1819 = vadd.f32 %v1817, %v1818
    %1821 = vrot.lane.b32.xlu0 %v1781, 96
    %v1822 = vpop.permute.xlu0 %1821
    %1824 = vst.msk [vmem:[%s632] sm:$0xff] %vm438, %v1822
    %1826 = vrot.lane.b32.xlu0 %v1819, 32
    %v1827 = vpop.permute.xlu0 %1826
    %1829 = vst.msk [vmem:[#allocation3] sm:$0xff] %vm633, %v1827
    %1830 = vst.msk [vmem:[#allocation8] sm:$0xff] %vm438, %v1822
    %s1831 = scalar_lea.vmem [#allocation8], 8
    %1832 = vst.msk [vmem:[%s1831] sm:$0xff] %vm438, %v1819
    %v1833 = vld [vmem:[#allocation3] sm:$0xff]
    %v1834 = vld [vmem:[#allocation3 + $0x8] sm:$0xff]
    %v1835 = vld [vmem:[#allocation3 + $0x10] sm:$0xff]
    %v1836 = vld [vmem:[#allocation3 + $0x18] sm:$0xff]
    %v1837 = vld [vmem:[#allocation3 + $0x20] sm:$0xff]
    %v1838 = vld [vmem:[#allocation3 + $0x28] sm:$0xff]
    %v1839 = vld [vmem:[#allocation3 + $0x30] sm:$0xff]
    %v1840 = vld [vmem:[#allocation3 + $0x38] sm:$0xff]
    %v1841 = vpack.c.bf16 %v1834, %v1833
    %v1842 = vpack.c.bf16 %v1836, %v1835
    %v1843 = vpack.c.bf16 %v1838, %v1837
    %v1844 = vpack.c.bf16 %v1840, %v1839
    %v1845 = vld [vmem:[%s9] sm:$0xf]
    %v1846 = vld [vmem:[%s9 + $0x4] sm:$0xf]
    %v1847 = vld [vmem:[%s9 + $0x8] sm:$0xf]
    %v1848 = vld [vmem:[%s9 + $0xc] sm:$0xf]
    %v1849 = vld [vmem:[%s9 + $0x10] sm:$0xf]
    %v1850 = vld [vmem:[%s9 + $0x14] sm:$0xf]
    %v1851 = vld [vmem:[%s9 + $0x18] sm:$0xf]
    %v1852 = vld [vmem:[%s9 + $0x1c] sm:$0xf]
    %v1853 = vld [vmem:[%s10] sm:$0x1]
    %v1855 = vlaneseq
    %v1856 = vshrl.u32 %v1855, 7
    %v1857 = vsub.s32 0, %v1856
    %v1858 = vrot.slane %v1853, %v1857
    %v1868 = vunpack.c.l.b16 %v1845
    %v1869 = vunpack.c.l.b16 %v1846
    %v1870 = vunpack.c.l.b16 %v1847
    %v1871 = vunpack.c.l.b16 %v1848
    %v1872 = vunpack.c.l.b16 %v1849
    %v1873 = vunpack.c.l.b16 %v1850
    %v1874 = vunpack.c.l.b16 %v1851
    %v1875 = vunpack.c.l.b16 %v1852
    %v1876 = vpack.c.b16 %v1869, %v1868
    %v1877 = vpack.c.b16 %v1871, %v1870
    %v1878 = vpack.c.b16 %v1873, %v1872
    %v1879 = vpack.c.b16 %v1875, %v1874
    %v1885 = vsel %vm306, %v1841, 0
    %v1888 = vsel %vm306, %v1842, 0
    %v1891 = vsel %vm306, %v1843, 0
    %v1894 = vsel %vm306, %v1844, 0
    %1896 = vmatprep.subr.bf16.mxu0 0
    %1897 = vmatpush1.bf16.msra.mxu0 %v1876
    %1898 = vmatprep.subr.bf16.mxu0 0
    %1899 = vmatpush1.bf16.msra.mxu0 %v1877
    %1900 = vmatprep.subr.bf16.mxu0 0
    %1901 = vmatpush1.bf16.msra.mxu0 %v1878
    %1902 = vmatprep.subr.bf16.mxu0 0
    %1903 = vmatpush1.bf16.msra.mxu0 %v1879
    %1904 = vmatprep.subr.bf16.mxu0 0
    %1905 = vmatpush1.bf16.msra.mxu0 0
    %1906 = vmatprep.subr.bf16.mxu0 0
    %1907 = vmatpush1.bf16.msra.mxu0 0
    %1908 = vmatprep.subr.bf16.mxu0 0
    %1909 = vmatpush1.bf16.msra.mxu0 0
    %1910 = vmatprep.subr.bf16.mxu0 0
    %1911 = vmatpush1.bf16.msra.mxu0 0
    %1912 = vmatprep.subr.bf16.mxu0 0
    %1913 = vmatpush1.bf16.msra.mxu0 0
    %1914 = vmatprep.subr.bf16.mxu0 0
    %1915 = vmatpush1.bf16.msra.mxu0 0
    %1916 = vmatprep.subr.bf16.mxu0 0
    %1917 = vmatpush1.bf16.msra.mxu0 0
    %1918 = vmatprep.subr.bf16.mxu0 0
    %1919 = vmatpush1.bf16.msra.mxu0 0
    %1920 = vmatprep.subr.bf16.mxu0 0
    %1921 = vmatpush1.bf16.msra.mxu0 0
    %1922 = vmatprep.subr.bf16.mxu0 0
    %1923 = vmatpush1.bf16.msra.mxu0 0
    %1924 = vmatprep.subr.bf16.mxu0 0
    %1925 = vmatpush1.bf16.msra.mxu0 0
    %1926 = vmatprep.subr.bf16.mxu0 0
    %1927 = vmatpush1.bf16.msra.mxu0 0
    %1928 = vmatprep.mubr.bf16.mxu0 0
    %1929 = vmatmul.mubr.bf16.gmra.mrb[0].mxu0 %v1885
    %v1930 = vpop.f32.mrb[0].mxu0
    %v1931 = vadd.f32 %v1858, %v1930
    %v1932 = vpop.f32.mrb[0].mxu0
    %v1933 = vpop.f32.mrb[0].mxu0
    %v1934 = vadd.f32 %v1858, %v1933
    %v1935 = vpop.f32.mrb[0].mxu0
    %1936 = vmatprep.mubr.bf16.mxu0 0
    %1937 = vmatmul.mubr.bf16.gmra.mrb[0].mxu0 %v1888
    %v1938 = vpop.f32.mrb[0].mxu0
    %v1939 = vadd.f32 %v1858, %v1938
    %v1940 = vpop.f32.mrb[0].mxu0
    %v1941 = vpop.f32.mrb[0].mxu0
    %v1942 = vadd.f32 %v1858, %v1941
    %v1943 = vpop.f32.mrb[0].mxu0
    %1944 = vmatprep.mubr.bf16.mxu0 0
    %1945 = vmatmul.mubr.bf16.gmra.mrb[0].mxu0 %v1891
    %v1946 = vpop.f32.mrb[0].mxu0
    %v1947 = vadd.f32 %v1858, %v1946
    %v1948 = vpop.f32.mrb[0].mxu0
    %v1949 = vpop.f32.mrb[0].mxu0
    %v1950 = vadd.f32 %v1858, %v1949
    %v1951 = vpop.f32.mrb[0].mxu0
    %1952 = vmatprep.mubr.bf16.mxu0 0
    %1953 = vmatmul.mubr.bf16.gmra.mrb[0].mxu0 %v1894
    %v1954 = vpop.f32.mrb[0].mxu0
    %v1955 = vadd.f32 %v1858, %v1954
    %v1956 = vpop.f32.mrb[0].mxu0
    %v1957 = vpop.f32.mrb[0].mxu0
    %v1958 = vadd.f32 %v1858, %v1957
    %v1959 = vpop.f32.mrb[0].mxu0
    %1960 = vdwg.mxu0
    %v1961 = vxor.u32 %v1931, 2147483648
    %v1962 = vxor.u32 %v1934, 2147483648
    %v1963 = vxor.u32 %v1939, 2147483648
    %v1964 = vxor.u32 %v1942, 2147483648
    %v1965 = vxor.u32 %v1947, 2147483648
    %v1966 = vxor.u32 %v1950, 2147483648
    %v1967 = vxor.u32 %v1955, 2147483648
    %v1968 = vxor.u32 %v1958, 2147483648
    %v1969 = vmul.f32 %v1961, 1.442695
    %v1970 = vpow.pop %v1969
    %v1971 = vmul.f32 %v1962, 1.442695
    %v1972 = vpow.pop %v1971
    %v1973 = vmul.f32 %v1963, 1.442695
    %v1974 = vpow.pop %v1973
    %v1975 = vmul.f32 %v1964, 1.442695
    %v1976 = vpow.pop %v1975
    %v1977 = vmul.f32 %v1965, 1.442695
    %v1978 = vpow.pop %v1977
    %v1979 = vmul.f32 %v1966, 1.442695
    %v1980 = vpow.pop %v1979
    %v1981 = vmul.f32 %v1967, 1.442695
    %v1982 = vpow.pop %v1981
    %v1983 = vmul.f32 %v1968, 1.442695
    %v1984 = vpow.pop %v1983
    %v1985 = vadd.f32 %v1970, 1.0
    %v1986 = vadd.f32 %v1972, 1.0
    %v1987 = vadd.f32 %v1974, 1.0
    %v1988 = vadd.f32 %v1976, 1.0
    %v1989 = vadd.f32 %v1978, 1.0
    %v1990 = vadd.f32 %v1980, 1.0
    %v1991 = vadd.f32 %v1982, 1.0
    %v1992 = vadd.f32 %v1984, 1.0
    %v1993 = vrcp.pop %v1985
    %v1994 = vmul.f32 1.0, %v1993
    %v1995 = vrcp.pop %v1986
    %v1996 = vmul.f32 1.0, %v1995
    %v1997 = vrcp.pop %v1987
    %v1998 = vmul.f32 1.0, %v1997
    %v1999 = vrcp.pop %v1988
    %v2000 = vmul.f32 1.0, %v1999
    %v2001 = vrcp.pop %v1989
    %v2002 = vmul.f32 1.0, %v2001
    %v2003 = vrcp.pop %v1990
    %v2004 = vmul.f32 1.0, %v2003
    %v2005 = vrcp.pop %v1991
    %v2006 = vmul.f32 1.0, %v2005
    %v2007 = vrcp.pop %v1992
    %v2008 = vmul.f32 1.0, %v2007
    %v2009 = vld [vmem:[%s11] sm:$0x1]
    %v2011 = vlaneseq
    %v2012 = vshrl.u32 %v2011, 7
    %v2013 = vsub.s32 0, %v2012
    %v2014 = vrot.slane %v2009, %v2013
    %v2016 = vmul.f32 %v1994, %v2014
    %v2017 = vmul.f32 %v1996, %v2014
    %v2018 = vmul.f32 %v1998, %v2014
    %v2019 = vmul.f32 %v2000, %v2014
    %v2020 = vmul.f32 %v2002, %v2014
    %v2021 = vmul.f32 %v2004, %v2014
    %v2022 = vmul.f32 %v2006, %v2014
    %v2023 = vmul.f32 %v2008, %v2014
    %v2024 = vsel %vm306, %v2016, 0.0
    %2025 = vadd.xlane.f32.xlu0 %v2024
    %v2026 = vpop.xlane.xlu0 %2025
    %v2027 = vsel %vm306, %v2017, 0.0
    %2028 = vadd.xlane.f32.xlu0 %v2027
    %v2029 = vpop.xlane.xlu0 %2028
    %v2030 = vsel %vm306, %v2018, 0.0
    %2031 = vadd.xlane.f32.xlu0 %v2030
    %v2032 = vpop.xlane.xlu0 %2031
    %v2033 = vsel %vm306, %v2019, 0.0
    %2034 = vadd.xlane.f32.xlu0 %v2033
    %v2035 = vpop.xlane.xlu0 %2034
    %v2036 = vsel %vm306, %v2020, 0.0
    %2037 = vadd.xlane.f32.xlu0 %v2036
    %v2038 = vpop.xlane.xlu0 %2037
    %v2039 = vsel %vm306, %v2021, 0.0
    %2040 = vadd.xlane.f32.xlu0 %v2039
    %v2041 = vpop.xlane.xlu0 %2040
    %v2042 = vsel %vm306, %v2022, 0.0
    %2043 = vadd.xlane.f32.xlu0 %v2042
    %v2044 = vpop.xlane.xlu0 %2043
    %v2045 = vsel %vm306, %v2023, 0.0
    %2046 = vadd.xlane.f32.xlu0 %v2045
    %v2047 = vpop.xlane.xlu0 %2046
    %v2048 = vxor.u32 %v2026, 2147483648
    %v2049 = vxor.u32 %v2029, 2147483648
    %v2050 = vxor.u32 %v2032, 2147483648
    %v2051 = vxor.u32 %v2035, 2147483648
    %v2052 = vxor.u32 %v2038, 2147483648
    %v2053 = vxor.u32 %v2041, 2147483648
    %v2054 = vxor.u32 %v2044, 2147483648
    %v2055 = vxor.u32 %v2047, 2147483648
    %v2056 = vmul.f32 %v2048, 1.442695
    %v2057 = vpow.pop %v2056
    %v2058 = vmul.f32 %v2049, 1.442695
    %v2059 = vpow.pop %v2058
    %v2060 = vmul.f32 %v2050, 1.442695
    %v2061 = vpow.pop %v2060
    %v2062 = vmul.f32 %v2051, 1.442695
    %v2063 = vpow.pop %v2062
    %v2064 = vmul.f32 %v2052, 1.442695
    %v2065 = vpow.pop %v2064
    %v2066 = vmul.f32 %v2053, 1.442695
    %v2067 = vpow.pop %v2066
    %v2068 = vmul.f32 %v2054, 1.442695
    %v2069 = vpow.pop %v2068
    %v2070 = vmul.f32 %v2055, 1.442695
    %v2071 = vpow.pop %v2070
    %v2072 = vadd.f32 %v2057, 1.0
    %v2073 = vadd.f32 %v2059, 1.0
    %v2074 = vadd.f32 %v2061, 1.0
    %v2075 = vadd.f32 %v2063, 1.0
    %v2076 = vadd.f32 %v2065, 1.0
    %v2077 = vadd.f32 %v2067, 1.0
    %v2078 = vadd.f32 %v2069, 1.0
    %v2079 = vadd.f32 %v2071, 1.0
    %v2080 = vrcp.pop %v2072
    %v2081 = vmul.f32 1.0, %v2080
    %v2082 = vrcp.pop %v2073
    %v2083 = vmul.f32 1.0, %v2082
    %v2084 = vrcp.pop %v2074
    %v2085 = vmul.f32 1.0, %v2084
    %v2086 = vrcp.pop %v2075
    %v2087 = vmul.f32 1.0, %v2086
    %v2088 = vrcp.pop %v2076
    %v2089 = vmul.f32 1.0, %v2088
    %v2090 = vrcp.pop %v2077
    %v2091 = vmul.f32 1.0, %v2090
    %v2092 = vrcp.pop %v2078
    %v2093 = vmul.f32 1.0, %v2092
    %v2094 = vrcp.pop %v2079
    %v2095 = vmul.f32 1.0, %v2094
    %vm2096 = vcmask 7168
    %2097 = vst.msk [vmem:[%s14] sm:$0xff] %vm2096, %v2081
    %2098 = vst.msk [vmem:[%s14 + $0x8] sm:$0xff] %vm2096, %v2083
    %2099 = vst.msk [vmem:[%s14 + $0x10] sm:$0xff] %vm2096, %v2085
    %2100 = vst.msk [vmem:[%s14 + $0x18] sm:$0xff] %vm2096, %v2087
    %2101 = vst.msk [vmem:[%s14 + $0x20] sm:$0xff] %vm2096, %v2089
    %2102 = vst.msk [vmem:[%s14 + $0x28] sm:$0xff] %vm2096, %v2091
    %2103 = vst.msk [vmem:[%s14 + $0x30] sm:$0xff] %vm2096, %v2093
    %2104 = vst.msk [vmem:[%s14 + $0x38] sm:$0xff] %vm2096, %v2095
    %v2105 = vmul.f32 %v1833, %v2081
    %v2106 = vmul.f32 %v1834, %v2083
    %v2107 = vmul.f32 %v1835, %v2085
    %v2108 = vmul.f32 %v1836, %v2087
    %v2109 = vmul.f32 %v1837, %v2089
    %v2110 = vmul.f32 %v1838, %v2091
    %v2111 = vmul.f32 %v1839, %v2093
    %v2112 = vmul.f32 %v1840, %v2095
    %v2113 = vsel %vm306, %v2105, 0.0
    %v2114 = vsel %vm306, %v2106, 0.0
    %v2115 = vadd.f32 %v2113, %v2114
    %v2116 = vsel %vm306, %v2107, 0.0
    %v2117 = vadd.f32 %v2115, %v2116
    %v2118 = vsel %vm306, %v2108, 0.0
    %v2119 = vadd.f32 %v2117, %v2118
    %v2120 = vsel %vm306, %v2109, 0.0
    %v2121 = vadd.f32 %v2119, %v2120
    %v2122 = vsel %vm306, %v2110, 0.0
    %v2123 = vadd.f32 %v2121, %v2122
    %v2124 = vsel %vm306, %v2111, 0.0
    %v2125 = vadd.f32 %v2123, %v2124
    %v2126 = vsel %vm306, %v2112, 0.0
    %v2127 = vadd.f32 %v2125, %v2126
    %2128 = vst.msk [vmem:[#allocation7] sm:$0xff] %vm306, %v2127
    // Predicated region
    $region54: #{tpu_custom_call.1} parent=1 // pred_check
      _
    $region55: #{tpu_custom_call.1} parent=1 // pred_check_branch
      %2130 = sbr.rel (0) target = $region57
    $region56: #{tpu_custom_call.1} parent=1 // pred_region
      %s2132 = ssub.s32 128, 128
      %2133 = vsyncadd [#allocation6], %s2132
      %s2135 = sshll.u32 [#allocation7], 4
      %s2136 = int_to_ptr.vmem [resolvable:$true] %s2135
      %2138 = dma.vmem_to_hbm [thread:$0]  %s2136, 128, %s12, [#allocation6]
    $region57: #{tpu_custom_call.1} parent=1 // pred_fallthru
      _
    // Predicated region
    $region58: #{tpu_custom_call.1} parent=1 // pred_check
      _
    $region59: #{tpu_custom_call.1} parent=1 // pred_check_branch
      %2140 = sbr.rel (0) target = $region61
    $region60: #{tpu_custom_call.1} parent=1 // pred_region
      %s2142 = ssub.s32 256, 256
      %2143 = vsyncadd [#allocation9], %s2142
      %s2144 = sshll.u32 [#allocation8], 4
      %s2145 = int_to_ptr.vmem [resolvable:$true] %s2144
      %2150 = dma.vmem_to_hbm [thread:$0]  %s2145, 256, %s13, [#allocation9], 128, 128, 8
    $region61: #{tpu_custom_call.1} parent=1 // pred_fallthru
      _
    // Predicated region
    $region62: #{tpu_custom_call.1} parent=1 // pred_check
      _
    $region63: #{tpu_custom_call.1} parent=1 // pred_check_branch
      %2152 = sbr.rel (0) target = $region65
    $region64: #{tpu_custom_call.1} parent=1 // pred_region
      _
    $region65: #{tpu_custom_call.1} parent=1 // pred_fallthru
      _
    // Predicated region
    $region66: #{tpu_custom_call.1} parent=1 // pred_check
      _
    $region67: #{tpu_custom_call.1} parent=1 // pred_check_branch
      %2154 = sbr.rel (0) target = $region69
    $region68: #{tpu_custom_call.1} parent=1 // pred_region
      %2155 = dma.done [#allocation6], 128
    $region69: #{tpu_custom_call.1} parent=1 // pred_fallthru
      _
    // Predicated region
    $region70: #{tpu_custom_call.1} parent=1 // pred_check
      _
    $region71: #{tpu_custom_call.1} parent=1 // pred_check_branch
      %2157 = sbr.rel (0) target = $region73
    $region72: #{tpu_custom_call.1} parent=1 // pred_region
      %2158 = dma.done [#allocation9], 256
    $region73: #{tpu_custom_call.1} parent=1 // pred_fallthru
      _
    // Predicated region
    $region74: #{tpu_custom_call.1} parent=1 // pred_check
      _
    $region75: #{tpu_custom_call.1} parent=1 // pred_check_branch
      %2160 = sbr.rel (0) target = $region77
    $region76: #{tpu_custom_call.1} parent=1 // pred_region
      _
    $region77: #{tpu_custom_call.1} parent=1 // pred_fallthru
      _
    %2161 = vsyncpa [#allocation5], 1
    %2162 = vsyncpa [#allocation6], 1
    %2163 = vsyncpa [#allocation9], 1

</llo_original>
